<compile_context>
chip_gen: v6e
topology: v6e:2x2x1
jax: 0.10.0
libtpu: 0.0.40
codegen_flags: <defaults>
</compile_context>

<pallas_src>
import jax
import jax.numpy as jnp
from jax.experimental import pallas as pl
from jax.experimental.pallas import tpu as pltpu


def _cdiv(a, b):
    return (a + b - 1) // b


def _round_up(x, m):
    return ((x + m - 1) // m) * m


# ----------------------------------------------------------------------------
# Kernel: implicit-im2col 3x3 conv + folded BN + LeakyReLU for one row block.
# ----------------------------------------------------------------------------
def _conv3x3_bn_lrelu_kernel(x_ref, w_ref, scale_ref, shift_ref, o_ref):
    # x_ref:     (th+2, W+2, Cin)  bf16 input tile with 1-row / 1-col halo
    # w_ref:     (9, Cin, Cout)    bf16 conv weights, tap-major (kh*3 + kw)
    # scale_ref: (1, Cout)         f32 BN scale  gamma / sqrt(var + eps)
    # shift_ref: (1, Cout)         f32 BN shift  beta - mean * scale
    # o_ref:     (th, W, Cout)     activation tile
    th, W, cout = o_ref.shape
    cin = x_ref.shape[-1]

    x = x_ref[...]
    w = w_ref[...]

    acc = jnp.zeros((th * W, cout), jnp.float32)
    for kh in range(3):                       # unrolled at trace time: 9 MXU dots
        for kw in range(3):
            xs = x[kh:kh + th, kw:kw + W, :].reshape(th * W, cin)
            acc = acc + jnp.dot(xs, w[kh * 3 + kw],
                                preferred_element_type=jnp.float32)

    y = acc * scale_ref[...] + shift_ref[...]     # BN in f32 epilogue
    y = jnp.maximum(y, 0.2 * y)                   # LeakyReLU(0.2): mul + max
    o_ref[...] = y.reshape(th, W, cout).astype(o_ref.dtype)


# ----------------------------------------------------------------------------
# Tiling / VMEM sizing.
# ----------------------------------------------------------------------------
def _vmem_budget_bytes():
    """~96 MiB on 128-MiB-VMEM parts (v5e/v6e), ~40 MiB on v7x (64 MiB/TC)."""
    try:
        cap = int(pltpu.get_tpu_info().vmem_capacity_bytes)
    except Exception:
        return 40 * 1024 * 1024          # safe on every generation
    if cap >= 100 * 1024 * 1024:
        return 96 * 1024 * 1024
    return 40 * 1024 * 1024


def _pick_th(N, H, W, Cin, Cout, in_bytes, budget):
    """Largest row-block height whose (layout-padded) VMEM footprint fits."""
    cin_l = _round_up(Cin, 128)          # lane padding of the minor dim in VMEM
    cout_l = _round_up(Cout, 128)
    wp_s = _round_up(W + 2, 16)          # sublane padding (bf16 tile = (16,128))
    w_s = _round_up(W, 16)

    def footprint(th):
        in_tile = (th + 2) * wp_s * cin_l * in_bytes
        out_tile = th * w_s * cout_l * in_bytes
        wgt = 9 * cin_l * cout_l * in_bytes
        acc = th * W * cout_l * 4                  # f32 accumulator (counted!)
        tmp = 2 * th * W * cin_l * in_bytes        # shifted-slice temporaries
        return (2 * in_tile + 2 * out_tile + 2 * wgt + acc + tmp
                + 8 * 1024 * 1024)                 # Mosaic internal scratch

    th = min(256, max(1, H))
    while th > 8 and footprint(th) > budget:
        th = max(8, th // 2)
    # >= 8 grid steps when there is enough work (>= 4 per v7x TensorCore) so
    # the software pipeline can hide the input-tile DMA behind compute.
    while th > 8 and N * _cdiv(H, th) < 8:
        th = max(8, th // 2)
    return th, footprint(th)


# ----------------------------------------------------------------------------
# One OPS layer: conv3x3(s=1, p=1, no bias) + BN(inference) + LeakyReLU(0.2).
# ----------------------------------------------------------------------------
def _conv3x3_bn_lrelu(x_nhwc, w_oihw, gamma, beta, run_mean, run_var, eps,
                      compute_dtype):
    N, H, W, Cin = x_nhwc.shape
    Cout = w_oihw.shape[0]

    # Folded BatchNorm: scale/shift applied in the kernel's f32 epilogue.
    scale = gamma.astype(jnp.float32) / jnp.sqrt(run_var.astype(jnp.float32) + eps)
    shift = beta.astype(jnp.float32) - run_mean.astype(jnp.float32) * scale
    scale2 = scale.reshape(1, Cout)
    shift2 = shift.reshape(1, Cout)

    # OIHW -> (kh, kw, Cin, Cout) -> (9, Cin, Cout), tap-major to match kernel.
    w_taps = jnp.transpose(w_oihw, (2, 3, 1, 0)).reshape(9, Cin, Cout)
    w_taps = w_taps.astype(compute_dtype)

    in_bytes = jnp.dtype(compute_dtype).itemsize
    budget = _vmem_budget_bytes()
    th, vmem_need = _pick_th(N, H, W, Cin, Cout, in_bytes, budget)
    nblk = _cdiv(H, th)
    Hp = nblk * th

    # Spatial conv padding (+ <th bottom rows for a ragged last block).  This
    # is the only pad and it is activation-sized, not im2col-sized.
    xp = jnp.pad(x_nhwc.astype(compute_dtype),
                 ((0, 0), (1, 1 + Hp - H), (1, 1), (0, 0)))
    # Row blocks with a replicated 1-row halo: (N, nblk, th+2, W+2, Cin).
    # ~(th+2)/th x the activation instead of the 9x materialized im2col.
    blocks = jnp.stack([xp[:, b * th:b * th + th + 2] for b in range(nblk)],
                       axis=1)

    flops = 2 * N * Hp * W * 9 * Cin * Cout
    bytes_accessed = (blocks.size * in_bytes + w_taps.size * in_bytes
                      + (scale2.size + shift2.size) * 4
                      + N * Hp * W * Cout * in_bytes)
    vmem_limit = int(max(32 * 1024 * 1024,
                         min(budget, vmem_need + 4 * 1024 * 1024)))

    out = pl.pallas_call(
        _conv3x3_bn_lrelu_kernel,
        out_shape=jax.ShapeDtypeStruct((N, Hp, W, Cout), compute_dtype),
        grid=(N, nblk),
        in_specs=[
            # Grid-varying input row-block tile (halo included).
            pl.BlockSpec((None, None, th + 2, W + 2, Cin),
                         lambda n, b: (n, b, 0, 0, 0)),
            # Grid-invariant operands (tiny).
            pl.BlockSpec((9, Cin, Cout), lambda n, b: (0, 0, 0)),
            pl.BlockSpec((1, Cout), lambda n, b: (0, 0)),
            pl.BlockSpec((1, Cout), lambda n, b: (0, 0)),
        ],
        # Cout left UNPADDED (full-dim block) -> no 128-lane HBM write tax for
        # small-channel layers; masked stores are the cheaper trade here.
        out_specs=pl.BlockSpec((None, th, W, Cout), lambda n, b: (n, b, 0, 0)),
        compiler_params=pltpu.CompilerParams(
            dimension_semantics=("parallel", "parallel"),
            vmem_limit_bytes=vmem_limit,
        ),
        cost_estimate=pl.CostEstimate(flops=int(flops), transcendentals=0,
                                      bytes_accessed=int(bytes_accessed)),
    )(blocks, w_taps, scale2, shift2)

    return out[:, :H]


# ----------------------------------------------------------------------------
# ConvBlock forward.
# ----------------------------------------------------------------------------
def conv_block_forward(x_nchw, layer_params, eps=1e-5,
                       compute_dtype=jnp.bfloat16):
    """ConvBlock forward.

    x_nchw: (N, Cin, H, W).
    layer_params: sequence of (w_oihw, gamma, beta, running_mean, running_var),
    one per stacked OPS layer (channels in->out, then out->out, ...).
    Returns (N, Cout_last, H, W) float32.
    """
    x = jnp.transpose(x_nchw, (0, 2, 3, 1))   # NHWC, kept (bf16) across layers
    for (w, g, b, m, v) in layer_params:
        x = _conv3x3_bn_lrelu(x, w, g, b, m, v, eps, compute_dtype)
    # TODO(synk): fuse consecutive layers into a single pallas_call with the
    # intermediate kept VMEM-resident (2-row halo) to drop the HBM round trip.
    return jnp.transpose(x, (0, 3, 1, 2)).astype(jnp.float32)


def _reference_forward(x_nchw, layer_params, eps=1e-5):
    """Pure-JAX (lax conv, f32) reference for correctness check."""
    y = x_nchw.astype(jnp.float32)
    for (w, g, b, m, v) in layer_params:
        y = jax.lax.conv_general_dilated(
            y, w.astype(jnp.float32), window_strides=(1, 1),
            padding=((1, 1), (1, 1)),
            dimension_numbers=("NCHW", "OIHW", "NCHW"))
        scale = (g / jnp.sqrt(v + eps)).reshape(1, -1, 1, 1)
        shift = (b - m * g / jnp.sqrt(v + eps)).reshape(1, -1, 1, 1)
        y = y * scale + shift
        y = jnp.where(y >= 0.0, y, 0.2 * y)
    return y


if __name__ == "__main__":
    key = jax.random.PRNGKey(0)
    keys = jax.random.split(key, 8)

    N, Cin, H, W = 2, 4, 16, 16
    Cout = 8
    block_amount = 2   # ConvBlock stacks block_amount ops: (Cin->Cout), (Cout->Cout)

    x = jax.random.normal(keys[0], (N, Cin, H, W), dtype=jnp.float32)

    layer_params = []
    cin = Cin
    for li in range(block_amount):
        kw_, kg, kb, km, kv = jax.random.split(keys[1 + li], 5)
        w = 0.1 * jax.random.normal(kw_, (Cout, cin, 3, 3), dtype=jnp.float32)
        gamma = 1.0 + 0.05 * jax.random.normal(kg, (Cout,), dtype=jnp.float32)
        beta = 0.05 * jax.random.normal(kb, (Cout,), dtype=jnp.float32)
        run_mean = 0.1 * jax.random.normal(km, (Cout,), dtype=jnp.float32)
        run_var = 1.0 + 0.1 * jax.random.uniform(kv, (Cout,), dtype=jnp.float32)
        layer_params.append((w, gamma, beta, run_mean, run_var))
        cin = Cout

    fwd = jax.jit(conv_block_forward)
    out = jax.block_until_ready(fwd(x, layer_params))

    ref = _reference_forward(x, layer_params)
    assert out.shape == (N, Cout, H, W), out.shape
    max_err = float(jnp.max(jnp.abs(out - ref)))
    assert jnp.allclose(out, ref, atol=5e-2, rtol=5e-2), f"mismatch: max|err|={max_err}"

    print("KERNEL_OK")
</pallas_src>

<mosaic_0001>
module attributes {stable_mosaic.version = 11 : i64} {
  func.func @_conv3x3_bn_lrelu_kernel(%arg0: i32, %arg1: i32, %arg2: memref<1x1x10x18x4xbf16, #tpu.memory_space<vmem>>, %arg3: memref<9x4x8xbf16, #tpu.memory_space<vmem>>, %arg4: memref<1x8xf32, #tpu.memory_space<vmem>>, %arg5: memref<1x8xf32, #tpu.memory_space<vmem>>, %arg6: memref<1x8x16x8xbf16, #tpu.memory_space<vmem>>) attributes {dimension_semantics = [#tpu.dimension_semantics<parallel>, #tpu.dimension_semantics<parallel>], iteration_bounds = array<i64: 2, 2>, scalar_prefetch = 0 : i64, scratch_operands = 0 : i64, tpu.core_type = #tpu.core_type<tc>, window_params = [{transform_indices = @transform_0, window_bounds = array<i64: 1, 1, 10, 18, 4>}, {pipeline_mode = #tpu.pipeline_mode<synchronous>, transform_indices = @transform_1, window_bounds = array<i64: 9, 4, 8>}, {pipeline_mode = #tpu.pipeline_mode<synchronous>, transform_indices = @transform_2, window_bounds = array<i64: 1, 8>}, {pipeline_mode = #tpu.pipeline_mode<synchronous>, transform_indices = @transform_3, window_bounds = array<i64: 1, 8>}, {transform_indices = @transform_4, window_bounds = array<i64: 1, 8, 16, 8>}]} {
    %c0 = arith.constant 0 : index
    %c0_0 = arith.constant 0 : index
    %c0_1 = arith.constant 0 : index
    %c0_2 = arith.constant 0 : index
    %c0_3 = arith.constant 0 : index
    %0 = vector.load %arg2[%c0, %c0_0, %c0_1, %c0_2, %c0_3] : memref<1x1x10x18x4xbf16, #tpu.memory_space<vmem>>, vector<1x1x10x18x4xbf16>
    %1 = vector.shape_cast %0 : vector<1x1x10x18x4xbf16> to vector<10x18x4xbf16>
    %c0_4 = arith.constant 0 : index
    %c0_5 = arith.constant 0 : index
    %c0_6 = arith.constant 0 : index
    %2 = vector.load %arg3[%c0_4, %c0_5, %c0_6] : memref<9x4x8xbf16, #tpu.memory_space<vmem>>, vector<9x4x8xbf16>
    %cst = arith.constant 0.000000e+00 : f32
    %3 = vector.broadcast %cst : f32 to vector<128x8xf32>
    %4 = vector.extract_strided_slice %1 {offsets = [0, 0, 0], sizes = [8, 16, 4], strides = [1, 1, 1]} : vector<10x18x4xbf16> to vector<8x16x4xbf16>
    %5 = vector.shape_cast %4 : vector<8x16x4xbf16> to vector<128x4xbf16>
    %6 = vector.extract_strided_slice %2 {offsets = [0, 0, 0], sizes = [1, 4, 8], strides = [1, 1, 1]} : vector<9x4x8xbf16> to vector<1x4x8xbf16>
    %7 = vector.shape_cast %6 : vector<1x4x8xbf16> to vector<4x8xbf16>
    %cst_7 = arith.constant dense<0.000000e+00> : vector<128x8xf32>
    %8 = tpu.matmul %5, %7, %cst_7 {dimension_numbers = #tpu.dot_dimension_numbers<[1], [0], [0], [1], [0, 0, 1, 1], [], []>} : vector<128x4xbf16>, vector<4x8xbf16>, vector<128x8xf32> -> vector<128x8xf32>
    %9 = arith.addf %3, %8 : vector<128x8xf32>
    %10 = vector.extract_strided_slice %1 {offsets = [0, 1, 0], sizes = [8, 16, 4], strides = [1, 1, 1]} : vector<10x18x4xbf16> to vector<8x16x4xbf16>
    %11 = vector.shape_cast %10 : vector<8x16x4xbf16> to vector<128x4xbf16>
    %12 = vector.extract_strided_slice %2 {offsets = [1, 0, 0], sizes = [1, 4, 8], strides = [1, 1, 1]} : vector<9x4x8xbf16> to vector<1x4x8xbf16>
    %13 = vector.shape_cast %12 : vector<1x4x8xbf16> to vector<4x8xbf16>
    %cst_8 = arith.constant dense<0.000000e+00> : vector<128x8xf32>
    %14 = tpu.matmul %11, %13, %cst_8 {dimension_numbers = #tpu.dot_dimension_numbers<[1], [0], [0], [1], [0, 0, 1, 1], [], []>} : vector<128x4xbf16>, vector<4x8xbf16>, vector<128x8xf32> -> vector<128x8xf32>
    %15 = arith.addf %9, %14 : vector<128x8xf32>
    %16 = vector.extract_strided_slice %1 {offsets = [0, 2, 0], sizes = [8, 16, 4], strides = [1, 1, 1]} : vector<10x18x4xbf16> to vector<8x16x4xbf16>
    %17 = vector.shape_cast %16 : vector<8x16x4xbf16> to vector<128x4xbf16>
    %18 = vector.extract_strided_slice %2 {offsets = [2, 0, 0], sizes = [1, 4, 8], strides = [1, 1, 1]} : vector<9x4x8xbf16> to vector<1x4x8xbf16>
    %19 = vector.shape_cast %18 : vector<1x4x8xbf16> to vector<4x8xbf16>
    %cst_9 = arith.constant dense<0.000000e+00> : vector<128x8xf32>
    %20 = tpu.matmul %17, %19, %cst_9 {dimension_numbers = #tpu.dot_dimension_numbers<[1], [0], [0], [1], [0, 0, 1, 1], [], []>} : vector<128x4xbf16>, vector<4x8xbf16>, vector<128x8xf32> -> vector<128x8xf32>
    %21 = arith.addf %15, %20 : vector<128x8xf32>
    %22 = vector.extract_strided_slice %1 {offsets = [1, 0, 0], sizes = [8, 16, 4], strides = [1, 1, 1]} : vector<10x18x4xbf16> to vector<8x16x4xbf16>
    %23 = vector.shape_cast %22 : vector<8x16x4xbf16> to vector<128x4xbf16>
    %24 = vector.extract_strided_slice %2 {offsets = [3, 0, 0], sizes = [1, 4, 8], strides = [1, 1, 1]} : vector<9x4x8xbf16> to vector<1x4x8xbf16>
    %25 = vector.shape_cast %24 : vector<1x4x8xbf16> to vector<4x8xbf16>
    %cst_10 = arith.constant dense<0.000000e+00> : vector<128x8xf32>
    %26 = tpu.matmul %23, %25, %cst_10 {dimension_numbers = #tpu.dot_dimension_numbers<[1], [0], [0], [1], [0, 0, 1, 1], [], []>} : vector<128x4xbf16>, vector<4x8xbf16>, vector<128x8xf32> -> vector<128x8xf32>
    %27 = arith.addf %21, %26 : vector<128x8xf32>
    %28 = vector.extract_strided_slice %1 {offsets = [1, 1, 0], sizes = [8, 16, 4], strides = [1, 1, 1]} : vector<10x18x4xbf16> to vector<8x16x4xbf16>
    %29 = vector.shape_cast %28 : vector<8x16x4xbf16> to vector<128x4xbf16>
    %30 = vector.extract_strided_slice %2 {offsets = [4, 0, 0], sizes = [1, 4, 8], strides = [1, 1, 1]} : vector<9x4x8xbf16> to vector<1x4x8xbf16>
    %31 = vector.shape_cast %30 : vector<1x4x8xbf16> to vector<4x8xbf16>
    %cst_11 = arith.constant dense<0.000000e+00> : vector<128x8xf32>
    %32 = tpu.matmul %29, %31, %cst_11 {dimension_numbers = #tpu.dot_dimension_numbers<[1], [0], [0], [1], [0, 0, 1, 1], [], []>} : vector<128x4xbf16>, vector<4x8xbf16>, vector<128x8xf32> -> vector<128x8xf32>
    %33 = arith.addf %27, %32 : vector<128x8xf32>
    %34 = vector.extract_strided_slice %1 {offsets = [1, 2, 0], sizes = [8, 16, 4], strides = [1, 1, 1]} : vector<10x18x4xbf16> to vector<8x16x4xbf16>
    %35 = vector.shape_cast %34 : vector<8x16x4xbf16> to vector<128x4xbf16>
    %36 = vector.extract_strided_slice %2 {offsets = [5, 0, 0], sizes = [1, 4, 8], strides = [1, 1, 1]} : vector<9x4x8xbf16> to vector<1x4x8xbf16>
    %37 = vector.shape_cast %36 : vector<1x4x8xbf16> to vector<4x8xbf16>
    %cst_12 = arith.constant dense<0.000000e+00> : vector<128x8xf32>
    %38 = tpu.matmul %35, %37, %cst_12 {dimension_numbers = #tpu.dot_dimension_numbers<[1], [0], [0], [1], [0, 0, 1, 1], [], []>} : vector<128x4xbf16>, vector<4x8xbf16>, vector<128x8xf32> -> vector<128x8xf32>
    %39 = arith.addf %33, %38 : vector<128x8xf32>
    %40 = vector.extract_strided_slice %1 {offsets = [2, 0, 0], sizes = [8, 16, 4], strides = [1, 1, 1]} : vector<10x18x4xbf16> to vector<8x16x4xbf16>
    %41 = vector.shape_cast %40 : vector<8x16x4xbf16> to vector<128x4xbf16>
    %42 = vector.extract_strided_slice %2 {offsets = [6, 0, 0], sizes = [1, 4, 8], strides = [1, 1, 1]} : vector<9x4x8xbf16> to vector<1x4x8xbf16>
    %43 = vector.shape_cast %42 : vector<1x4x8xbf16> to vector<4x8xbf16>
    %cst_13 = arith.constant dense<0.000000e+00> : vector<128x8xf32>
    %44 = tpu.matmul %41, %43, %cst_13 {dimension_numbers = #tpu.dot_dimension_numbers<[1], [0], [0], [1], [0, 0, 1, 1], [], []>} : vector<128x4xbf16>, vector<4x8xbf16>, vector<128x8xf32> -> vector<128x8xf32>
    %45 = arith.addf %39, %44 : vector<128x8xf32>
    %46 = vector.extract_strided_slice %1 {offsets = [2, 1, 0], sizes = [8, 16, 4], strides = [1, 1, 1]} : vector<10x18x4xbf16> to vector<8x16x4xbf16>
    %47 = vector.shape_cast %46 : vector<8x16x4xbf16> to vector<128x4xbf16>
    %48 = vector.extract_strided_slice %2 {offsets = [7, 0, 0], sizes = [1, 4, 8], strides = [1, 1, 1]} : vector<9x4x8xbf16> to vector<1x4x8xbf16>
    %49 = vector.shape_cast %48 : vector<1x4x8xbf16> to vector<4x8xbf16>
    %cst_14 = arith.constant dense<0.000000e+00> : vector<128x8xf32>
    %50 = tpu.matmul %47, %49, %cst_14 {dimension_numbers = #tpu.dot_dimension_numbers<[1], [0], [0], [1], [0, 0, 1, 1], [], []>} : vector<128x4xbf16>, vector<4x8xbf16>, vector<128x8xf32> -> vector<128x8xf32>
    %51 = arith.addf %45, %50 : vector<128x8xf32>
    %52 = vector.extract_strided_slice %1 {offsets = [2, 2, 0], sizes = [8, 16, 4], strides = [1, 1, 1]} : vector<10x18x4xbf16> to vector<8x16x4xbf16>
    %53 = vector.shape_cast %52 : vector<8x16x4xbf16> to vector<128x4xbf16>
    %54 = vector.extract_strided_slice %2 {offsets = [8, 0, 0], sizes = [1, 4, 8], strides = [1, 1, 1]} : vector<9x4x8xbf16> to vector<1x4x8xbf16>
    %55 = vector.shape_cast %54 : vector<1x4x8xbf16> to vector<4x8xbf16>
    %cst_15 = arith.constant dense<0.000000e+00> : vector<128x8xf32>
    %56 = tpu.matmul %53, %55, %cst_15 {dimension_numbers = #tpu.dot_dimension_numbers<[1], [0], [0], [1], [0, 0, 1, 1], [], []>} : vector<128x4xbf16>, vector<4x8xbf16>, vector<128x8xf32> -> vector<128x8xf32>
    %57 = arith.addf %51, %56 : vector<128x8xf32>
    %c0_16 = arith.constant 0 : index
    %c0_17 = arith.constant 0 : index
    %58 = vector.load %arg4[%c0_16, %c0_17] : memref<1x8xf32, #tpu.memory_space<vmem>>, vector<1x8xf32>
    %59 = vector.broadcast %58 : vector<1x8xf32> to vector<128x8xf32>
    %60 = arith.mulf %57, %59 : vector<128x8xf32>
    %c0_18 = arith.constant 0 : index
    %c0_19 = arith.constant 0 : index
    %61 = vector.load %arg5[%c0_18, %c0_19] : memref<1x8xf32, #tpu.memory_space<vmem>>, vector<1x8xf32>
    %62 = vector.broadcast %61 : vector<1x8xf32> to vector<128x8xf32>
    %63 = arith.addf %60, %62 : vector<128x8xf32>
    %cst_20 = arith.constant 2.000000e-01 : f32
    %64 = vector.broadcast %cst_20 : f32 to vector<128x8xf32>
    %65 = arith.mulf %64, %63 : vector<128x8xf32>
    %66 = arith.maximumf %63, %65 : vector<128x8xf32>
    %67 = vector.shape_cast %66 : vector<128x8xf32> to vector<8x16x8xf32>
    %68 = arith.truncf %67 : vector<8x16x8xf32> to vector<8x16x8xbf16>
    %c0_21 = arith.constant 0 : index
    %c0_22 = arith.constant 0 : index
    %c0_23 = arith.constant 0 : index
    %c0_24 = arith.constant 0 : index
    %69 = vector.load %arg6[%c0_21, %c0_22, %c0_23, %c0_24] : memref<1x8x16x8xbf16, #tpu.memory_space<vmem>>, vector<1x8x16x8xbf16>
    %70 = vector.shape_cast %69 : vector<1x8x16x8xbf16> to vector<8x16x8xbf16>
    %71 = vector.shape_cast %68 : vector<8x16x8xbf16> to vector<1x8x16x8xbf16>
    tpu.vector_store %arg6[%c0_21, %c0_22, %c0_23, %c0_24], %71 {strides = array<i32>} : memref<1x8x16x8xbf16, #tpu.memory_space<vmem>>, vector<1x8x16x8xbf16>,
    return
  }
  func.func @transform_0(%arg0: i32, %arg1: i32) -> (i32, i32, i32, i32, i32) {
    %c0_i32 = arith.constant 0 : i32
    %c0_i32_0 = arith.constant 0 : i32
    %c0_i32_1 = arith.constant 0 : i32
    %c0_i32_2 = arith.constant 0 : i32
    return %arg0, %arg1, %c0_i32, %c0_i32_0, %c0_i32_1 : i32, i32, i32, i32, i32
  }
  func.func @transform_1(%arg0: i32, %arg1: i32) -> (i32, i32, i32) {
    %c0_i32 = arith.constant 0 : i32
    %c0_i32_0 = arith.constant 0 : i32
    %c0_i32_1 = arith.constant 0 : i32
    %c0_i32_2 = arith.constant 0 : i32
    return %c0_i32, %c0_i32_0, %c0_i32_1 : i32, i32, i32
  }
  func.func @transform_2(%arg0: i32, %arg1: i32) -> (i32, i32) {
    %c0_i32 = arith.constant 0 : i32
    %c0_i32_0 = arith.constant 0 : i32
    %c0_i32_1 = arith.constant 0 : i32
    return %c0_i32, %c0_i32_0 : i32, i32
  }
  func.func @transform_3(%arg0: i32, %arg1: i32) -> (i32, i32) {
    %c0_i32 = arith.constant 0 : i32
    %c0_i32_0 = arith.constant 0 : i32
    %c0_i32_1 = arith.constant 0 : i32
    return %c0_i32, %c0_i32_0 : i32, i32
  }
  func.func @transform_4(%arg0: i32, %arg1: i32) -> (i32, i32, i32, i32) {
    %c0_i32 = arith.constant 0 : i32
    %c0_i32_0 = arith.constant 0 : i32
    %c0_i32_1 = arith.constant 0 : i32
    return %arg0, %arg1, %c0_i32, %c0_i32_0 : i32, i32, i32, i32
  }
}

module attributes {stable_mosaic.version = 11 : i64} {
  func.func @_conv3x3_bn_lrelu_kernel(%arg0: i32, %arg1: i32, %arg2: memref<1x1x10x18x8xbf16, #tpu.memory_space<vmem>>, %arg3: memref<9x8x8xbf16, #tpu.memory_space<vmem>>, %arg4: memref<1x8xf32, #tpu.memory_space<vmem>>, %arg5: memref<1x8xf32, #tpu.memory_space<vmem>>, %arg6: memref<1x8x16x8xbf16, #tpu.memory_space<vmem>>) attributes {dimension_semantics = [#tpu.dimension_semantics<parallel>, #tpu.dimension_semantics<parallel>], iteration_bounds = array<i64: 2, 2>, scalar_prefetch = 0 : i64, scratch_operands = 0 : i64, tpu.core_type = #tpu.core_type<tc>, window_params = [{transform_indices = @transform_0, window_bounds = array<i64: 1, 1, 10, 18, 8>}, {pipeline_mode = #tpu.pipeline_mode<synchronous>, transform_indices = @transform_1, window_bounds = array<i64: 9, 8, 8>}, {pipeline_mode = #tpu.pipeline_mode<synchronous>, transform_indices = @transform_2, window_bounds = array<i64: 1, 8>}, {pipeline_mode = #tpu.pipeline_mode<synchronous>, transform_indices = @transform_3, window_bounds = array<i64: 1, 8>}, {transform_indices = @transform_4, window_bounds = array<i64: 1, 8, 16, 8>}]} {
    %c0 = arith.constant 0 : index
    %c0_0 = arith.constant 0 : index
    %c0_1 = arith.constant 0 : index
    %c0_2 = arith.constant 0 : index
    %c0_3 = arith.constant 0 : index
    %0 = vector.load %arg2[%c0, %c0_0, %c0_1, %c0_2, %c0_3] : memref<1x1x10x18x8xbf16, #tpu.memory_space<vmem>>, vector<1x1x10x18x8xbf16>
    %1 = vector.shape_cast %0 : vector<1x1x10x18x8xbf16> to vector<10x18x8xbf16>
    %c0_4 = arith.constant 0 : index
    %c0_5 = arith.constant 0 : index
    %c0_6 = arith.constant 0 : index
    %2 = vector.load %arg3[%c0_4, %c0_5, %c0_6] : memref<9x8x8xbf16, #tpu.memory_space<vmem>>, vector<9x8x8xbf16>
    %cst = arith.constant 0.000000e+00 : f32
    %3 = vector.broadcast %cst : f32 to vector<128x8xf32>
    %4 = vector.extract_strided_slice %1 {offsets = [0, 0, 0], sizes = [8, 16, 8], strides = [1, 1, 1]} : vector<10x18x8xbf16> to vector<8x16x8xbf16>
    %5 = vector.shape_cast %4 : vector<8x16x8xbf16> to vector<128x8xbf16>
    %6 = vector.extract_strided_slice %2 {offsets = [0, 0, 0], sizes = [1, 8, 8], strides = [1, 1, 1]} : vector<9x8x8xbf16> to vector<1x8x8xbf16>
    %7 = vector.shape_cast %6 : vector<1x8x8xbf16> to vector<8x8xbf16>
    %cst_7 = arith.constant dense<0.000000e+00> : vector<128x8xf32>
    %8 = tpu.matmul %5, %7, %cst_7 {dimension_numbers = #tpu.dot_dimension_numbers<[1], [0], [0], [1], [0, 0, 1, 1], [], []>} : vector<128x8xbf16>, vector<8x8xbf16>, vector<128x8xf32> -> vector<128x8xf32>
    %9 = arith.addf %3, %8 : vector<128x8xf32>
    %10 = vector.extract_strided_slice %1 {offsets = [0, 1, 0], sizes = [8, 16, 8], strides = [1, 1, 1]} : vector<10x18x8xbf16> to vector<8x16x8xbf16>
    %11 = vector.shape_cast %10 : vector<8x16x8xbf16> to vector<128x8xbf16>
    %12 = vector.extract_strided_slice %2 {offsets = [1, 0, 0], sizes = [1, 8, 8], strides = [1, 1, 1]} : vector<9x8x8xbf16> to vector<1x8x8xbf16>
    %13 = vector.shape_cast %12 : vector<1x8x8xbf16> to vector<8x8xbf16>
    %cst_8 = arith.constant dense<0.000000e+00> : vector<128x8xf32>
    %14 = tpu.matmul %11, %13, %cst_8 {dimension_numbers = #tpu.dot_dimension_numbers<[1], [0], [0], [1], [0, 0, 1, 1], [], []>} : vector<128x8xbf16>, vector<8x8xbf16>, vector<128x8xf32> -> vector<128x8xf32>
    %15 = arith.addf %9, %14 : vector<128x8xf32>
    %16 = vector.extract_strided_slice %1 {offsets = [0, 2, 0], sizes = [8, 16, 8], strides = [1, 1, 1]} : vector<10x18x8xbf16> to vector<8x16x8xbf16>
    %17 = vector.shape_cast %16 : vector<8x16x8xbf16> to vector<128x8xbf16>
    %18 = vector.extract_strided_slice %2 {offsets = [2, 0, 0], sizes = [1, 8, 8], strides = [1, 1, 1]} : vector<9x8x8xbf16> to vector<1x8x8xbf16>
    %19 = vector.shape_cast %18 : vector<1x8x8xbf16> to vector<8x8xbf16>
    %cst_9 = arith.constant dense<0.000000e+00> : vector<128x8xf32>
    %20 = tpu.matmul %17, %19, %cst_9 {dimension_numbers = #tpu.dot_dimension_numbers<[1], [0], [0], [1], [0, 0, 1, 1], [], []>} : vector<128x8xbf16>, vector<8x8xbf16>, vector<128x8xf32> -> vector<128x8xf32>
    %21 = arith.addf %15, %20 : vector<128x8xf32>
    %22 = vector.extract_strided_slice %1 {offsets = [1, 0, 0], sizes = [8, 16, 8], strides = [1, 1, 1]} : vector<10x18x8xbf16> to vector<8x16x8xbf16>
    %23 = vector.shape_cast %22 : vector<8x16x8xbf16> to vector<128x8xbf16>
    %24 = vector.extract_strided_slice %2 {offsets = [3, 0, 0], sizes = [1, 8, 8], strides = [1, 1, 1]} : vector<9x8x8xbf16> to vector<1x8x8xbf16>
    %25 = vector.shape_cast %24 : vector<1x8x8xbf16> to vector<8x8xbf16>
    %cst_10 = arith.constant dense<0.000000e+00> : vector<128x8xf32>
    %26 = tpu.matmul %23, %25, %cst_10 {dimension_numbers = #tpu.dot_dimension_numbers<[1], [0], [0], [1], [0, 0, 1, 1], [], []>} : vector<128x8xbf16>, vector<8x8xbf16>, vector<128x8xf32> -> vector<128x8xf32>
    %27 = arith.addf %21, %26 : vector<128x8xf32>
    %28 = vector.extract_strided_slice %1 {offsets = [1, 1, 0], sizes = [8, 16, 8], strides = [1, 1, 1]} : vector<10x18x8xbf16> to vector<8x16x8xbf16>
    %29 = vector.shape_cast %28 : vector<8x16x8xbf16> to vector<128x8xbf16>
    %30 = vector.extract_strided_slice %2 {offsets = [4, 0, 0], sizes = [1, 8, 8], strides = [1, 1, 1]} : vector<9x8x8xbf16> to vector<1x8x8xbf16>
    %31 = vector.shape_cast %30 : vector<1x8x8xbf16> to vector<8x8xbf16>
    %cst_11 = arith.constant dense<0.000000e+00> : vector<128x8xf32>
    %32 = tpu.matmul %29, %31, %cst_11 {dimension_numbers = #tpu.dot_dimension_numbers<[1], [0], [0], [1], [0, 0, 1, 1], [], []>} : vector<128x8xbf16>, vector<8x8xbf16>, vector<128x8xf32> -> vector<128x8xf32>
    %33 = arith.addf %27, %32 : vector<128x8xf32>
    %34 = vector.extract_strided_slice %1 {offsets = [1, 2, 0], sizes = [8, 16, 8], strides = [1, 1, 1]} : vector<10x18x8xbf16> to vector<8x16x8xbf16>
    %35 = vector.shape_cast %34 : vector<8x16x8xbf16> to vector<128x8xbf16>
    %36 = vector.extract_strided_slice %2 {offsets = [5, 0, 0], sizes = [1, 8, 8], strides = [1, 1, 1]} : vector<9x8x8xbf16> to vector<1x8x8xbf16>
    %37 = vector.shape_cast %36 : vector<1x8x8xbf16> to vector<8x8xbf16>
    %cst_12 = arith.constant dense<0.000000e+00> : vector<128x8xf32>
    %38 = tpu.matmul %35, %37, %cst_12 {dimension_numbers = #tpu.dot_dimension_numbers<[1], [0], [0], [1], [0, 0, 1, 1], [], []>} : vector<128x8xbf16>, vector<8x8xbf16>, vector<128x8xf32> -> vector<128x8xf32>
    %39 = arith.addf %33, %38 : vector<128x8xf32>
    %40 = vector.extract_strided_slice %1 {offsets = [2, 0, 0], sizes = [8, 16, 8], strides = [1, 1, 1]} : vector<10x18x8xbf16> to vector<8x16x8xbf16>
    %41 = vector.shape_cast %40 : vector<8x16x8xbf16> to vector<128x8xbf16>
    %42 = vector.extract_strided_slice %2 {offsets = [6, 0, 0], sizes = [1, 8, 8], strides = [1, 1, 1]} : vector<9x8x8xbf16> to vector<1x8x8xbf16>
    %43 = vector.shape_cast %42 : vector<1x8x8xbf16> to vector<8x8xbf16>
    %cst_13 = arith.constant dense<0.000000e+00> : vector<128x8xf32>
    %44 = tpu.matmul %41, %43, %cst_13 {dimension_numbers = #tpu.dot_dimension_numbers<[1], [0], [0], [1], [0, 0, 1, 1], [], []>} : vector<128x8xbf16>, vector<8x8xbf16>, vector<128x8xf32> -> vector<128x8xf32>
    %45 = arith.addf %39, %44 : vector<128x8xf32>
    %46 = vector.extract_strided_slice %1 {offsets = [2, 1, 0], sizes = [8, 16, 8], strides = [1, 1, 1]} : vector<10x18x8xbf16> to vector<8x16x8xbf16>
    %47 = vector.shape_cast %46 : vector<8x16x8xbf16> to vector<128x8xbf16>
    %48 = vector.extract_strided_slice %2 {offsets = [7, 0, 0], sizes = [1, 8, 8], strides = [1, 1, 1]} : vector<9x8x8xbf16> to vector<1x8x8xbf16>
    %49 = vector.shape_cast %48 : vector<1x8x8xbf16> to vector<8x8xbf16>
    %cst_14 = arith.constant dense<0.000000e+00> : vector<128x8xf32>
    %50 = tpu.matmul %47, %49, %cst_14 {dimension_numbers = #tpu.dot_dimension_numbers<[1], [0], [0], [1], [0, 0, 1, 1], [], []>} : vector<128x8xbf16>, vector<8x8xbf16>, vector<128x8xf32> -> vector<128x8xf32>
    %51 = arith.addf %45, %50 : vector<128x8xf32>
    %52 = vector.extract_strided_slice %1 {offsets = [2, 2, 0], sizes = [8, 16, 8], strides = [1, 1, 1]} : vector<10x18x8xbf16> to vector<8x16x8xbf16>
    %53 = vector.shape_cast %52 : vector<8x16x8xbf16> to vector<128x8xbf16>
    %54 = vector.extract_strided_slice %2 {offsets = [8, 0, 0], sizes = [1, 8, 8], strides = [1, 1, 1]} : vector<9x8x8xbf16> to vector<1x8x8xbf16>
    %55 = vector.shape_cast %54 : vector<1x8x8xbf16> to vector<8x8xbf16>
    %cst_15 = arith.constant dense<0.000000e+00> : vector<128x8xf32>
    %56 = tpu.matmul %53, %55, %cst_15 {dimension_numbers = #tpu.dot_dimension_numbers<[1], [0], [0], [1], [0, 0, 1, 1], [], []>} : vector<128x8xbf16>, vector<8x8xbf16>, vector<128x8xf32> -> vector<128x8xf32>
    %57 = arith.addf %51, %56 : vector<128x8xf32>
    %c0_16 = arith.constant 0 : index
    %c0_17 = arith.constant 0 : index
    %58 = vector.load %arg4[%c0_16, %c0_17] : memref<1x8xf32, #tpu.memory_space<vmem>>, vector<1x8xf32>
    %59 = vector.broadcast %58 : vector<1x8xf32> to vector<128x8xf32>
    %60 = arith.mulf %57, %59 : vector<128x8xf32>
    %c0_18 = arith.constant 0 : index
    %c0_19 = arith.constant 0 : index
    %61 = vector.load %arg5[%c0_18, %c0_19] : memref<1x8xf32, #tpu.memory_space<vmem>>, vector<1x8xf32>
    %62 = vector.broadcast %61 : vector<1x8xf32> to vector<128x8xf32>
    %63 = arith.addf %60, %62 : vector<128x8xf32>
    %cst_20 = arith.constant 2.000000e-01 : f32
    %64 = vector.broadcast %cst_20 : f32 to vector<128x8xf32>
    %65 = arith.mulf %64, %63 : vector<128x8xf32>
    %66 = arith.maximumf %63, %65 : vector<128x8xf32>
    %67 = vector.shape_cast %66 : vector<128x8xf32> to vector<8x16x8xf32>
    %68 = arith.truncf %67 : vector<8x16x8xf32> to vector<8x16x8xbf16>
    %c0_21 = arith.constant 0 : index
    %c0_22 = arith.constant 0 : index
    %c0_23 = arith.constant 0 : index
    %c0_24 = arith.constant 0 : index
    %69 = vector.load %arg6[%c0_21, %c0_22, %c0_23, %c0_24] : memref<1x8x16x8xbf16, #tpu.memory_space<vmem>>, vector<1x8x16x8xbf16>
    %70 = vector.shape_cast %69 : vector<1x8x16x8xbf16> to vector<8x16x8xbf16>
    %71 = vector.shape_cast %68 : vector<8x16x8xbf16> to vector<1x8x16x8xbf16>
    tpu.vector_store %arg6[%c0_21, %c0_22, %c0_23, %c0_24], %71 {strides = array<i32>} : memref<1x8x16x8xbf16, #tpu.memory_space<vmem>>, vector<1x8x16x8xbf16>,
    return
  }
  func.func @transform_0(%arg0: i32, %arg1: i32) -> (i32, i32, i32, i32, i32) {
    %c0_i32 = arith.constant 0 : i32
    %c0_i32_0 = arith.constant 0 : i32
    %c0_i32_1 = arith.constant 0 : i32
    %c0_i32_2 = arith.constant 0 : i32
    return %arg0, %arg1, %c0_i32, %c0_i32_0, %c0_i32_1 : i32, i32, i32, i32, i32
  }
  func.func @transform_1(%arg0: i32, %arg1: i32) -> (i32, i32, i32) {
    %c0_i32 = arith.constant 0 : i32
    %c0_i32_0 = arith.constant 0 : i32
    %c0_i32_1 = arith.constant 0 : i32
    %c0_i32_2 = arith.constant 0 : i32
    return %c0_i32, %c0_i32_0, %c0_i32_1 : i32, i32, i32
  }
  func.func @transform_2(%arg0: i32, %arg1: i32) -> (i32, i32) {
    %c0_i32 = arith.constant 0 : i32
    %c0_i32_0 = arith.constant 0 : i32
    %c0_i32_1 = arith.constant 0 : i32
    return %c0_i32, %c0_i32_0 : i32, i32
  }
  func.func @transform_3(%arg0: i32, %arg1: i32) -> (i32, i32) {
    %c0_i32 = arith.constant 0 : i32
    %c0_i32_0 = arith.constant 0 : i32
    %c0_i32_1 = arith.constant 0 : i32
    return %c0_i32, %c0_i32_0 : i32, i32
  }
  func.func @transform_4(%arg0: i32, %arg1: i32) -> (i32, i32, i32, i32) {
    %c0_i32 = arith.constant 0 : i32
    %c0_i32_0 = arith.constant 0 : i32
    %c0_i32_1 = arith.constant 0 : i32
    return %arg0, %arg1, %c0_i32, %c0_i32_0 : i32, i32, i32, i32
  }
}

</mosaic_0001>

<llo_original>
// kernel: conv_block_forward.3
$region0: #{conv_block_forward.3}
  #allocation0 [shape = 'u32[]', space=smem, size = 0x4, offset = 0x4, fixed_abs, tag = 'smem constant byte address 0x4 - core index']
  #allocation1 [shape = 'u32[144,128]{1,0:T(1,128)}', space=vmem, size = 0x12000, scoped, tag = 'internal scratch']
  %s0 = inlined_call_operand.vmem [shape: bf16[2,2,10,18,8], index: 0, kind: input, shape index: {}]
  %s1 = inlined_call_operand.vmem [shape: bf16[9,8,8], index: 1, kind: input, shape index: {}]
  %s2 = inlined_call_operand.vmem [shape: f32[1,8], index: 2, kind: input, shape index: {}]
  %s3 = inlined_call_operand.vmem [shape: f32[1,8], index: 3, kind: input, shape index: {}]
  %s4 = inlined_call_operand.vmem [shape: bf16[2,16,16,8], index: 4, kind: output, shape index: {}]
  %s5 = sld [smem:[#allocation0]]
  $region49: #{conv_block_forward.3} parent=0
    _
  %s7 = ssub.s32 1, %s5
  %s8 = scalar_select 0, %s7, %s5
  loop: start=0, step=1, limit=6
  $region2: #{conv_block_forward.3} parent=0 // loop_pre_header
    _
  $region3: #{conv_block_forward.3} parent=0 // loop_header
    %s10 = sphi 0, %s14
    %p11 = scmp.ge.s32.totalorder %s10, 6
    %s17 = sphi 0, %s29
    %s18 = sphi 0, %s25
    %s19 = sphi 0, %s17
    %s20 = sphi 0, %s18
    %s21 = sphi 0, %s19
    %s22 = sphi 0, %s20
    %s34 = sphi 0, %s36
    %s37 = sphi 0, %s34
    %s38 = sphi 0, %s37
    %s54 = sphi 0, %s38
    %s58 = sphi 0, %s58
    %s60 = sphi 0, %s58
    %s61 = sphi 0, %s60
    %s75 = sphi 0, %s61
    %s79 = sphi 0, %s79
    %s81 = sphi 0, %s79
    %s82 = sphi 0, %s81
    %s96 = sphi 0, %s82
    %s100 = sphi 0, %s100
    %s102 = sphi 0, %s100
    %s103 = sphi 0, %s102
    %s117 = sphi 0, %s103
    %s125 = sphi 0, %s127
    %s128 = sphi 0, %s125
    %s129 = sphi 0, %s128
    %s145 = sphi 0, %s129
  $region4: #{conv_block_forward.3} parent=0 // loop_header_branch
    %13 = sbr.rel (%p11) target = $region8
  $region5: #{conv_block_forward.3} parent=0 // loop_body
    %s15 = ssub.s32 %s10, 1
    %s16 = ssub.s32 %s10, 2
    %s23 = sadd.s32 1, %s18
    %p24 = scmp.ge.s32.totalorder %s23, 2
    %s25 = scalar_select %p24, 0, %s23
    %s26 = sadd.s32 1, %s17
    %s27 = scalar_select %p24, %s26, %s17
    %p28 = scmp.ge.s32.totalorder %s27, 2
    %s29 = scalar_select %p28, 0, %s27
    %s30 = ssub.s32 %s17, %s29
    %s31 = ssub.s32 %s18, %s25
    %s32 = sor.u32 %s30, %s31
    %p33 = scmp.eq.s32.totalorder %s32, 0
    %s35 = sadd.s32 %s34, 1
    %s36 = scalar_select %p33, %s34, %s35
    %p39 = pneg %p33
    %p40 = scmp.eq.s32.totalorder %s10, 3
    %p41 = por %p39, %p40
    %p42 = scmp.ne.s32.totalorder %s34, %s37
    %p43 = scmp.eq.s32.totalorder %s10, 0
    %p44 = por %p42, %p43
    %p45 = scmp.ne.s32.totalorder %s34, %s37
    %p46 = scmp.eq.s32.totalorder %s15, 3
    %p47 = por %p45, %p46
    %p48 = scmp.ne.s32.totalorder %s37, %s38
    %p49 = scmp.eq.s32.totalorder %s15, 0
    %p50 = por %p48, %p49
    %p51 = scmp.ne.s32.totalorder %s37, %s38
    %p52 = scmp.eq.s32.totalorder %s16, 3
    %p53 = por %p51, %p52
    %p55 = scmp.ne.s32.totalorder %s38, %s54
    %p56 = scmp.eq.s32.totalorder %s16, 0
    %p57 = por %p55, %p56
    %s59 = sadd.s32 %s58, 1
    %p62 = scmp.eq.s32.totalorder %s10, 3
    %p63 = scmp.ne.s32.totalorder %s58, %s60
    %p64 = scmp.eq.s32.totalorder %s10, 0
    %p65 = por %p63, %p64
    %p66 = scmp.ne.s32.totalorder %s58, %s60
    %p67 = scmp.eq.s32.totalorder %s15, 3
    %p68 = por %p66, %p67
    %p69 = scmp.ne.s32.totalorder %s60, %s61
    %p70 = scmp.eq.s32.totalorder %s15, 0
    %p71 = por %p69, %p70
    %p72 = scmp.ne.s32.totalorder %s60, %s61
    %p73 = scmp.eq.s32.totalorder %s16, 3
    %p74 = por %p72, %p73
    %p76 = scmp.ne.s32.totalorder %s61, %s75
    %p77 = scmp.eq.s32.totalorder %s16, 0
    %p78 = por %p76, %p77
    %s80 = sadd.s32 %s79, 1
    %p83 = scmp.eq.s32.totalorder %s10, 3
    %p84 = scmp.ne.s32.totalorder %s79, %s81
    %p85 = scmp.eq.s32.totalorder %s10, 0
    %p86 = por %p84, %p85
    %p87 = scmp.ne.s32.totalorder %s79, %s81
    %p88 = scmp.eq.s32.totalorder %s15, 3
    %p89 = por %p87, %p88
    %p90 = scmp.ne.s32.totalorder %s81, %s82
    %p91 = scmp.eq.s32.totalorder %s15, 0
    %p92 = por %p90, %p91
    %p93 = scmp.ne.s32.totalorder %s81, %s82
    %p94 = scmp.eq.s32.totalorder %s16, 3
    %p95 = por %p93, %p94
    %p97 = scmp.ne.s32.totalorder %s82, %s96
    %p98 = scmp.eq.s32.totalorder %s16, 0
    %p99 = por %p97, %p98
    %s101 = sadd.s32 %s100, 1
    %p104 = scmp.eq.s32.totalorder %s10, 3
    %p105 = scmp.ne.s32.totalorder %s100, %s102
    %p106 = scmp.eq.s32.totalorder %s10, 0
    %p107 = por %p105, %p106
    %p108 = scmp.ne.s32.totalorder %s100, %s102
    %p109 = scmp.eq.s32.totalorder %s15, 3
    %p110 = por %p108, %p109
    %p111 = scmp.ne.s32.totalorder %s102, %s103
    %p112 = scmp.eq.s32.totalorder %s15, 0
    %p113 = por %p111, %p112
    %p114 = scmp.ne.s32.totalorder %s102, %s103
    %p115 = scmp.eq.s32.totalorder %s16, 3
    %p116 = por %p114, %p115
    %p118 = scmp.ne.s32.totalorder %s103, %s117
    %p119 = scmp.eq.s32.totalorder %s16, 0
    %p120 = por %p118, %p119
    %s121 = ssub.s32 %s17, %s29
    %s122 = ssub.s32 %s18, %s25
    %s123 = sor.u32 %s121, %s122
    %p124 = scmp.eq.s32.totalorder %s123, 0
    %s126 = sadd.s32 %s125, 1
    %s127 = scalar_select %p124, %s125, %s126
    %p130 = pneg %p124
    %p131 = scmp.eq.s32.totalorder %s10, 3
    %p132 = por %p130, %p131
    %p133 = scmp.ne.s32.totalorder %s125, %s128
    %p134 = scmp.eq.s32.totalorder %s10, 0
    %p135 = por %p133, %p134
    %p136 = scmp.ne.s32.totalorder %s125, %s128
    %p137 = scmp.eq.s32.totalorder %s15, 3
    %p138 = por %p136, %p137
    %p139 = scmp.ne.s32.totalorder %s128, %s129
    %p140 = scmp.eq.s32.totalorder %s15, 0
    %p141 = por %p139, %p140
    %p142 = scmp.ne.s32.totalorder %s128, %s129
    %p143 = scmp.eq.s32.totalorder %s16, 3
    %p144 = por %p142, %p143
    %p146 = scmp.ne.s32.totalorder %s129, %s145
    %p147 = scmp.eq.s32.totalorder %s16, 0
    %p148 = por %p146, %p147
    %p149 = scmp.le.s32.totalorder 1, %s10
    %p150 = scmp.lt.s32.totalorder %s10, 5
    %p151 = pnand %p149, %p150
    %p152 = pneg %p151
    // Predicated region
    $region9: #{conv_block_forward.3} parent=5 // pred_check
      _
    $region10: #{conv_block_forward.3} parent=5 // pred_check_branch
      %154 = sbr.rel (%p151) target = $region12
    $region11: #{conv_block_forward.3} parent=5 // pred_region
      %s155 = ssub.s32 %s10, 1
      // Predicated region
      $region13: #{conv_block_forward.3} parent=11 // pred_check
        %p156 = pneg %p71
      $region14: #{conv_block_forward.3} parent=11 // pred_check_branch
        %158 = sbr.rel (%p156) target = $region16
      $region15: #{conv_block_forward.3} parent=11 // pred_region
        _
      $region16: #{conv_block_forward.3} parent=11 // pred_fallthru
        _
      // Predicated region
      $region17: #{conv_block_forward.3} parent=11 // pred_check
        %p159 = pneg %p92
      $region18: #{conv_block_forward.3} parent=11 // pred_check_branch
        %161 = sbr.rel (%p159) target = $region20
      $region19: #{conv_block_forward.3} parent=11 // pred_region
        _
      $region20: #{conv_block_forward.3} parent=11 // pred_fallthru
        _
      // Predicated region
      $region21: #{conv_block_forward.3} parent=11 // pred_check
        %p162 = pneg %p113
      $region22: #{conv_block_forward.3} parent=11 // pred_check_branch
        %164 = sbr.rel (%p162) target = $region24
      $region23: #{conv_block_forward.3} parent=11 // pred_region
        _
      $region24: #{conv_block_forward.3} parent=11 // pred_fallthru
        _
    $region12: #{conv_block_forward.3} parent=5 // pred_fallthru
      _
    %p165 = scmp.lt.s32.totalorder %s10, 4
    // Predicated region
    $region25: #{conv_block_forward.3} parent=5 // pred_check
      %p166 = pneg %p165
    $region26: #{conv_block_forward.3} parent=5 // pred_check_branch
      %168 = sbr.rel (%p166) target = $region28
    $region27: #{conv_block_forward.3} parent=5 // pred_region
      // Predicated region
      $region29: #{conv_block_forward.3} parent=27 // pred_check
        %p169 = pneg %p44
      $region30: #{conv_block_forward.3} parent=27 // pred_check_branch
        %171 = sbr.rel (%p169) target = $region32
      $region31: #{conv_block_forward.3} parent=27 // pred_region
        %p172 = scmp.lt.s32.totalorder %s17, 1
        %s173 = scalar_select %p172, %s17, 1
        %p174 = scmp.lt.s32.totalorder %s18, 1
        %s175 = scalar_select %p174, %s18, 1
        %s176 = smul.addr %s175, 30
        %s177 = smul.addr %s173, 60
        %s178 = sadd.s32 %s176, %s177
        %s179 = smul.addr %s178, 4
        %s180 = scalar_lea.vmem %s0, %s179
      $region32: #{conv_block_forward.3} parent=27 // pred_fallthru
        _
    $region28: #{conv_block_forward.3} parent=5 // pred_fallthru
      _
    %p181 = scmp.le.s32.totalorder 1, %s10
    %p182 = scmp.lt.s32.totalorder %s10, 5
    %p183 = pnand %p181, %p182
    %p184 = pneg %p183
    // Predicated region
    $region33: #{conv_block_forward.3} parent=5 // pred_check
      _
    $region34: #{conv_block_forward.3} parent=5 // pred_check_branch
      %186 = sbr.rel (%p183) target = $region36
    $region35: #{conv_block_forward.3} parent=5 // pred_region
      %s187 = ssub.s32 %s10, 1
      %p188 = scmp.lt.s32.totalorder %s19, 1
      %s189 = scalar_select %p188, %s19, 1
      %p190 = scmp.lt.s32.totalorder %s20, 1
      %s191 = scalar_select %p190, %s20, 1
      %s192 = smul.addr %s191, 30
      %s193 = smul.addr %s189, 60
      %s194 = sadd.s32 %s192, %s193
      %s195 = smul.addr %s194, 4
      %s196 = scalar_lea.vmem %s0, %s195
      %p197 = pneg %p50
      %p198 = pneg %p47
      %p199 = pneg %p71
      %p200 = pneg %p68
      %p201 = pneg %p92
      %p202 = pneg %p89
      %p203 = pneg %p113
      %p204 = pneg %p110
      %p205 = pneg %p141
      %p206 = pneg %p138
      %s207 = smul.u32 8, %s20
      %p208 = scmp.lt.s32.totalorder %s19, 1
      %s209 = scalar_select %p208, %s19, 1
      %p210 = scmp.lt.s32.totalorder %s207, 15
      %s211 = scalar_select %p210, %s207, 15
      %s212 = smul.addr %s211, 2
      %s213 = smul.addr %s209, 32
      %s214 = sadd.s32 %s212, %s213
      %s215 = smul.addr %s214, 4
      %s216 = scalar_lea.vmem %s4, %s215
      %p217 = scmp.lt.s32.totalorder %s19, 1
      %s218 = scalar_select %p217, %s19, 1
      %p219 = scmp.lt.s32.totalorder %s20, 1
      %s220 = scalar_select %p219, %s20, 1
      %s221 = smul.addr %s220, 30
      %s222 = smul.addr %s218, 60
      %s223 = sadd.s32 %s221, %s222
      %s224 = smul.addr %s223, 4
      %s225 = scalar_lea.vmem %s0, %s224
      %s226 = smul.u32 8, %s20
      %p227 = scmp.lt.s32.totalorder %s19, 1
      %s228 = scalar_select %p227, %s19, 1
      %p229 = scmp.lt.s32.totalorder %s226, 15
      %s230 = scalar_select %p229, %s226, 15
      %s231 = smul.addr %s230, 2
      %s232 = smul.addr %s228, 32
      %s233 = sadd.s32 %s231, %s232
      %s234 = smul.addr %s233, 4
      %s235 = scalar_lea.vmem %s4, %s234
      %s236 = smul.u32 8, %s20
      %v238 = vld [vmem:[%s225] sm:$0xf]
      %v239 = vld [vmem:[%s225 + $0x4] sm:$0xf]
      %v240 = vld [vmem:[%s225 + $0x8] sm:$0x1]
      %v241 = vld [vmem:[%s225 + $0xc] sm:$0xf]
      %v242 = vld [vmem:[%s225 + $0x10] sm:$0xf]
      %v243 = vld [vmem:[%s225 + $0x14] sm:$0x1]
      %v244 = vld [vmem:[%s225 + $0x18] sm:$0xf]
      %v245 = vld [vmem:[%s225 + $0x1c] sm:$0xf]
      %v246 = vld [vmem:[%s225 + $0x20] sm:$0x1]
      %v247 = vld [vmem:[%s225 + $0x24] sm:$0xf]
      %v248 = vld [vmem:[%s225 + $0x28] sm:$0xf]
      %v249 = vld [vmem:[%s225 + $0x2c] sm:$0x1]
      %v250 = vld [vmem:[%s225 + $0x30] sm:$0xf]
      %v251 = vld [vmem:[%s225 + $0x34] sm:$0xf]
      %v252 = vld [vmem:[%s225 + $0x38] sm:$0x1]
      %v253 = vld [vmem:[%s225 + $0x3c] sm:$0xf]
      %v254 = vld [vmem:[%s225 + $0x40] sm:$0xf]
      %v255 = vld [vmem:[%s225 + $0x44] sm:$0x1]
      %v256 = vld [vmem:[%s225 + $0x48] sm:$0xf]
      %v257 = vld [vmem:[%s225 + $0x4c] sm:$0xf]
      %v258 = vld [vmem:[%s225 + $0x50] sm:$0x1]
      %v259 = vld [vmem:[%s225 + $0x54] sm:$0xf]
      %v260 = vld [vmem:[%s225 + $0x58] sm:$0xf]
      %v261 = vld [vmem:[%s225 + $0x5c] sm:$0x1]
      %v262 = vld [vmem:[%s225 + $0x60] sm:$0xf]
      %v263 = vld [vmem:[%s225 + $0x64] sm:$0xf]
      %v264 = vld [vmem:[%s225 + $0x68] sm:$0x1]
      %v265 = vld [vmem:[%s225 + $0x6c] sm:$0xf]
      %v266 = vld [vmem:[%s225 + $0x70] sm:$0xf]
      %v267 = vld [vmem:[%s225 + $0x74] sm:$0x1]
      %v268 = vld [vmem:[%s1] sm:$0xf]
      %v269 = vld [vmem:[%s1 + $0x4] sm:$0xf]
      %v270 = vld [vmem:[%s1 + $0x8] sm:$0xf]
      %v271 = vld [vmem:[%s1 + $0xc] sm:$0xf]
      %v272 = vld [vmem:[%s1 + $0x10] sm:$0xf]
      %v273 = vld [vmem:[%s1 + $0x14] sm:$0xf]
      %v274 = vld [vmem:[%s1 + $0x18] sm:$0xf]
      %v275 = vld [vmem:[%s1 + $0x1c] sm:$0xf]
      %v276 = vld [vmem:[%s1 + $0x20] sm:$0xf]
      %vm277 = vsmask.f32 3328
      %vm278 = vsmask.f32 7440
      %vm279 = vmor %vm277, %vm278
      %v281 = vshrl.u32 %v238, 16
      %v283 = vrot.slane %v281, 4
      %v284 = vshll.u32 %v238, 16
      %v286 = vrot.slane %v284, 5
      %v287 = vor.u32 %v283, %v286
      %v288 = vrot.slane %v287, 4
      %v290 = vshll.u32 %v239, 16
      %v292 = vrot.slane %v290, 5
      %v293 = vsel %vm279, %v288, %v292
      %v294 = vshrl.u32 %v239, 16
      %v296 = vrot.slane %v294, 4
      %v297 = vor.u32 %v296, %v292
      %v298 = vrot.slane %v297, 4
      %v300 = vshll.u32 %v240, 16
      %v302 = vrot.slane %v300, 5
      %v303 = vsel %vm279, %v298, %v302
      %v305 = vshrl.u32 %v241, 16
      %v307 = vrot.slane %v305, 4
      %v308 = vshll.u32 %v241, 16
      %v310 = vrot.slane %v308, 5
      %v311 = vor.u32 %v307, %v310
      %v312 = vrot.slane %v311, 4
      %v314 = vshll.u32 %v242, 16
      %v316 = vrot.slane %v314, 5
      %v317 = vsel %vm279, %v312, %v316
      %v318 = vshrl.u32 %v242, 16
      %v320 = vrot.slane %v318, 4
      %v321 = vor.u32 %v320, %v316
      %v322 = vrot.slane %v321, 4
      %v324 = vshll.u32 %v243, 16
      %v326 = vrot.slane %v324, 5
      %v327 = vsel %vm279, %v322, %v326
      %v329 = vshrl.u32 %v244, 16
      %v331 = vrot.slane %v329, 4
      %v332 = vshll.u32 %v244, 16
      %v334 = vrot.slane %v332, 5
      %v335 = vor.u32 %v331, %v334
      %v336 = vrot.slane %v335, 4
      %v338 = vshll.u32 %v245, 16
      %v340 = vrot.slane %v338, 5
      %v341 = vsel %vm279, %v336, %v340
      %v342 = vshrl.u32 %v245, 16
      %v344 = vrot.slane %v342, 4
      %v345 = vor.u32 %v344, %v340
      %v346 = vrot.slane %v345, 4
      %v348 = vshll.u32 %v246, 16
      %v350 = vrot.slane %v348, 5
      %v351 = vsel %vm279, %v346, %v350
      %v353 = vshrl.u32 %v247, 16
      %v355 = vrot.slane %v353, 4
      %v356 = vshll.u32 %v247, 16
      %v358 = vrot.slane %v356, 5
      %v359 = vor.u32 %v355, %v358
      %v360 = vrot.slane %v359, 4
      %v362 = vshll.u32 %v248, 16
      %v364 = vrot.slane %v362, 5
      %v365 = vsel %vm279, %v360, %v364
      %v366 = vshrl.u32 %v248, 16
      %v368 = vrot.slane %v366, 4
      %v369 = vor.u32 %v368, %v364
      %v370 = vrot.slane %v369, 4
      %v372 = vshll.u32 %v249, 16
      %v374 = vrot.slane %v372, 5
      %v375 = vsel %vm279, %v370, %v374
      %v377 = vshrl.u32 %v250, 16
      %v379 = vrot.slane %v377, 4
      %v380 = vshll.u32 %v250, 16
      %v382 = vrot.slane %v380, 5
      %v383 = vor.u32 %v379, %v382
      %v384 = vrot.slane %v383, 4
      %v386 = vshll.u32 %v251, 16
      %v388 = vrot.slane %v386, 5
      %v389 = vsel %vm279, %v384, %v388
      %v390 = vshrl.u32 %v251, 16
      %v392 = vrot.slane %v390, 4
      %v393 = vor.u32 %v392, %v388
      %v394 = vrot.slane %v393, 4
      %v396 = vshll.u32 %v252, 16
      %v398 = vrot.slane %v396, 5
      %v399 = vsel %vm279, %v394, %v398
      %v401 = vshrl.u32 %v253, 16
      %v403 = vrot.slane %v401, 4
      %v404 = vshll.u32 %v253, 16
      %v406 = vrot.slane %v404, 5
      %v407 = vor.u32 %v403, %v406
      %v408 = vrot.slane %v407, 4
      %v410 = vshll.u32 %v254, 16
      %v412 = vrot.slane %v410, 5
      %v413 = vsel %vm279, %v408, %v412
      %v414 = vshrl.u32 %v254, 16
      %v416 = vrot.slane %v414, 4
      %v417 = vor.u32 %v416, %v412
      %v418 = vrot.slane %v417, 4
      %v420 = vshll.u32 %v255, 16
      %v422 = vrot.slane %v420, 5
      %v423 = vsel %vm279, %v418, %v422
      %v425 = vshrl.u32 %v256, 16
      %v427 = vrot.slane %v425, 4
      %v428 = vshll.u32 %v256, 16
      %v430 = vrot.slane %v428, 5
      %v431 = vor.u32 %v427, %v430
      %v432 = vrot.slane %v431, 4
      %v434 = vshll.u32 %v257, 16
      %v436 = vrot.slane %v434, 5
      %v437 = vsel %vm279, %v432, %v436
      %v438 = vshrl.u32 %v257, 16
      %v440 = vrot.slane %v438, 4
      %v441 = vor.u32 %v440, %v436
      %v442 = vrot.slane %v441, 4
      %v444 = vshll.u32 %v258, 16
      %v446 = vrot.slane %v444, 5
      %v447 = vsel %vm279, %v442, %v446
      %v449 = vshrl.u32 %v259, 16
      %v451 = vrot.slane %v449, 4
      %v452 = vshll.u32 %v259, 16
      %v454 = vrot.slane %v452, 5
      %v455 = vor.u32 %v451, %v454
      %v456 = vrot.slane %v455, 4
      %v458 = vshll.u32 %v260, 16
      %v460 = vrot.slane %v458, 5
      %v461 = vsel %vm279, %v456, %v460
      %v462 = vshrl.u32 %v260, 16
      %v464 = vrot.slane %v462, 4
      %v465 = vor.u32 %v464, %v460
      %v466 = vrot.slane %v465, 4
      %v468 = vshll.u32 %v261, 16
      %v470 = vrot.slane %v468, 5
      %v471 = vsel %vm279, %v466, %v470
      %v472 = vunpack.c.l.b16 %v293
      %v473 = vunpack.c.l.b16 %v303
      %v474 = vunpack.c.l.b16 %v317
      %v475 = vunpack.c.l.b16 %v327
      %v476 = vunpack.c.l.b16 %v341
      %v477 = vunpack.c.l.b16 %v351
      %v478 = vunpack.c.l.b16 %v365
      %v479 = vunpack.c.l.b16 %v375
      %v480 = vunpack.c.l.b16 %v389
      %v481 = vunpack.c.l.b16 %v399
      %v482 = vunpack.c.l.b16 %v413
      %v483 = vunpack.c.l.b16 %v423
      %v484 = vunpack.c.l.b16 %v437
      %v485 = vunpack.c.l.b16 %v447
      %v486 = vunpack.c.l.b16 %v461
      %v487 = vunpack.c.l.b16 %v471
      %v488 = vpack.c.b16 %v473, %v472
      %v489 = vpack.c.b16 %v475, %v474
      %v490 = vpack.c.b16 %v477, %v476
      %v491 = vpack.c.b16 %v479, %v478
      %v492 = vpack.c.b16 %v481, %v480
      %v493 = vpack.c.b16 %v483, %v482
      %v494 = vpack.c.b16 %v485, %v484
      %v495 = vpack.c.b16 %v487, %v486
      %vm496 = vcmask 64512
      %v498 = vsel %vm496, %v488, 0
      %v501 = vsel %vm496, %v489, 0
      %v504 = vsel %vm496, %v490, 0
      %v507 = vsel %vm496, %v491, 0
      %v510 = vsel %vm496, %v492, 0
      %v513 = vsel %vm496, %v493, 0
      %v516 = vsel %vm496, %v494, 0
      %v519 = vsel %vm496, %v495, 0
      %vm521 = vcmask 1043456
      %v523 = vsel %vm521, %v269, 0
      %525 = vmatprep.subr.bf16.mxu0 0
      %526 = vmatpush1.bf16.msra.mxu0 0
      %527 = vmatprep.subr.bf16.mxu0 0
      %528 = vmatpush1.bf16.msra.mxu0 0
      %529 = vmatprep.subr.bf16.mxu0 0
      %530 = vmatpush1.bf16.msra.mxu0 0
      %531 = vmatprep.subr.bf16.mxu0 0
      %532 = vmatpush1.bf16.msra.mxu0 0
      %533 = vmatprep.subr.bf16.mxu0 0
      %534 = vmatpush1.bf16.msra.mxu0 0
      %535 = vmatprep.subr.bf16.mxu0 0
      %536 = vmatpush1.bf16.msra.mxu0 0
      %537 = vmatprep.subr.bf16.mxu0 0
      %538 = vmatpush1.bf16.msra.mxu0 0
      %539 = vmatprep.subr.bf16.mxu0 0
      %540 = vmatpush1.bf16.msra.mxu0 %v523
      %541 = vmatprep.subr.bf16.mxu0 0
      %542 = vmatpush2.bf16.msra.mxu0 0
      %543 = vmatprep.subr.bf16.mxu0 0
      %544 = vmatpush2.bf16.msra.mxu0 0
      %545 = vmatprep.subr.bf16.mxu0 0
      %546 = vmatpush2.bf16.msra.mxu0 0
      %547 = vmatprep.subr.bf16.mxu0 0
      %548 = vmatpush2.bf16.msra.mxu0 0
      %549 = vmatprep.subr.bf16.mxu0 0
      %550 = vmatpush2.bf16.msra.mxu0 0
      %551 = vmatprep.subr.bf16.mxu0 0
      %552 = vmatpush2.bf16.msra.mxu0 0
      %553 = vmatprep.subr.bf16.mxu0 0
      %554 = vmatpush2.bf16.msra.mxu0 0
      %555 = vmatprep.subr.bf16.mxu0 0
      %556 = vmatpush2.bf16.msra.mxu0 0
      %557 = vmatprep.mubr.bf16.mxu0 0
      %558 = vmatmul.mubr.bf16.gmra.mxu0 %v498
      %v559 = vpop.f32.mrf.mxu0
      %v560 = vadd.f32 0.0, %v559
      %v561 = vpop.f32.mrf.mxu0
      %v562 = vpop.f32.mrf.mxu0
      %v563 = vadd.f32 0.0, %v562
      %v564 = vpop.f32.mrf.mxu0
      %565 = vmatprep.mubr.bf16.mxu0 0
      %566 = vmatmul.mubr.bf16.gmra.mxu0 %v501
      %v567 = vpop.f32.mrf.mxu0
      %v568 = vadd.f32 0.0, %v567
      %v569 = vpop.f32.mrf.mxu0
      %v570 = vpop.f32.mrf.mxu0
      %v571 = vadd.f32 0.0, %v570
      %v572 = vpop.f32.mrf.mxu0
      %573 = vmatprep.mubr.bf16.mxu0 0
      %574 = vmatmul.mubr.bf16.gmra.mxu0 %v504
      %v575 = vpop.f32.mrf.mxu0
      %v576 = vadd.f32 0.0, %v575
      %v577 = vpop.f32.mrf.mxu0
      %v578 = vpop.f32.mrf.mxu0
      %v579 = vadd.f32 0.0, %v578
      %v580 = vpop.f32.mrf.mxu0
      %581 = vmatprep.mubr.bf16.mxu0 0
      %582 = vmatmul.mubr.bf16.gmra.mxu0 %v507
      %v583 = vpop.f32.mrf.mxu0
      %v584 = vadd.f32 0.0, %v583
      %v585 = vpop.f32.mrf.mxu0
      %v586 = vpop.f32.mrf.mxu0
      %v587 = vadd.f32 0.0, %v586
      %v588 = vpop.f32.mrf.mxu0
      %589 = vmatprep.mubr.bf16.mxu0 0
      %590 = vmatmul.mubr.bf16.gmra.mxu0 %v510
      %v591 = vpop.f32.mrf.mxu0
      %v592 = vadd.f32 0.0, %v591
      %v593 = vpop.f32.mrf.mxu0
      %v594 = vpop.f32.mrf.mxu0
      %v595 = vadd.f32 0.0, %v594
      %v596 = vpop.f32.mrf.mxu0
      %597 = vmatprep.mubr.bf16.mxu0 0
      %598 = vmatmul.mubr.bf16.gmra.mxu0 %v513
      %v599 = vpop.f32.mrf.mxu0
      %v600 = vadd.f32 0.0, %v599
      %v601 = vpop.f32.mrf.mxu0
      %v602 = vpop.f32.mrf.mxu0
      %v603 = vadd.f32 0.0, %v602
      %v604 = vpop.f32.mrf.mxu0
      %605 = vmatprep.mubr.bf16.mxu0 0
      %606 = vmatmul.mubr.bf16.gmra.mxu0 %v516
      %v607 = vpop.f32.mrf.mxu0
      %v608 = vadd.f32 0.0, %v607
      %v609 = vpop.f32.mrf.mxu0
      %v610 = vpop.f32.mrf.mxu0
      %v611 = vadd.f32 0.0, %v610
      %v612 = vpop.f32.mrf.mxu0
      %613 = vmatprep.mubr.bf16.mxu0 0
      %614 = vmatmul.mubr.bf16.gmra.mxu0 %v519
      %v615 = vpop.f32.mrf.mxu0
      %v616 = vadd.f32 0.0, %v615
      %v617 = vpop.f32.mrf.mxu0
      %v618 = vpop.f32.mrf.mxu0
      %v619 = vadd.f32 0.0, %v618
      %v620 = vpop.f32.mrf.mxu0
      %621 = vdwg.mxu0
      %v638 = vunpack.c.l.b16 %v238
      %v639 = vunpack.c.l.b16 %v239
      %v640 = vunpack.c.l.b16 %v241
      %v641 = vunpack.c.l.b16 %v242
      %v642 = vunpack.c.l.b16 %v244
      %v643 = vunpack.c.l.b16 %v245
      %v644 = vunpack.c.l.b16 %v247
      %v645 = vunpack.c.l.b16 %v248
      %v646 = vunpack.c.l.b16 %v250
      %v647 = vunpack.c.l.b16 %v251
      %v648 = vunpack.c.l.b16 %v253
      %v649 = vunpack.c.l.b16 %v254
      %v650 = vunpack.c.l.b16 %v256
      %v651 = vunpack.c.l.b16 %v257
      %v652 = vunpack.c.l.b16 %v259
      %v653 = vunpack.c.l.b16 %v260
      %v654 = vpack.c.b16 %v639, %v638
      %v655 = vpack.c.b16 %v641, %v640
      %v656 = vpack.c.b16 %v643, %v642
      %v657 = vpack.c.b16 %v645, %v644
      %v658 = vpack.c.b16 %v647, %v646
      %v659 = vpack.c.b16 %v649, %v648
      %v660 = vpack.c.b16 %v651, %v650
      %v661 = vpack.c.b16 %v653, %v652
      %v663 = vsel %vm496, %v654, 0
      %v666 = vsel %vm496, %v655, 0
      %v669 = vsel %vm496, %v656, 0
      %v672 = vsel %vm496, %v657, 0
      %v675 = vsel %vm496, %v658, 0
      %v678 = vsel %vm496, %v659, 0
      %v681 = vsel %vm496, %v660, 0
      %v684 = vsel %vm496, %v661, 0
      %v687 = vsel %vm521, %v268, 0
      %689 = vmatprep.subr.bf16.mxu0 0
      %690 = vmatpush1.bf16.msra.mxu0 0
      %691 = vmatprep.subr.bf16.mxu0 0
      %692 = vmatpush1.bf16.msra.mxu0 0
      %693 = vmatprep.subr.bf16.mxu0 0
      %694 = vmatpush1.bf16.msra.mxu0 0
      %695 = vmatprep.subr.bf16.mxu0 0
      %696 = vmatpush1.bf16.msra.mxu0 0
      %697 = vmatprep.subr.bf16.mxu0 0
      %698 = vmatpush1.bf16.msra.mxu0 0
      %699 = vmatprep.subr.bf16.mxu0 0
      %700 = vmatpush1.bf16.msra.mxu0 0
      %701 = vmatprep.subr.bf16.mxu0 0
      %702 = vmatpush1.bf16.msra.mxu0 0
      %703 = vmatprep.subr.bf16.mxu0 0
      %704 = vmatpush1.bf16.msra.mxu0 %v687
      %705 = vmatprep.subr.bf16.mxu0 0
      %706 = vmatpush2.bf16.msra.mxu0 0
      %707 = vmatprep.subr.bf16.mxu0 0
      %708 = vmatpush2.bf16.msra.mxu0 0
      %709 = vmatprep.subr.bf16.mxu0 0
      %710 = vmatpush2.bf16.msra.mxu0 0
      %711 = vmatprep.subr.bf16.mxu0 0
      %712 = vmatpush2.bf16.msra.mxu0 0
      %713 = vmatprep.subr.bf16.mxu0 0
      %714 = vmatpush2.bf16.msra.mxu0 0
      %715 = vmatprep.subr.bf16.mxu0 0
      %716 = vmatpush2.bf16.msra.mxu0 0
      %717 = vmatprep.subr.bf16.mxu0 0
      %718 = vmatpush2.bf16.msra.mxu0 0
      %719 = vmatprep.subr.bf16.mxu0 0
      %720 = vmatpush2.bf16.msra.mxu0 0
      %721 = vmatprep.mubr.bf16.mxu0 0
      %722 = vmatmul.mubr.bf16.gmra.mxu0 %v663
      %v723 = vpop.f32.mrf.mxu0
      %v724 = vadd.f32 %v560, %v723
      %v725 = vpop.f32.mrf.mxu0
      %v726 = vpop.f32.mrf.mxu0
      %v727 = vadd.f32 %v563, %v726
      %v728 = vpop.f32.mrf.mxu0
      %729 = vmatprep.mubr.bf16.mxu0 0
      %730 = vmatmul.mubr.bf16.gmra.mxu0 %v666
      %v731 = vpop.f32.mrf.mxu0
      %v732 = vadd.f32 %v568, %v731
      %v733 = vpop.f32.mrf.mxu0
      %v734 = vpop.f32.mrf.mxu0
      %v735 = vadd.f32 %v571, %v734
      %v736 = vpop.f32.mrf.mxu0
      %737 = vmatprep.mubr.bf16.mxu0 0
      %738 = vmatmul.mubr.bf16.gmra.mxu0 %v669
      %v739 = vpop.f32.mrf.mxu0
      %v740 = vadd.f32 %v576, %v739
      %v741 = vpop.f32.mrf.mxu0
      %v742 = vpop.f32.mrf.mxu0
      %v743 = vadd.f32 %v579, %v742
      %v744 = vpop.f32.mrf.mxu0
      %745 = vmatprep.mubr.bf16.mxu0 0
      %746 = vmatmul.mubr.bf16.gmra.mxu0 %v672
      %v747 = vpop.f32.mrf.mxu0
      %v748 = vadd.f32 %v584, %v747
      %v749 = vpop.f32.mrf.mxu0
      %v750 = vpop.f32.mrf.mxu0
      %v751 = vadd.f32 %v587, %v750
      %v752 = vpop.f32.mrf.mxu0
      %753 = vmatprep.mubr.bf16.mxu0 0
      %754 = vmatmul.mubr.bf16.gmra.mxu0 %v675
      %v755 = vpop.f32.mrf.mxu0
      %v756 = vadd.f32 %v592, %v755
      %v757 = vpop.f32.mrf.mxu0
      %v758 = vpop.f32.mrf.mxu0
      %v759 = vadd.f32 %v595, %v758
      %v760 = vpop.f32.mrf.mxu0
      %761 = vmatprep.mubr.bf16.mxu0 0
      %762 = vmatmul.mubr.bf16.gmra.mxu0 %v678
      %v763 = vpop.f32.mrf.mxu0
      %v764 = vadd.f32 %v600, %v763
      %v765 = vpop.f32.mrf.mxu0
      %v766 = vpop.f32.mrf.mxu0
      %v767 = vadd.f32 %v603, %v766
      %v768 = vpop.f32.mrf.mxu0
      %769 = vmatprep.mubr.bf16.mxu0 0
      %770 = vmatmul.mubr.bf16.gmra.mxu0 %v681
      %v771 = vpop.f32.mrf.mxu0
      %v772 = vadd.f32 %v608, %v771
      %v773 = vpop.f32.mrf.mxu0
      %v774 = vpop.f32.mrf.mxu0
      %v775 = vadd.f32 %v611, %v774
      %v776 = vpop.f32.mrf.mxu0
      %777 = vmatprep.mubr.bf16.mxu0 0
      %778 = vmatmul.mubr.bf16.gmra.mxu0 %v684
      %v779 = vpop.f32.mrf.mxu0
      %v780 = vadd.f32 %v616, %v779
      %v781 = vpop.f32.mrf.mxu0
      %v782 = vpop.f32.mrf.mxu0
      %v783 = vadd.f32 %v619, %v782
      %v784 = vpop.f32.mrf.mxu0
      %785 = vdwg.mxu0
      %vm794 = vcmask 1042432
      %vm795 = vcmask 1046532
      %vm796 = vmor %vm794, %vm795
      %v797 = vrot.slane %v238, 5
      %v798 = vrot.slane %v797, 4
      %v799 = vrot.slane %v239, 5
      %v800 = vsel %vm796, %v798, %v799
      %v801 = vrot.slane %v799, 4
      %v802 = vrot.slane %v240, 5
      %v803 = vsel %vm796, %v801, %v802
      %v804 = vrot.slane %v241, 5
      %v805 = vrot.slane %v804, 4
      %v806 = vrot.slane %v242, 5
      %v807 = vsel %vm796, %v805, %v806
      %v808 = vrot.slane %v806, 4
      %v809 = vrot.slane %v243, 5
      %v810 = vsel %vm796, %v808, %v809
      %v811 = vrot.slane %v244, 5
      %v812 = vrot.slane %v811, 4
      %v813 = vrot.slane %v245, 5
      %v814 = vsel %vm796, %v812, %v813
      %v815 = vrot.slane %v813, 4
      %v816 = vrot.slane %v246, 5
      %v817 = vsel %vm796, %v815, %v816
      %v818 = vrot.slane %v247, 5
      %v819 = vrot.slane %v818, 4
      %v820 = vrot.slane %v248, 5
      %v821 = vsel %vm796, %v819, %v820
      %v822 = vrot.slane %v820, 4
      %v823 = vrot.slane %v249, 5
      %v824 = vsel %vm796, %v822, %v823
      %v825 = vrot.slane %v250, 5
      %v826 = vrot.slane %v825, 4
      %v827 = vrot.slane %v251, 5
      %v828 = vsel %vm796, %v826, %v827
      %v829 = vrot.slane %v827, 4
      %v830 = vrot.slane %v252, 5
      %v831 = vsel %vm796, %v829, %v830
      %v832 = vrot.slane %v253, 5
      %v833 = vrot.slane %v832, 4
      %v834 = vrot.slane %v254, 5
      %v835 = vsel %vm796, %v833, %v834
      %v836 = vrot.slane %v834, 4
      %v837 = vrot.slane %v255, 5
      %v838 = vsel %vm796, %v836, %v837
      %v839 = vrot.slane %v256, 5
      %v840 = vrot.slane %v839, 4
      %v841 = vrot.slane %v257, 5
      %v842 = vsel %vm796, %v840, %v841
      %v843 = vrot.slane %v841, 4
      %v844 = vrot.slane %v258, 5
      %v845 = vsel %vm796, %v843, %v844
      %v846 = vrot.slane %v259, 5
      %v847 = vrot.slane %v846, 4
      %v848 = vrot.slane %v260, 5
      %v849 = vsel %vm796, %v847, %v848
      %v850 = vrot.slane %v848, 4
      %v851 = vrot.slane %v261, 5
      %v852 = vsel %vm796, %v850, %v851
      %v853 = vunpack.c.l.b16 %v800
      %v854 = vunpack.c.l.b16 %v803
      %v855 = vunpack.c.l.b16 %v807
      %v856 = vunpack.c.l.b16 %v810
      %v857 = vunpack.c.l.b16 %v814
      %v858 = vunpack.c.l.b16 %v817
      %v859 = vunpack.c.l.b16 %v821
      %v860 = vunpack.c.l.b16 %v824
      %v861 = vunpack.c.l.b16 %v828
      %v862 = vunpack.c.l.b16 %v831
      %v863 = vunpack.c.l.b16 %v835
      %v864 = vunpack.c.l.b16 %v838
      %v865 = vunpack.c.l.b16 %v842
      %v866 = vunpack.c.l.b16 %v845
      %v867 = vunpack.c.l.b16 %v849
      %v868 = vunpack.c.l.b16 %v852
      %v869 = vpack.c.b16 %v854, %v853
      %v870 = vpack.c.b16 %v856, %v855
      %v871 = vpack.c.b16 %v858, %v857
      %v872 = vpack.c.b16 %v860, %v859
      %v873 = vpack.c.b16 %v862, %v861
      %v874 = vpack.c.b16 %v864, %v863
      %v875 = vpack.c.b16 %v866, %v865
      %v876 = vpack.c.b16 %v868, %v867
      %v878 = vsel %vm496, %v869, 0
      %v881 = vsel %vm496, %v870, 0
      %v884 = vsel %vm496, %v871, 0
      %v887 = vsel %vm496, %v872, 0
      %v890 = vsel %vm496, %v873, 0
      %v893 = vsel %vm496, %v874, 0
      %v896 = vsel %vm496, %v875, 0
      %v899 = vsel %vm496, %v876, 0
      %v902 = vsel %vm521, %v270, 0
      %904 = vmatprep.subr.bf16.mxu0 0
      %905 = vmatpush1.bf16.msra.mxu0 0
      %906 = vmatprep.subr.bf16.mxu0 0
      %907 = vmatpush1.bf16.msra.mxu0 0
      %908 = vmatprep.subr.bf16.mxu0 0
      %909 = vmatpush1.bf16.msra.mxu0 0
      %910 = vmatprep.subr.bf16.mxu0 0
      %911 = vmatpush1.bf16.msra.mxu0 0
      %912 = vmatprep.subr.bf16.mxu0 0
      %913 = vmatpush1.bf16.msra.mxu0 0
      %914 = vmatprep.subr.bf16.mxu0 0
      %915 = vmatpush1.bf16.msra.mxu0 0
      %916 = vmatprep.subr.bf16.mxu0 0
      %917 = vmatpush1.bf16.msra.mxu0 0
      %918 = vmatprep.subr.bf16.mxu0 0
      %919 = vmatpush1.bf16.msra.mxu0 %v902
      %920 = vmatprep.subr.bf16.mxu0 0
      %921 = vmatpush2.bf16.msra.mxu0 0
      %922 = vmatprep.subr.bf16.mxu0 0
      %923 = vmatpush2.bf16.msra.mxu0 0
      %924 = vmatprep.subr.bf16.mxu0 0
      %925 = vmatpush2.bf16.msra.mxu0 0
      %926 = vmatprep.subr.bf16.mxu0 0
      %927 = vmatpush2.bf16.msra.mxu0 0
      %928 = vmatprep.subr.bf16.mxu0 0
      %929 = vmatpush2.bf16.msra.mxu0 0
      %930 = vmatprep.subr.bf16.mxu0 0
      %931 = vmatpush2.bf16.msra.mxu0 0
      %932 = vmatprep.subr.bf16.mxu0 0
      %933 = vmatpush2.bf16.msra.mxu0 0
      %934 = vmatprep.subr.bf16.mxu0 0
      %935 = vmatpush2.bf16.msra.mxu0 0
      %936 = vmatprep.mubr.bf16.mxu0 0
      %937 = vmatmul.mubr.bf16.gmra.mxu0 %v878
      %v938 = vpop.f32.mrf.mxu0
      %v939 = vadd.f32 0.0, %v938
      %v940 = vpop.f32.mrf.mxu0
      %v941 = vpop.f32.mrf.mxu0
      %v942 = vadd.f32 0.0, %v941
      %v943 = vpop.f32.mrf.mxu0
      %944 = vmatprep.mubr.bf16.mxu0 0
      %945 = vmatmul.mubr.bf16.gmra.mxu0 %v881
      %v946 = vpop.f32.mrf.mxu0
      %v947 = vadd.f32 0.0, %v946
      %v948 = vpop.f32.mrf.mxu0
      %v949 = vpop.f32.mrf.mxu0
      %v950 = vadd.f32 0.0, %v949
      %v951 = vpop.f32.mrf.mxu0
      %952 = vmatprep.mubr.bf16.mxu0 0
      %953 = vmatmul.mubr.bf16.gmra.mxu0 %v884
      %v954 = vpop.f32.mrf.mxu0
      %v955 = vadd.f32 0.0, %v954
      %v956 = vpop.f32.mrf.mxu0
      %v957 = vpop.f32.mrf.mxu0
      %v958 = vadd.f32 0.0, %v957
      %v959 = vpop.f32.mrf.mxu0
      %960 = vmatprep.mubr.bf16.mxu0 0
      %961 = vmatmul.mubr.bf16.gmra.mxu0 %v887
      %v962 = vpop.f32.mrf.mxu0
      %v963 = vadd.f32 0.0, %v962
      %v964 = vpop.f32.mrf.mxu0
      %v965 = vpop.f32.mrf.mxu0
      %v966 = vadd.f32 0.0, %v965
      %v967 = vpop.f32.mrf.mxu0
      %968 = vmatprep.mubr.bf16.mxu0 0
      %969 = vmatmul.mubr.bf16.gmra.mxu0 %v890
      %v970 = vpop.f32.mrf.mxu0
      %v971 = vadd.f32 0.0, %v970
      %v972 = vpop.f32.mrf.mxu0
      %v973 = vpop.f32.mrf.mxu0
      %v974 = vadd.f32 0.0, %v973
      %v975 = vpop.f32.mrf.mxu0
      %976 = vmatprep.mubr.bf16.mxu0 0
      %977 = vmatmul.mubr.bf16.gmra.mxu0 %v893
      %v978 = vpop.f32.mrf.mxu0
      %v979 = vadd.f32 0.0, %v978
      %v980 = vpop.f32.mrf.mxu0
      %v981 = vpop.f32.mrf.mxu0
      %v982 = vadd.f32 0.0, %v981
      %v983 = vpop.f32.mrf.mxu0
      %984 = vmatprep.mubr.bf16.mxu0 0
      %985 = vmatmul.mubr.bf16.gmra.mxu0 %v896
      %v986 = vpop.f32.mrf.mxu0
      %v987 = vadd.f32 0.0, %v986
      %v988 = vpop.f32.mrf.mxu0
      %v989 = vpop.f32.mrf.mxu0
      %v990 = vadd.f32 0.0, %v989
      %v991 = vpop.f32.mrf.mxu0
      %992 = vmatprep.mubr.bf16.mxu0 0
      %993 = vmatmul.mubr.bf16.gmra.mxu0 %v899
      %v994 = vpop.f32.mrf.mxu0
      %v995 = vadd.f32 0.0, %v994
      %v996 = vpop.f32.mrf.mxu0
      %v997 = vpop.f32.mrf.mxu0
      %v998 = vadd.f32 0.0, %v997
      %v999 = vpop.f32.mrf.mxu0
      %1000 = vdwg.mxu0
      %v1001 = vadd.f32 %v724, %v939
      %v1002 = vadd.f32 %v727, %v942
      %v1003 = vadd.f32 %v732, %v947
      %v1004 = vadd.f32 %v735, %v950
      %v1005 = vadd.f32 %v740, %v955
      %v1006 = vadd.f32 %v743, %v958
      %v1007 = vadd.f32 %v748, %v963
      %v1008 = vadd.f32 %v751, %v966
      %v1009 = vadd.f32 %v756, %v971
      %v1010 = vadd.f32 %v759, %v974
      %v1011 = vadd.f32 %v764, %v979
      %v1012 = vadd.f32 %v767, %v982
      %v1013 = vadd.f32 %v772, %v987
      %v1014 = vadd.f32 %v775, %v990
      %v1015 = vadd.f32 %v780, %v995
      %v1016 = vadd.f32 %v783, %v998
      %v1019 = vunpack.c.l.b16 %v262
      %v1020 = vunpack.c.l.b16 %v263
      %v1021 = vpack.c.b16 %v1020, %v1019
      %v1023 = vsel %vm496, %v1021, 0
      %v1026 = vsel %vm521, %v271, 0
      %1028 = vmatprep.subr.bf16.mxu0 0
      %1029 = vmatpush1.bf16.msra.mxu0 0
      %1030 = vmatprep.subr.bf16.mxu0 0
      %1031 = vmatpush1.bf16.msra.mxu0 0
      %1032 = vmatprep.subr.bf16.mxu0 0
      %1033 = vmatpush1.bf16.msra.mxu0 0
      %1034 = vmatprep.subr.bf16.mxu0 0
      %1035 = vmatpush1.bf16.msra.mxu0 0
      %1036 = vmatprep.subr.bf16.mxu0 0
      %1037 = vmatpush1.bf16.msra.mxu0 0
      %1038 = vmatprep.subr.bf16.mxu0 0
      %1039 = vmatpush1.bf16.msra.mxu0 0
      %1040 = vmatprep.subr.bf16.mxu0 0
      %1041 = vmatpush1.bf16.msra.mxu0 0
      %1042 = vmatprep.subr.bf16.mxu0 0
      %1043 = vmatpush1.bf16.msra.mxu0 %v1026
      %1044 = vmatprep.subr.bf16.mxu0 0
      %1045 = vmatpush2.bf16.msra.mxu0 0
      %1046 = vmatprep.subr.bf16.mxu0 0
      %1047 = vmatpush2.bf16.msra.mxu0 0
      %1048 = vmatprep.subr.bf16.mxu0 0
      %1049 = vmatpush2.bf16.msra.mxu0 0
      %1050 = vmatprep.subr.bf16.mxu0 0
      %1051 = vmatpush2.bf16.msra.mxu0 0
      %1052 = vmatprep.subr.bf16.mxu0 0
      %1053 = vmatpush2.bf16.msra.mxu0 0
      %1054 = vmatprep.subr.bf16.mxu0 0
      %1055 = vmatpush2.bf16.msra.mxu0 0
      %1056 = vmatprep.subr.bf16.mxu0 0
      %1057 = vmatpush2.bf16.msra.mxu0 0
      %1058 = vmatprep.subr.bf16.mxu0 0
      %1059 = vmatpush2.bf16.msra.mxu0 0
      %1060 = vmatprep.mubr.bf16.mxu0 0
      %1061 = vmatmul.mubr.bf16.gmra.mxu0 %v666
      %v1062 = vpop.f32.mrf.mxu0
      %v1063 = vadd.f32 0.0, %v1062
      %v1064 = vpop.f32.mrf.mxu0
      %v1065 = vpop.f32.mrf.mxu0
      %v1066 = vadd.f32 0.0, %v1065
      %v1067 = vpop.f32.mrf.mxu0
      %1068 = vmatprep.mubr.bf16.mxu0 0
      %1069 = vmatmul.mubr.bf16.gmra.mxu0 %v669
      %v1070 = vpop.f32.mrf.mxu0
      %v1071 = vadd.f32 0.0, %v1070
      %v1072 = vpop.f32.mrf.mxu0
      %v1073 = vpop.f32.mrf.mxu0
      %v1074 = vadd.f32 0.0, %v1073
      %v1075 = vpop.f32.mrf.mxu0
      %1076 = vmatprep.mubr.bf16.mxu0 0
      %1077 = vmatmul.mubr.bf16.gmra.mxu0 %v672
      %v1078 = vpop.f32.mrf.mxu0
      %v1079 = vadd.f32 0.0, %v1078
      %v1080 = vpop.f32.mrf.mxu0
      %v1081 = vpop.f32.mrf.mxu0
      %v1082 = vadd.f32 0.0, %v1081
      %v1083 = vpop.f32.mrf.mxu0
      %1084 = vmatprep.mubr.bf16.mxu0 0
      %1085 = vmatmul.mubr.bf16.gmra.mxu0 %v675
      %v1086 = vpop.f32.mrf.mxu0
      %v1087 = vadd.f32 0.0, %v1086
      %v1088 = vpop.f32.mrf.mxu0
      %v1089 = vpop.f32.mrf.mxu0
      %v1090 = vadd.f32 0.0, %v1089
      %v1091 = vpop.f32.mrf.mxu0
      %1092 = vmatprep.mubr.bf16.mxu0 0
      %1093 = vmatmul.mubr.bf16.gmra.mxu0 %v678
      %v1094 = vpop.f32.mrf.mxu0
      %v1095 = vadd.f32 0.0, %v1094
      %v1096 = vpop.f32.mrf.mxu0
      %v1097 = vpop.f32.mrf.mxu0
      %v1098 = vadd.f32 0.0, %v1097
      %v1099 = vpop.f32.mrf.mxu0
      %1100 = vmatprep.mubr.bf16.mxu0 0
      %1101 = vmatmul.mubr.bf16.gmra.mxu0 %v681
      %v1102 = vpop.f32.mrf.mxu0
      %v1103 = vadd.f32 0.0, %v1102
      %v1104 = vpop.f32.mrf.mxu0
      %v1105 = vpop.f32.mrf.mxu0
      %v1106 = vadd.f32 0.0, %v1105
      %v1107 = vpop.f32.mrf.mxu0
      %1108 = vmatprep.mubr.bf16.mxu0 0
      %1109 = vmatmul.mubr.bf16.gmra.mxu0 %v684
      %v1110 = vpop.f32.mrf.mxu0
      %v1111 = vadd.f32 0.0, %v1110
      %v1112 = vpop.f32.mrf.mxu0
      %v1113 = vpop.f32.mrf.mxu0
      %v1114 = vadd.f32 0.0, %v1113
      %v1115 = vpop.f32.mrf.mxu0
      %1116 = vmatprep.mubr.bf16.mxu0 0
      %1117 = vmatmul.mubr.bf16.gmra.mxu0 %v1023
      %v1118 = vpop.f32.mrf.mxu0
      %v1119 = vadd.f32 0.0, %v1118
      %v1120 = vpop.f32.mrf.mxu0
      %v1121 = vpop.f32.mrf.mxu0
      %v1122 = vadd.f32 0.0, %v1121
      %v1123 = vpop.f32.mrf.mxu0
      %1124 = vdwg.mxu0
      %v1125 = vadd.f32 %v1001, %v1063
      %v1126 = vadd.f32 %v1002, %v1066
      %v1127 = vadd.f32 %v1003, %v1071
      %v1128 = vadd.f32 %v1004, %v1074
      %v1129 = vadd.f32 %v1005, %v1079
      %v1130 = vadd.f32 %v1006, %v1082
      %v1131 = vadd.f32 %v1007, %v1087
      %v1132 = vadd.f32 %v1008, %v1090
      %v1133 = vadd.f32 %v1009, %v1095
      %v1134 = vadd.f32 %v1010, %v1098
      %v1135 = vadd.f32 %v1011, %v1103
      %v1136 = vadd.f32 %v1012, %v1106
      %v1137 = vadd.f32 %v1013, %v1111
      %v1138 = vadd.f32 %v1014, %v1114
      %v1139 = vadd.f32 %v1015, %v1119
      %v1140 = vadd.f32 %v1016, %v1122
      %v1142 = vshrl.u32 %v262, 16
      %v1144 = vrot.slane %v1142, 4
      %v1145 = vshll.u32 %v262, 16
      %v1147 = vrot.slane %v1145, 5
      %v1148 = vor.u32 %v1144, %v1147
      %v1149 = vrot.slane %v1148, 4
      %v1151 = vshll.u32 %v263, 16
      %v1153 = vrot.slane %v1151, 5
      %v1154 = vsel %vm279, %v1149, %v1153
      %v1155 = vshrl.u32 %v263, 16
      %v1157 = vrot.slane %v1155, 4
      %v1158 = vor.u32 %v1157, %v1153
      %v1159 = vrot.slane %v1158, 4
      %v1161 = vshll.u32 %v264, 16
      %v1163 = vrot.slane %v1161, 5
      %v1164 = vsel %vm279, %v1159, %v1163
      %v1165 = vunpack.c.l.b16 %v1154
      %v1166 = vunpack.c.l.b16 %v1164
      %v1167 = vpack.c.b16 %v1166, %v1165
      %v1169 = vsel %vm496, %v1167, 0
      %v1172 = vsel %vm521, %v272, 0
      %1174 = vmatprep.subr.bf16.mxu0 0
      %1175 = vmatpush1.bf16.msra.mxu0 0
      %1176 = vmatprep.subr.bf16.mxu0 0
      %1177 = vmatpush1.bf16.msra.mxu0 0
      %1178 = vmatprep.subr.bf16.mxu0 0
      %1179 = vmatpush1.bf16.msra.mxu0 0
      %1180 = vmatprep.subr.bf16.mxu0 0
      %1181 = vmatpush1.bf16.msra.mxu0 0
      %1182 = vmatprep.subr.bf16.mxu0 0
      %1183 = vmatpush1.bf16.msra.mxu0 0
      %1184 = vmatprep.subr.bf16.mxu0 0
      %1185 = vmatpush1.bf16.msra.mxu0 0
      %1186 = vmatprep.subr.bf16.mxu0 0
      %1187 = vmatpush1.bf16.msra.mxu0 0
      %1188 = vmatprep.subr.bf16.mxu0 0
      %1189 = vmatpush1.bf16.msra.mxu0 %v1172
      %1190 = vmatprep.subr.bf16.mxu0 0
      %1191 = vmatpush2.bf16.msra.mxu0 0
      %1192 = vmatprep.subr.bf16.mxu0 0
      %1193 = vmatpush2.bf16.msra.mxu0 0
      %1194 = vmatprep.subr.bf16.mxu0 0
      %1195 = vmatpush2.bf16.msra.mxu0 0
      %1196 = vmatprep.subr.bf16.mxu0 0
      %1197 = vmatpush2.bf16.msra.mxu0 0
      %1198 = vmatprep.subr.bf16.mxu0 0
      %1199 = vmatpush2.bf16.msra.mxu0 0
      %1200 = vmatprep.subr.bf16.mxu0 0
      %1201 = vmatpush2.bf16.msra.mxu0 0
      %1202 = vmatprep.subr.bf16.mxu0 0
      %1203 = vmatpush2.bf16.msra.mxu0 0
      %1204 = vmatprep.subr.bf16.mxu0 0
      %1205 = vmatpush2.bf16.msra.mxu0 0
      %1206 = vmatprep.mubr.bf16.mxu0 0
      %1207 = vmatmul.mubr.bf16.gmra.mxu0 %v501
      %v1208 = vpop.f32.mrf.mxu0
      %v1209 = vadd.f32 0.0, %v1208
      %v1210 = vpop.f32.mrf.mxu0
      %v1211 = vpop.f32.mrf.mxu0
      %v1212 = vadd.f32 0.0, %v1211
      %v1213 = vpop.f32.mrf.mxu0
      %1214 = vmatprep.mubr.bf16.mxu0 0
      %1215 = vmatmul.mubr.bf16.gmra.mxu0 %v504
      %v1216 = vpop.f32.mrf.mxu0
      %v1217 = vadd.f32 0.0, %v1216
      %v1218 = vpop.f32.mrf.mxu0
      %v1219 = vpop.f32.mrf.mxu0
      %v1220 = vadd.f32 0.0, %v1219
      %v1221 = vpop.f32.mrf.mxu0
      %1222 = vmatprep.mubr.bf16.mxu0 0
      %1223 = vmatmul.mubr.bf16.gmra.mxu0 %v507
      %v1224 = vpop.f32.mrf.mxu0
      %v1225 = vadd.f32 0.0, %v1224
      %v1226 = vpop.f32.mrf.mxu0
      %v1227 = vpop.f32.mrf.mxu0
      %v1228 = vadd.f32 0.0, %v1227
      %v1229 = vpop.f32.mrf.mxu0
      %1230 = vmatprep.mubr.bf16.mxu0 0
      %1231 = vmatmul.mubr.bf16.gmra.mxu0 %v510
      %v1232 = vpop.f32.mrf.mxu0
      %v1233 = vadd.f32 0.0, %v1232
      %v1234 = vpop.f32.mrf.mxu0
      %v1235 = vpop.f32.mrf.mxu0
      %v1236 = vadd.f32 0.0, %v1235
      %v1237 = vpop.f32.mrf.mxu0
      %1238 = vmatprep.mubr.bf16.mxu0 0
      %1239 = vmatmul.mubr.bf16.gmra.mxu0 %v513
      %v1240 = vpop.f32.mrf.mxu0
      %v1241 = vadd.f32 0.0, %v1240
      %v1242 = vpop.f32.mrf.mxu0
      %v1243 = vpop.f32.mrf.mxu0
      %v1244 = vadd.f32 0.0, %v1243
      %v1245 = vpop.f32.mrf.mxu0
      %1246 = vmatprep.mubr.bf16.mxu0 0
      %1247 = vmatmul.mubr.bf16.gmra.mxu0 %v516
      %v1248 = vpop.f32.mrf.mxu0
      %v1249 = vadd.f32 0.0, %v1248
      %v1250 = vpop.f32.mrf.mxu0
      %v1251 = vpop.f32.mrf.mxu0
      %v1252 = vadd.f32 0.0, %v1251
      %v1253 = vpop.f32.mrf.mxu0
      %1254 = vmatprep.mubr.bf16.mxu0 0
      %1255 = vmatmul.mubr.bf16.gmra.mxu0 %v519
      %v1256 = vpop.f32.mrf.mxu0
      %v1257 = vadd.f32 0.0, %v1256
      %v1258 = vpop.f32.mrf.mxu0
      %v1259 = vpop.f32.mrf.mxu0
      %v1260 = vadd.f32 0.0, %v1259
      %v1261 = vpop.f32.mrf.mxu0
      %1262 = vmatprep.mubr.bf16.mxu0 0
      %1263 = vmatmul.mubr.bf16.gmra.mxu0 %v1169
      %v1264 = vpop.f32.mrf.mxu0
      %v1265 = vadd.f32 0.0, %v1264
      %v1266 = vpop.f32.mrf.mxu0
      %v1267 = vpop.f32.mrf.mxu0
      %v1268 = vadd.f32 0.0, %v1267
      %v1269 = vpop.f32.mrf.mxu0
      %1270 = vdwg.mxu0
      %v1271 = vadd.f32 %v1125, %v1209
      %v1272 = vadd.f32 %v1126, %v1212
      %v1273 = vadd.f32 %v1127, %v1217
      %v1274 = vadd.f32 %v1128, %v1220
      %v1275 = vadd.f32 %v1129, %v1225
      %v1276 = vadd.f32 %v1130, %v1228
      %v1277 = vadd.f32 %v1131, %v1233
      %v1278 = vadd.f32 %v1132, %v1236
      %v1279 = vadd.f32 %v1133, %v1241
      %v1280 = vadd.f32 %v1134, %v1244
      %v1281 = vadd.f32 %v1135, %v1249
      %v1282 = vadd.f32 %v1136, %v1252
      %v1283 = vadd.f32 %v1137, %v1257
      %v1284 = vadd.f32 %v1138, %v1260
      %v1285 = vadd.f32 %v1139, %v1265
      %v1286 = vadd.f32 %v1140, %v1268
      %v1288 = vrot.slane %v262, 5
      %v1289 = vrot.slane %v1288, 4
      %v1290 = vrot.slane %v263, 5
      %v1291 = vsel %vm796, %v1289, %v1290
      %v1292 = vrot.slane %v1290, 4
      %v1293 = vrot.slane %v264, 5
      %v1294 = vsel %vm796, %v1292, %v1293
      %v1295 = vunpack.c.l.b16 %v1291
      %v1296 = vunpack.c.l.b16 %v1294
      %v1297 = vpack.c.b16 %v1296, %v1295
      %v1299 = vsel %vm496, %v1297, 0
      %v1302 = vsel %vm521, %v273, 0
      %1304 = vmatprep.subr.bf16.mxu0 0
      %1305 = vmatpush1.bf16.msra.mxu0 0
      %1306 = vmatprep.subr.bf16.mxu0 0
      %1307 = vmatpush1.bf16.msra.mxu0 0
      %1308 = vmatprep.subr.bf16.mxu0 0
      %1309 = vmatpush1.bf16.msra.mxu0 0
      %1310 = vmatprep.subr.bf16.mxu0 0
      %1311 = vmatpush1.bf16.msra.mxu0 0
      %1312 = vmatprep.subr.bf16.mxu0 0
      %1313 = vmatpush1.bf16.msra.mxu0 0
      %1314 = vmatprep.subr.bf16.mxu0 0
      %1315 = vmatpush1.bf16.msra.mxu0 0
      %1316 = vmatprep.subr.bf16.mxu0 0
      %1317 = vmatpush1.bf16.msra.mxu0 0
      %1318 = vmatprep.subr.bf16.mxu0 0
      %1319 = vmatpush1.bf16.msra.mxu0 %v1302
      %1320 = vmatprep.subr.bf16.mxu0 0
      %1321 = vmatpush2.bf16.msra.mxu0 0
      %1322 = vmatprep.subr.bf16.mxu0 0
      %1323 = vmatpush2.bf16.msra.mxu0 0
      %1324 = vmatprep.subr.bf16.mxu0 0
      %1325 = vmatpush2.bf16.msra.mxu0 0
      %1326 = vmatprep.subr.bf16.mxu0 0
      %1327 = vmatpush2.bf16.msra.mxu0 0
      %1328 = vmatprep.subr.bf16.mxu0 0
      %1329 = vmatpush2.bf16.msra.mxu0 0
      %1330 = vmatprep.subr.bf16.mxu0 0
      %1331 = vmatpush2.bf16.msra.mxu0 0
      %1332 = vmatprep.subr.bf16.mxu0 0
      %1333 = vmatpush2.bf16.msra.mxu0 0
      %1334 = vmatprep.subr.bf16.mxu0 0
      %1335 = vmatpush2.bf16.msra.mxu0 0
      %1336 = vmatprep.mubr.bf16.mxu0 0
      %1337 = vmatmul.mubr.bf16.gmra.mxu0 %v881
      %v1338 = vpop.f32.mrf.mxu0
      %v1339 = vadd.f32 0.0, %v1338
      %v1340 = vpop.f32.mrf.mxu0
      %v1341 = vpop.f32.mrf.mxu0
      %v1342 = vadd.f32 0.0, %v1341
      %v1343 = vpop.f32.mrf.mxu0
      %1344 = vmatprep.mubr.bf16.mxu0 0
      %1345 = vmatmul.mubr.bf16.gmra.mxu0 %v884
      %v1346 = vpop.f32.mrf.mxu0
      %v1347 = vadd.f32 0.0, %v1346
      %v1348 = vpop.f32.mrf.mxu0
      %v1349 = vpop.f32.mrf.mxu0
      %v1350 = vadd.f32 0.0, %v1349
      %v1351 = vpop.f32.mrf.mxu0
      %1352 = vmatprep.mubr.bf16.mxu0 0
      %1353 = vmatmul.mubr.bf16.gmra.mxu0 %v887
      %v1354 = vpop.f32.mrf.mxu0
      %v1355 = vadd.f32 0.0, %v1354
      %v1356 = vpop.f32.mrf.mxu0
      %v1357 = vpop.f32.mrf.mxu0
      %v1358 = vadd.f32 0.0, %v1357
      %v1359 = vpop.f32.mrf.mxu0
      %1360 = vmatprep.mubr.bf16.mxu0 0
      %1361 = vmatmul.mubr.bf16.gmra.mxu0 %v890
      %v1362 = vpop.f32.mrf.mxu0
      %v1363 = vadd.f32 0.0, %v1362
      %v1364 = vpop.f32.mrf.mxu0
      %v1365 = vpop.f32.mrf.mxu0
      %v1366 = vadd.f32 0.0, %v1365
      %v1367 = vpop.f32.mrf.mxu0
      %1368 = vmatprep.mubr.bf16.mxu0 0
      %1369 = vmatmul.mubr.bf16.gmra.mxu0 %v893
      %v1370 = vpop.f32.mrf.mxu0
      %v1371 = vadd.f32 0.0, %v1370
      %v1372 = vpop.f32.mrf.mxu0
      %v1373 = vpop.f32.mrf.mxu0
      %v1374 = vadd.f32 0.0, %v1373
      %v1375 = vpop.f32.mrf.mxu0
      %1376 = vmatprep.mubr.bf16.mxu0 0
      %1377 = vmatmul.mubr.bf16.gmra.mxu0 %v896
      %v1378 = vpop.f32.mrf.mxu0
      %v1379 = vadd.f32 0.0, %v1378
      %v1380 = vpop.f32.mrf.mxu0
      %v1381 = vpop.f32.mrf.mxu0
      %v1382 = vadd.f32 0.0, %v1381
      %v1383 = vpop.f32.mrf.mxu0
      %1384 = vmatprep.mubr.bf16.mxu0 0
      %1385 = vmatmul.mubr.bf16.gmra.mxu0 %v899
      %v1386 = vpop.f32.mrf.mxu0
      %v1387 = vadd.f32 0.0, %v1386
      %v1388 = vpop.f32.mrf.mxu0
      %v1389 = vpop.f32.mrf.mxu0
      %v1390 = vadd.f32 0.0, %v1389
      %v1391 = vpop.f32.mrf.mxu0
      %1392 = vmatprep.mubr.bf16.mxu0 0
      %1393 = vmatmul.mubr.bf16.gmra.mxu0 %v1299
      %v1394 = vpop.f32.mrf.mxu0
      %v1395 = vadd.f32 0.0, %v1394
      %v1396 = vpop.f32.mrf.mxu0
      %v1397 = vpop.f32.mrf.mxu0
      %v1398 = vadd.f32 0.0, %v1397
      %v1399 = vpop.f32.mrf.mxu0
      %1400 = vdwg.mxu0
      %v1401 = vadd.f32 %v1271, %v1339
      %v1402 = vadd.f32 %v1272, %v1342
      %v1403 = vadd.f32 %v1273, %v1347
      %v1404 = vadd.f32 %v1274, %v1350
      %v1405 = vadd.f32 %v1275, %v1355
      %v1406 = vadd.f32 %v1276, %v1358
      %v1407 = vadd.f32 %v1277, %v1363
      %v1408 = vadd.f32 %v1278, %v1366
      %v1409 = vadd.f32 %v1279, %v1371
      %v1410 = vadd.f32 %v1280, %v1374
      %v1411 = vadd.f32 %v1281, %v1379
      %v1412 = vadd.f32 %v1282, %v1382
      %v1413 = vadd.f32 %v1283, %v1387
      %v1414 = vadd.f32 %v1284, %v1390
      %v1415 = vadd.f32 %v1285, %v1395
      %v1416 = vadd.f32 %v1286, %v1398
      %v1419 = vunpack.c.l.b16 %v265
      %v1420 = vunpack.c.l.b16 %v266
      %v1421 = vpack.c.b16 %v1420, %v1419
      %v1423 = vsel %vm496, %v1421, 0
      %v1426 = vsel %vm521, %v274, 0
      %1428 = vmatprep.subr.bf16.mxu0 0
      %1429 = vmatpush1.bf16.msra.mxu0 0
      %1430 = vmatprep.subr.bf16.mxu0 0
      %1431 = vmatpush1.bf16.msra.mxu0 0
      %1432 = vmatprep.subr.bf16.mxu0 0
      %1433 = vmatpush1.bf16.msra.mxu0 0
      %1434 = vmatprep.subr.bf16.mxu0 0
      %1435 = vmatpush1.bf16.msra.mxu0 0
      %1436 = vmatprep.subr.bf16.mxu0 0
      %1437 = vmatpush1.bf16.msra.mxu0 0
      %1438 = vmatprep.subr.bf16.mxu0 0
      %1439 = vmatpush1.bf16.msra.mxu0 0
      %1440 = vmatprep.subr.bf16.mxu0 0
      %1441 = vmatpush1.bf16.msra.mxu0 0
      %1442 = vmatprep.subr.bf16.mxu0 0
      %1443 = vmatpush1.bf16.msra.mxu0 %v1426
      %1444 = vmatprep.subr.bf16.mxu0 0
      %1445 = vmatpush2.bf16.msra.mxu0 0
      %1446 = vmatprep.subr.bf16.mxu0 0
      %1447 = vmatpush2.bf16.msra.mxu0 0
      %1448 = vmatprep.subr.bf16.mxu0 0
      %1449 = vmatpush2.bf16.msra.mxu0 0
      %1450 = vmatprep.subr.bf16.mxu0 0
      %1451 = vmatpush2.bf16.msra.mxu0 0
      %1452 = vmatprep.subr.bf16.mxu0 0
      %1453 = vmatpush2.bf16.msra.mxu0 0
      %1454 = vmatprep.subr.bf16.mxu0 0
      %1455 = vmatpush2.bf16.msra.mxu0 0
      %1456 = vmatprep.subr.bf16.mxu0 0
      %1457 = vmatpush2.bf16.msra.mxu0 0
      %1458 = vmatprep.subr.bf16.mxu0 0
      %1459 = vmatpush2.bf16.msra.mxu0 0
      %1460 = vmatprep.mubr.bf16.mxu0 0
      %1461 = vmatmul.mubr.bf16.gmra.mxu0 %v669
      %v1462 = vpop.f32.mrf.mxu0
      %v1463 = vadd.f32 0.0, %v1462
      %v1464 = vpop.f32.mrf.mxu0
      %v1465 = vpop.f32.mrf.mxu0
      %v1466 = vadd.f32 0.0, %v1465
      %v1467 = vpop.f32.mrf.mxu0
      %1468 = vmatprep.mubr.bf16.mxu0 0
      %1469 = vmatmul.mubr.bf16.gmra.mxu0 %v672
      %v1470 = vpop.f32.mrf.mxu0
      %v1471 = vadd.f32 0.0, %v1470
      %v1472 = vpop.f32.mrf.mxu0
      %v1473 = vpop.f32.mrf.mxu0
      %v1474 = vadd.f32 0.0, %v1473
      %v1475 = vpop.f32.mrf.mxu0
      %1476 = vmatprep.mubr.bf16.mxu0 0
      %1477 = vmatmul.mubr.bf16.gmra.mxu0 %v675
      %v1478 = vpop.f32.mrf.mxu0
      %v1479 = vadd.f32 0.0, %v1478
      %v1480 = vpop.f32.mrf.mxu0
      %v1481 = vpop.f32.mrf.mxu0
      %v1482 = vadd.f32 0.0, %v1481
      %v1483 = vpop.f32.mrf.mxu0
      %1484 = vmatprep.mubr.bf16.mxu0 0
      %1485 = vmatmul.mubr.bf16.gmra.mxu0 %v678
      %v1486 = vpop.f32.mrf.mxu0
      %v1487 = vadd.f32 0.0, %v1486
      %v1488 = vpop.f32.mrf.mxu0
      %v1489 = vpop.f32.mrf.mxu0
      %v1490 = vadd.f32 0.0, %v1489
      %v1491 = vpop.f32.mrf.mxu0
      %1492 = vmatprep.mubr.bf16.mxu0 0
      %1493 = vmatmul.mubr.bf16.gmra.mxu0 %v681
      %v1494 = vpop.f32.mrf.mxu0
      %v1495 = vadd.f32 0.0, %v1494
      %v1496 = vpop.f32.mrf.mxu0
      %v1497 = vpop.f32.mrf.mxu0
      %v1498 = vadd.f32 0.0, %v1497
      %v1499 = vpop.f32.mrf.mxu0
      %1500 = vmatprep.mubr.bf16.mxu0 0
      %1501 = vmatmul.mubr.bf16.gmra.mxu0 %v684
      %v1502 = vpop.f32.mrf.mxu0
      %v1503 = vadd.f32 0.0, %v1502
      %v1504 = vpop.f32.mrf.mxu0
      %v1505 = vpop.f32.mrf.mxu0
      %v1506 = vadd.f32 0.0, %v1505
      %v1507 = vpop.f32.mrf.mxu0
      %1508 = vmatprep.mubr.bf16.mxu0 0
      %1509 = vmatmul.mubr.bf16.gmra.mxu0 %v1023
      %v1510 = vpop.f32.mrf.mxu0
      %v1511 = vadd.f32 0.0, %v1510
      %v1512 = vpop.f32.mrf.mxu0
      %v1513 = vpop.f32.mrf.mxu0
      %v1514 = vadd.f32 0.0, %v1513
      %v1515 = vpop.f32.mrf.mxu0
      %1516 = vmatprep.mubr.bf16.mxu0 0
      %1517 = vmatmul.mubr.bf16.gmra.mxu0 %v1423
      %v1518 = vpop.f32.mrf.mxu0
      %v1519 = vadd.f32 0.0, %v1518
      %v1520 = vpop.f32.mrf.mxu0
      %v1521 = vpop.f32.mrf.mxu0
      %v1522 = vadd.f32 0.0, %v1521
      %v1523 = vpop.f32.mrf.mxu0
      %1524 = vdwg.mxu0
      %v1525 = vadd.f32 %v1401, %v1463
      %v1526 = vadd.f32 %v1402, %v1466
      %v1527 = vadd.f32 %v1403, %v1471
      %v1528 = vadd.f32 %v1404, %v1474
      %v1529 = vadd.f32 %v1405, %v1479
      %v1530 = vadd.f32 %v1406, %v1482
      %v1531 = vadd.f32 %v1407, %v1487
      %v1532 = vadd.f32 %v1408, %v1490
      %v1533 = vadd.f32 %v1409, %v1495
      %v1534 = vadd.f32 %v1410, %v1498
      %v1535 = vadd.f32 %v1411, %v1503
      %v1536 = vadd.f32 %v1412, %v1506
      %v1537 = vadd.f32 %v1413, %v1511
      %v1538 = vadd.f32 %v1414, %v1514
      %v1539 = vadd.f32 %v1415, %v1519
      %v1540 = vadd.f32 %v1416, %v1522
      %v1542 = vshrl.u32 %v265, 16
      %v1544 = vrot.slane %v1542, 4
      %v1545 = vshll.u32 %v265, 16
      %v1547 = vrot.slane %v1545, 5
      %v1548 = vor.u32 %v1544, %v1547
      %v1549 = vrot.slane %v1548, 4
      %v1551 = vshll.u32 %v266, 16
      %v1553 = vrot.slane %v1551, 5
      %v1554 = vsel %vm279, %v1549, %v1553
      %v1555 = vshrl.u32 %v266, 16
      %v1557 = vrot.slane %v1555, 4
      %v1558 = vor.u32 %v1557, %v1553
      %v1559 = vrot.slane %v1558, 4
      %v1561 = vshll.u32 %v267, 16
      %v1563 = vrot.slane %v1561, 5
      %v1564 = vsel %vm279, %v1559, %v1563
      %v1565 = vunpack.c.l.b16 %v1554
      %v1566 = vunpack.c.l.b16 %v1564
      %v1567 = vpack.c.b16 %v1566, %v1565
      %v1569 = vsel %vm496, %v1567, 0
      %v1572 = vsel %vm521, %v275, 0
      %1574 = vmatprep.subr.bf16.mxu0 0
      %1575 = vmatpush1.bf16.msra.mxu0 0
      %1576 = vmatprep.subr.bf16.mxu0 0
      %1577 = vmatpush1.bf16.msra.mxu0 0
      %1578 = vmatprep.subr.bf16.mxu0 0
      %1579 = vmatpush1.bf16.msra.mxu0 0
      %1580 = vmatprep.subr.bf16.mxu0 0
      %1581 = vmatpush1.bf16.msra.mxu0 0
      %1582 = vmatprep.subr.bf16.mxu0 0
      %1583 = vmatpush1.bf16.msra.mxu0 0
      %1584 = vmatprep.subr.bf16.mxu0 0
      %1585 = vmatpush1.bf16.msra.mxu0 0
      %1586 = vmatprep.subr.bf16.mxu0 0
      %1587 = vmatpush1.bf16.msra.mxu0 0
      %1588 = vmatprep.subr.bf16.mxu0 0
      %1589 = vmatpush1.bf16.msra.mxu0 %v1572
      %1590 = vmatprep.subr.bf16.mxu0 0
      %1591 = vmatpush2.bf16.msra.mxu0 0
      %1592 = vmatprep.subr.bf16.mxu0 0
      %1593 = vmatpush2.bf16.msra.mxu0 0
      %1594 = vmatprep.subr.bf16.mxu0 0
      %1595 = vmatpush2.bf16.msra.mxu0 0
      %1596 = vmatprep.subr.bf16.mxu0 0
      %1597 = vmatpush2.bf16.msra.mxu0 0
      %1598 = vmatprep.subr.bf16.mxu0 0
      %1599 = vmatpush2.bf16.msra.mxu0 0
      %1600 = vmatprep.subr.bf16.mxu0 0
      %1601 = vmatpush2.bf16.msra.mxu0 0
      %1602 = vmatprep.subr.bf16.mxu0 0
      %1603 = vmatpush2.bf16.msra.mxu0 0
      %1604 = vmatprep.subr.bf16.mxu0 0
      %1605 = vmatpush2.bf16.msra.mxu0 0
      %1606 = vmatprep.mubr.bf16.mxu0 0
      %1607 = vmatmul.mubr.bf16.gmra.mxu0 %v504
      %v1608 = vpop.f32.mrf.mxu0
      %v1609 = vadd.f32 0.0, %v1608
      %v1610 = vpop.f32.mrf.mxu0
      %v1611 = vpop.f32.mrf.mxu0
      %v1612 = vadd.f32 0.0, %v1611
      %v1613 = vpop.f32.mrf.mxu0
      %1614 = vmatprep.mubr.bf16.mxu0 0
      %1615 = vmatmul.mubr.bf16.gmra.mxu0 %v507
      %v1616 = vpop.f32.mrf.mxu0
      %v1617 = vadd.f32 0.0, %v1616
      %v1618 = vpop.f32.mrf.mxu0
      %v1619 = vpop.f32.mrf.mxu0
      %v1620 = vadd.f32 0.0, %v1619
      %v1621 = vpop.f32.mrf.mxu0
      %1622 = vmatprep.mubr.bf16.mxu0 0
      %1623 = vmatmul.mubr.bf16.gmra.mxu0 %v510
      %v1624 = vpop.f32.mrf.mxu0
      %v1625 = vadd.f32 0.0, %v1624
      %v1626 = vpop.f32.mrf.mxu0
      %v1627 = vpop.f32.mrf.mxu0
      %v1628 = vadd.f32 0.0, %v1627
      %v1629 = vpop.f32.mrf.mxu0
      %1630 = vmatprep.mubr.bf16.mxu0 0
      %1631 = vmatmul.mubr.bf16.gmra.mxu0 %v513
      %v1632 = vpop.f32.mrf.mxu0
      %v1633 = vadd.f32 0.0, %v1632
      %v1634 = vpop.f32.mrf.mxu0
      %v1635 = vpop.f32.mrf.mxu0
      %v1636 = vadd.f32 0.0, %v1635
      %v1637 = vpop.f32.mrf.mxu0
      %1638 = vmatprep.mubr.bf16.mxu0 0
      %1639 = vmatmul.mubr.bf16.gmra.mxu0 %v516
      %v1640 = vpop.f32.mrf.mxu0
      %v1641 = vadd.f32 0.0, %v1640
      %v1642 = vpop.f32.mrf.mxu0
      %v1643 = vpop.f32.mrf.mxu0
      %v1644 = vadd.f32 0.0, %v1643
      %v1645 = vpop.f32.mrf.mxu0
      %1646 = vmatprep.mubr.bf16.mxu0 0
      %1647 = vmatmul.mubr.bf16.gmra.mxu0 %v519
      %v1648 = vpop.f32.mrf.mxu0
      %v1649 = vadd.f32 0.0, %v1648
      %v1650 = vpop.f32.mrf.mxu0
      %v1651 = vpop.f32.mrf.mxu0
      %v1652 = vadd.f32 0.0, %v1651
      %v1653 = vpop.f32.mrf.mxu0
      %1654 = vmatprep.mubr.bf16.mxu0 0
      %1655 = vmatmul.mubr.bf16.gmra.mxu0 %v1169
      %v1656 = vpop.f32.mrf.mxu0
      %v1657 = vadd.f32 0.0, %v1656
      %v1658 = vpop.f32.mrf.mxu0
      %v1659 = vpop.f32.mrf.mxu0
      %v1660 = vadd.f32 0.0, %v1659
      %v1661 = vpop.f32.mrf.mxu0
      %1662 = vmatprep.mubr.bf16.mxu0 0
      %1663 = vmatmul.mubr.bf16.gmra.mxu0 %v1569
      %v1664 = vpop.f32.mrf.mxu0
      %v1665 = vadd.f32 0.0, %v1664
      %v1666 = vpop.f32.mrf.mxu0
      %v1667 = vpop.f32.mrf.mxu0
      %v1668 = vadd.f32 0.0, %v1667
      %v1669 = vpop.f32.mrf.mxu0
      %1670 = vdwg.mxu0
      %v1671 = vadd.f32 %v1525, %v1609
      %v1672 = vadd.f32 %v1526, %v1612
      %v1673 = vadd.f32 %v1527, %v1617
      %v1674 = vadd.f32 %v1528, %v1620
      %v1675 = vadd.f32 %v1529, %v1625
      %v1676 = vadd.f32 %v1530, %v1628
      %v1677 = vadd.f32 %v1531, %v1633
      %v1678 = vadd.f32 %v1532, %v1636
      %v1679 = vadd.f32 %v1533, %v1641
      %v1680 = vadd.f32 %v1534, %v1644
      %v1681 = vadd.f32 %v1535, %v1649
      %v1682 = vadd.f32 %v1536, %v1652
      %v1683 = vadd.f32 %v1537, %v1657
      %v1684 = vadd.f32 %v1538, %v1660
      %v1685 = vadd.f32 %v1539, %v1665
      %v1686 = vadd.f32 %v1540, %v1668
      %v1688 = vrot.slane %v265, 5
      %v1689 = vrot.slane %v1688, 4
      %v1690 = vrot.slane %v266, 5
      %v1691 = vsel %vm796, %v1689, %v1690
      %v1692 = vrot.slane %v1690, 4
      %v1693 = vrot.slane %v267, 5
      %v1694 = vsel %vm796, %v1692, %v1693
      %v1695 = vunpack.c.l.b16 %v1691
      %v1696 = vunpack.c.l.b16 %v1694
      %v1697 = vpack.c.b16 %v1696, %v1695
      %v1699 = vsel %vm496, %v1697, 0
      %v1702 = vsel %vm521, %v276, 0
      %1704 = vmatprep.subr.bf16.mxu0 0
      %1705 = vmatpush1.bf16.msra.mxu0 0
      %1706 = vmatprep.subr.bf16.mxu0 0
      %1707 = vmatpush1.bf16.msra.mxu0 0
      %1708 = vmatprep.subr.bf16.mxu0 0
      %1709 = vmatpush1.bf16.msra.mxu0 0
      %1710 = vmatprep.subr.bf16.mxu0 0
      %1711 = vmatpush1.bf16.msra.mxu0 0
      %1712 = vmatprep.subr.bf16.mxu0 0
      %1713 = vmatpush1.bf16.msra.mxu0 0
      %1714 = vmatprep.subr.bf16.mxu0 0
      %1715 = vmatpush1.bf16.msra.mxu0 0
      %1716 = vmatprep.subr.bf16.mxu0 0
      %1717 = vmatpush1.bf16.msra.mxu0 0
      %1718 = vmatprep.subr.bf16.mxu0 0
      %1719 = vmatpush1.bf16.msra.mxu0 %v1702
      %1720 = vmatprep.subr.bf16.mxu0 0
      %1721 = vmatpush2.bf16.msra.mxu0 0
      %1722 = vmatprep.subr.bf16.mxu0 0
      %1723 = vmatpush2.bf16.msra.mxu0 0
      %1724 = vmatprep.subr.bf16.mxu0 0
      %1725 = vmatpush2.bf16.msra.mxu0 0
      %1726 = vmatprep.subr.bf16.mxu0 0
      %1727 = vmatpush2.bf16.msra.mxu0 0
      %1728 = vmatprep.subr.bf16.mxu0 0
      %1729 = vmatpush2.bf16.msra.mxu0 0
      %1730 = vmatprep.subr.bf16.mxu0 0
      %1731 = vmatpush2.bf16.msra.mxu0 0
      %1732 = vmatprep.subr.bf16.mxu0 0
      %1733 = vmatpush2.bf16.msra.mxu0 0
      %1734 = vmatprep.subr.bf16.mxu0 0
      %1735 = vmatpush2.bf16.msra.mxu0 0
      %1736 = vmatprep.mubr.bf16.mxu0 0
      %1737 = vmatmul.mubr.bf16.gmra.mxu0 %v884
      %v1738 = vpop.f32.mrf.mxu0
      %v1739 = vadd.f32 0.0, %v1738
      %v1740 = vpop.f32.mrf.mxu0
      %v1741 = vpop.f32.mrf.mxu0
      %v1742 = vadd.f32 0.0, %v1741
      %v1743 = vpop.f32.mrf.mxu0
      %1744 = vmatprep.mubr.bf16.mxu0 0
      %1745 = vmatmul.mubr.bf16.gmra.mxu0 %v887
      %v1746 = vpop.f32.mrf.mxu0
      %v1747 = vadd.f32 0.0, %v1746
      %v1748 = vpop.f32.mrf.mxu0
      %v1749 = vpop.f32.mrf.mxu0
      %v1750 = vadd.f32 0.0, %v1749
      %v1751 = vpop.f32.mrf.mxu0
      %1752 = vmatprep.mubr.bf16.mxu0 0
      %1753 = vmatmul.mubr.bf16.gmra.mxu0 %v890
      %v1754 = vpop.f32.mrf.mxu0
      %v1755 = vadd.f32 0.0, %v1754
      %v1756 = vpop.f32.mrf.mxu0
      %v1757 = vpop.f32.mrf.mxu0
      %v1758 = vadd.f32 0.0, %v1757
      %v1759 = vpop.f32.mrf.mxu0
      %1760 = vmatprep.mubr.bf16.mxu0 0
      %1761 = vmatmul.mubr.bf16.gmra.mxu0 %v893
      %v1762 = vpop.f32.mrf.mxu0
      %v1763 = vadd.f32 0.0, %v1762
      %v1764 = vpop.f32.mrf.mxu0
      %v1765 = vpop.f32.mrf.mxu0
      %v1766 = vadd.f32 0.0, %v1765
      %v1767 = vpop.f32.mrf.mxu0
      %1768 = vmatprep.mubr.bf16.mxu0 0
      %1769 = vmatmul.mubr.bf16.gmra.mxu0 %v896
      %v1770 = vpop.f32.mrf.mxu0
      %v1771 = vadd.f32 0.0, %v1770
      %v1772 = vpop.f32.mrf.mxu0
      %v1773 = vpop.f32.mrf.mxu0
      %v1774 = vadd.f32 0.0, %v1773
      %v1775 = vpop.f32.mrf.mxu0
      %1776 = vmatprep.mubr.bf16.mxu0 0
      %1777 = vmatmul.mubr.bf16.gmra.mxu0 %v899
      %v1778 = vpop.f32.mrf.mxu0
      %v1779 = vadd.f32 0.0, %v1778
      %v1780 = vpop.f32.mrf.mxu0
      %v1781 = vpop.f32.mrf.mxu0
      %v1782 = vadd.f32 0.0, %v1781
      %v1783 = vpop.f32.mrf.mxu0
      %1784 = vmatprep.mubr.bf16.mxu0 0
      %1785 = vmatmul.mubr.bf16.gmra.mxu0 %v1299
      %v1786 = vpop.f32.mrf.mxu0
      %v1787 = vadd.f32 0.0, %v1786
      %v1788 = vpop.f32.mrf.mxu0
      %v1789 = vpop.f32.mrf.mxu0
      %v1790 = vadd.f32 0.0, %v1789
      %v1791 = vpop.f32.mrf.mxu0
      %1792 = vmatprep.mubr.bf16.mxu0 0
      %1793 = vmatmul.mubr.bf16.gmra.mxu0 %v1699
      %v1794 = vpop.f32.mrf.mxu0
      %v1795 = vadd.f32 0.0, %v1794
      %v1796 = vpop.f32.mrf.mxu0
      %v1797 = vpop.f32.mrf.mxu0
      %v1798 = vadd.f32 0.0, %v1797
      %v1799 = vpop.f32.mrf.mxu0
      %1800 = vdwg.mxu0
      %v1801 = vadd.f32 %v1671, %v1739
      %v1802 = vadd.f32 %v1672, %v1742
      %v1803 = vadd.f32 %v1673, %v1747
      %v1804 = vadd.f32 %v1674, %v1750
      %v1805 = vadd.f32 %v1675, %v1755
      %v1806 = vadd.f32 %v1676, %v1758
      %v1807 = vadd.f32 %v1677, %v1763
      %v1808 = vadd.f32 %v1678, %v1766
      %v1809 = vadd.f32 %v1679, %v1771
      %v1810 = vadd.f32 %v1680, %v1774
      %v1811 = vadd.f32 %v1681, %v1779
      %v1812 = vadd.f32 %v1682, %v1782
      %v1813 = vadd.f32 %v1683, %v1787
      %v1814 = vadd.f32 %v1684, %v1790
      %v1815 = vadd.f32 %v1685, %v1795
      %v1816 = vadd.f32 %v1686, %v1798
      %v1817 = vld [vmem:[%s2] sm:$0x1]
      %v1819 = vlaneseq
      %v1820 = vshrl.u32 %v1819, 7
      %v1821 = vsub.s32 0, %v1820
      %v1822 = vrot.slane %v1817, %v1821
      %v1824 = vmul.f32 %v1801, %v1822
      %v1825 = vmul.f32 %v1802, %v1822
      %v1826 = vmul.f32 %v1803, %v1822
      %v1827 = vmul.f32 %v1804, %v1822
      %v1828 = vmul.f32 %v1805, %v1822
      %v1829 = vmul.f32 %v1806, %v1822
      %v1830 = vmul.f32 %v1807, %v1822
      %v1831 = vmul.f32 %v1808, %v1822
      %v1832 = vmul.f32 %v1809, %v1822
      %v1833 = vmul.f32 %v1810, %v1822
      %v1834 = vmul.f32 %v1811, %v1822
      %v1835 = vmul.f32 %v1812, %v1822
      %v1836 = vmul.f32 %v1813, %v1822
      %v1837 = vmul.f32 %v1814, %v1822
      %v1838 = vmul.f32 %v1815, %v1822
      %v1839 = vmul.f32 %v1816, %v1822
      %v1840 = vld [vmem:[%s3] sm:$0x1]
      %v1842 = vlaneseq
      %v1843 = vshrl.u32 %v1842, 7
      %v1844 = vsub.s32 0, %v1843
      %v1845 = vrot.slane %v1840, %v1844
      %v1847 = vadd.f32 %v1824, %v1845
      %v1848 = vadd.f32 %v1825, %v1845
      %v1849 = vadd.f32 %v1826, %v1845
      %v1850 = vadd.f32 %v1827, %v1845
      %v1851 = vadd.f32 %v1828, %v1845
      %v1852 = vadd.f32 %v1829, %v1845
      %v1853 = vadd.f32 %v1830, %v1845
      %v1854 = vadd.f32 %v1831, %v1845
      %v1855 = vadd.f32 %v1832, %v1845
      %v1856 = vadd.f32 %v1833, %v1845
      %v1857 = vadd.f32 %v1834, %v1845
      %v1858 = vadd.f32 %v1835, %v1845
      %v1859 = vadd.f32 %v1836, %v1845
      %v1860 = vadd.f32 %v1837, %v1845
      %v1861 = vadd.f32 %v1838, %v1845
      %v1862 = vadd.f32 %v1839, %v1845
      %v1863 = vmul.f32 %v1847, 0.2
      %v1864 = vmul.f32 %v1848, 0.2
      %v1865 = vmul.f32 %v1849, 0.2
      %v1866 = vmul.f32 %v1850, 0.2
      %v1867 = vmul.f32 %v1851, 0.2
      %v1868 = vmul.f32 %v1852, 0.2
      %v1869 = vmul.f32 %v1853, 0.2
      %v1870 = vmul.f32 %v1854, 0.2
      %v1871 = vmul.f32 %v1855, 0.2
      %v1872 = vmul.f32 %v1856, 0.2
      %v1873 = vmul.f32 %v1857, 0.2
      %v1874 = vmul.f32 %v1858, 0.2
      %v1875 = vmul.f32 %v1859, 0.2
      %v1876 = vmul.f32 %v1860, 0.2
      %v1877 = vmul.f32 %v1861, 0.2
      %v1878 = vmul.f32 %v1862, 0.2
      %v1879 = vmax.f32 %v1847, %v1863
      %v1880 = vmax.f32 %v1848, %v1864
      %v1881 = vmax.f32 %v1849, %v1865
      %v1882 = vmax.f32 %v1850, %v1866
      %v1883 = vmax.f32 %v1851, %v1867
      %v1884 = vmax.f32 %v1852, %v1868
      %v1885 = vmax.f32 %v1853, %v1869
      %v1886 = vmax.f32 %v1854, %v1870
      %v1887 = vmax.f32 %v1855, %v1871
      %v1888 = vmax.f32 %v1856, %v1872
      %v1889 = vmax.f32 %v1857, %v1873
      %v1890 = vmax.f32 %v1858, %v1874
      %v1891 = vmax.f32 %v1859, %v1875
      %v1892 = vmax.f32 %v1860, %v1876
      %v1893 = vmax.f32 %v1861, %v1877
      %v1894 = vmax.f32 %v1862, %v1878
      %v1895 = vpack.c.bf16 %v1880, %v1879
      %v1896 = vpack.c.bf16 %v1882, %v1881
      %v1897 = vpack.c.bf16 %v1884, %v1883
      %v1898 = vpack.c.bf16 %v1886, %v1885
      %v1899 = vpack.c.bf16 %v1888, %v1887
      %v1900 = vpack.c.bf16 %v1890, %v1889
      %v1901 = vpack.c.bf16 %v1892, %v1891
      %v1902 = vpack.c.bf16 %v1894, %v1893
      %v1911 = vunpack.c.l.b16 %v1895
      %v1912 = vunpack.c.h.b16 %v1895
      %v1913 = vunpack.c.l.b16 %v1896
      %v1914 = vunpack.c.h.b16 %v1896
      %v1915 = vunpack.c.l.b16 %v1897
      %v1916 = vunpack.c.h.b16 %v1897
      %v1917 = vunpack.c.l.b16 %v1898
      %v1918 = vunpack.c.h.b16 %v1898
      %v1919 = vunpack.c.l.b16 %v1899
      %v1920 = vunpack.c.h.b16 %v1899
      %v1921 = vunpack.c.l.b16 %v1900
      %v1922 = vunpack.c.h.b16 %v1900
      %v1923 = vunpack.c.l.b16 %v1901
      %v1924 = vunpack.c.h.b16 %v1901
      %v1925 = vunpack.c.l.b16 %v1902
      %v1926 = vunpack.c.h.b16 %v1902
      %v1927 = vpack.c.b16 %v1911, %v1911
      %v1928 = vpack.c.b16 %v1912, %v1912
      %v1929 = vpack.c.b16 %v1913, %v1913
      %v1930 = vpack.c.b16 %v1914, %v1914
      %v1931 = vpack.c.b16 %v1915, %v1915
      %v1932 = vpack.c.b16 %v1916, %v1916
      %v1933 = vpack.c.b16 %v1917, %v1917
      %v1934 = vpack.c.b16 %v1918, %v1918
      %v1935 = vpack.c.b16 %v1919, %v1919
      %v1936 = vpack.c.b16 %v1920, %v1920
      %v1937 = vpack.c.b16 %v1921, %v1921
      %v1938 = vpack.c.b16 %v1922, %v1922
      %v1939 = vpack.c.b16 %v1923, %v1923
      %v1940 = vpack.c.b16 %v1924, %v1924
      %v1941 = vpack.c.b16 %v1925, %v1925
      %v1942 = vpack.c.b16 %v1926, %v1926
      %vm1959 = vcmask 60416
      %1960 = vst.msk [vmem:[%s235] sm:$0xf] %vm1959, %v1927
      %1961 = vst.msk [vmem:[%s235 + $0x4] sm:$0xf] %vm1959, %v1928
      %1962 = vst.msk [vmem:[%s235 + $0x8] sm:$0xf] %vm1959, %v1929
      %1963 = vst.msk [vmem:[%s235 + $0xc] sm:$0xf] %vm1959, %v1930
      %1964 = vst.msk [vmem:[%s235 + $0x10] sm:$0xf] %vm1959, %v1931
      %1965 = vst.msk [vmem:[%s235 + $0x14] sm:$0xf] %vm1959, %v1932
      %1966 = vst.msk [vmem:[%s235 + $0x18] sm:$0xf] %vm1959, %v1933
      %1967 = vst.msk [vmem:[%s235 + $0x1c] sm:$0xf] %vm1959, %v1934
      %1968 = vst.msk [vmem:[%s235 + $0x20] sm:$0xf] %vm1959, %v1935
      %1969 = vst.msk [vmem:[%s235 + $0x24] sm:$0xf] %vm1959, %v1936
      %1970 = vst.msk [vmem:[%s235 + $0x28] sm:$0xf] %vm1959, %v1937
      %1971 = vst.msk [vmem:[%s235 + $0x2c] sm:$0xf] %vm1959, %v1938
      %1972 = vst.msk [vmem:[%s235 + $0x30] sm:$0xf] %vm1959, %v1939
      %1973 = vst.msk [vmem:[%s235 + $0x34] sm:$0xf] %vm1959, %v1940
      %1974 = vst.msk [vmem:[%s235 + $0x38] sm:$0xf] %vm1959, %v1941
      %1975 = vst.msk [vmem:[%s235 + $0x3c] sm:$0xf] %vm1959, %v1942
      %s1976 = smul.u32 8, %s20
      %p1977 = scmp.lt.s32.totalorder %s19, 1
      %s1978 = scalar_select %p1977, %s19, 1
      %p1979 = scmp.lt.s32.totalorder %s1976, 15
      %s1980 = scalar_select %p1979, %s1976, 15
      %s1981 = smul.addr %s1980, 2
      %s1982 = smul.addr %s1978, 32
      %s1983 = sadd.s32 %s1981, %s1982
      %s1984 = smul.addr %s1983, 4
      %s1985 = scalar_lea.vmem %s4, %s1984
      // Predicated region
      $region37: #{conv_block_forward.3} parent=35 // pred_check
        %p1986 = pneg %p138
      $region38: #{conv_block_forward.3} parent=35 // pred_check_branch
        %1988 = sbr.rel (%p1986) target = $region40
      $region39: #{conv_block_forward.3} parent=35 // pred_region
        %s1989 = smul.u32 8, %s20
      $region40: #{conv_block_forward.3} parent=35 // pred_fallthru
        _
    $region36: #{conv_block_forward.3} parent=5 // pred_fallthru
      _
    %p1990 = scmp.le.s32.totalorder 2, %s10
    // Predicated region
    $region41: #{conv_block_forward.3} parent=5 // pred_check
      %p1991 = pneg %p1990
    $region42: #{conv_block_forward.3} parent=5 // pred_check_branch
      %1993 = sbr.rel (%p1991) target = $region44
    $region43: #{conv_block_forward.3} parent=5 // pred_region
      %s1994 = ssub.s32 %s10, 2
      // Predicated region
      $region45: #{conv_block_forward.3} parent=43 // pred_check
        %p1995 = pneg %p144
      $region46: #{conv_block_forward.3} parent=43 // pred_check_branch
        %1997 = sbr.rel (%p1995) target = $region48
      $region47: #{conv_block_forward.3} parent=43 // pred_region
        %s1998 = smul.u32 8, %s22
        %p1999 = scmp.lt.s32.totalorder %s21, 1
        %s2000 = scalar_select %p1999, %s21, 1
        %p2001 = scmp.lt.s32.totalorder %s1998, 15
        %s2002 = scalar_select %p2001, %s1998, 15
        %s2003 = smul.addr %s2002, 2
        %s2004 = smul.addr %s2000, 32
        %s2005 = sadd.s32 %s2003, %s2004
        %s2006 = smul.addr %s2005, 4
        %s2007 = scalar_lea.vmem %s4, %s2006
      $region48: #{conv_block_forward.3} parent=43 // pred_fallthru
        _
    $region44: #{conv_block_forward.3} parent=5 // pred_fallthru
      _
  $region6: #{conv_block_forward.3} parent=0 // loop_footer
    %s14 = sadd.s32 1, %s10
  $region7: #{conv_block_forward.3} parent=0 // loop_footer_branch
    %9 = sbr.rel target = $region3
  $region8: #{conv_block_forward.3} parent=0 // loop_exit
    _

// kernel: conv_block_forward.2
$region0: #{conv_block_forward.2}
  #allocation0 [shape = 'u32[]', space=smem, size = 0x4, offset = 0x4, fixed_abs, tag = 'smem constant byte address 0x4 - core index']
  #allocation1 [shape = 'u32[144,128]{1,0:T(1,128)}', space=vmem, size = 0x12000, scoped, tag = 'internal scratch']
  %s0 = inlined_call_operand.vmem [shape: bf16[2,2,10,18,4], index: 0, kind: input, shape index: {}]
  %s1 = inlined_call_operand.vmem [shape: bf16[9,4,8], index: 1, kind: input, shape index: {}]
  %s2 = inlined_call_operand.vmem [shape: f32[1,8], index: 2, kind: input, shape index: {}]
  %s3 = inlined_call_operand.vmem [shape: f32[1,8], index: 3, kind: input, shape index: {}]
  %s4 = inlined_call_operand.vmem [shape: bf16[2,16,16,8], index: 4, kind: output, shape index: {}]
  %s5 = sld [smem:[#allocation0]]
  $region49: #{conv_block_forward.2} parent=0
    _
  %s7 = ssub.s32 1, %s5
  %s8 = scalar_select 0, %s7, %s5
  loop: start=0, step=1, limit=6
  $region2: #{conv_block_forward.2} parent=0 // loop_pre_header
    _
  $region3: #{conv_block_forward.2} parent=0 // loop_header
    %s10 = sphi 0, %s14
    %p11 = scmp.ge.s32.totalorder %s10, 6
    %s17 = sphi 0, %s29
    %s18 = sphi 0, %s25
    %s19 = sphi 0, %s17
    %s20 = sphi 0, %s18
    %s21 = sphi 0, %s19
    %s22 = sphi 0, %s20
    %s34 = sphi 0, %s36
    %s37 = sphi 0, %s34
    %s38 = sphi 0, %s37
    %s54 = sphi 0, %s38
    %s58 = sphi 0, %s58
    %s60 = sphi 0, %s58
    %s61 = sphi 0, %s60
    %s75 = sphi 0, %s61
    %s79 = sphi 0, %s79
    %s81 = sphi 0, %s79
    %s82 = sphi 0, %s81
    %s96 = sphi 0, %s82
    %s100 = sphi 0, %s100
    %s102 = sphi 0, %s100
    %s103 = sphi 0, %s102
    %s117 = sphi 0, %s103
    %s125 = sphi 0, %s127
    %s128 = sphi 0, %s125
    %s129 = sphi 0, %s128
    %s145 = sphi 0, %s129
  $region4: #{conv_block_forward.2} parent=0 // loop_header_branch
    %13 = sbr.rel (%p11) target = $region8
  $region5: #{conv_block_forward.2} parent=0 // loop_body
    %s15 = ssub.s32 %s10, 1
    %s16 = ssub.s32 %s10, 2
    %s23 = sadd.s32 1, %s18
    %p24 = scmp.ge.s32.totalorder %s23, 2
    %s25 = scalar_select %p24, 0, %s23
    %s26 = sadd.s32 1, %s17
    %s27 = scalar_select %p24, %s26, %s17
    %p28 = scmp.ge.s32.totalorder %s27, 2
    %s29 = scalar_select %p28, 0, %s27
    %s30 = ssub.s32 %s17, %s29
    %s31 = ssub.s32 %s18, %s25
    %s32 = sor.u32 %s30, %s31
    %p33 = scmp.eq.s32.totalorder %s32, 0
    %s35 = sadd.s32 %s34, 1
    %s36 = scalar_select %p33, %s34, %s35
    %p39 = pneg %p33
    %p40 = scmp.eq.s32.totalorder %s10, 3
    %p41 = por %p39, %p40
    %p42 = scmp.ne.s32.totalorder %s34, %s37
    %p43 = scmp.eq.s32.totalorder %s10, 0
    %p44 = por %p42, %p43
    %p45 = scmp.ne.s32.totalorder %s34, %s37
    %p46 = scmp.eq.s32.totalorder %s15, 3
    %p47 = por %p45, %p46
    %p48 = scmp.ne.s32.totalorder %s37, %s38
    %p49 = scmp.eq.s32.totalorder %s15, 0
    %p50 = por %p48, %p49
    %p51 = scmp.ne.s32.totalorder %s37, %s38
    %p52 = scmp.eq.s32.totalorder %s16, 3
    %p53 = por %p51, %p52
    %p55 = scmp.ne.s32.totalorder %s38, %s54
    %p56 = scmp.eq.s32.totalorder %s16, 0
    %p57 = por %p55, %p56
    %s59 = sadd.s32 %s58, 1
    %p62 = scmp.eq.s32.totalorder %s10, 3
    %p63 = scmp.ne.s32.totalorder %s58, %s60
    %p64 = scmp.eq.s32.totalorder %s10, 0
    %p65 = por %p63, %p64
    %p66 = scmp.ne.s32.totalorder %s58, %s60
    %p67 = scmp.eq.s32.totalorder %s15, 3
    %p68 = por %p66, %p67
    %p69 = scmp.ne.s32.totalorder %s60, %s61
    %p70 = scmp.eq.s32.totalorder %s15, 0
    %p71 = por %p69, %p70
    %p72 = scmp.ne.s32.totalorder %s60, %s61
    %p73 = scmp.eq.s32.totalorder %s16, 3
    %p74 = por %p72, %p73
    %p76 = scmp.ne.s32.totalorder %s61, %s75
    %p77 = scmp.eq.s32.totalorder %s16, 0
    %p78 = por %p76, %p77
    %s80 = sadd.s32 %s79, 1
    %p83 = scmp.eq.s32.totalorder %s10, 3
    %p84 = scmp.ne.s32.totalorder %s79, %s81
    %p85 = scmp.eq.s32.totalorder %s10, 0
    %p86 = por %p84, %p85
    %p87 = scmp.ne.s32.totalorder %s79, %s81
    %p88 = scmp.eq.s32.totalorder %s15, 3
    %p89 = por %p87, %p88
    %p90 = scmp.ne.s32.totalorder %s81, %s82
    %p91 = scmp.eq.s32.totalorder %s15, 0
    %p92 = por %p90, %p91
    %p93 = scmp.ne.s32.totalorder %s81, %s82
    %p94 = scmp.eq.s32.totalorder %s16, 3
    %p95 = por %p93, %p94
    %p97 = scmp.ne.s32.totalorder %s82, %s96
    %p98 = scmp.eq.s32.totalorder %s16, 0
    %p99 = por %p97, %p98
    %s101 = sadd.s32 %s100, 1
    %p104 = scmp.eq.s32.totalorder %s10, 3
    %p105 = scmp.ne.s32.totalorder %s100, %s102
    %p106 = scmp.eq.s32.totalorder %s10, 0
    %p107 = por %p105, %p106
    %p108 = scmp.ne.s32.totalorder %s100, %s102
    %p109 = scmp.eq.s32.totalorder %s15, 3
    %p110 = por %p108, %p109
    %p111 = scmp.ne.s32.totalorder %s102, %s103
    %p112 = scmp.eq.s32.totalorder %s15, 0
    %p113 = por %p111, %p112
    %p114 = scmp.ne.s32.totalorder %s102, %s103
    %p115 = scmp.eq.s32.totalorder %s16, 3
    %p116 = por %p114, %p115
    %p118 = scmp.ne.s32.totalorder %s103, %s117
    %p119 = scmp.eq.s32.totalorder %s16, 0
    %p120 = por %p118, %p119
    %s121 = ssub.s32 %s17, %s29
    %s122 = ssub.s32 %s18, %s25
    %s123 = sor.u32 %s121, %s122
    %p124 = scmp.eq.s32.totalorder %s123, 0
    %s126 = sadd.s32 %s125, 1
    %s127 = scalar_select %p124, %s125, %s126
    %p130 = pneg %p124
    %p131 = scmp.eq.s32.totalorder %s10, 3
    %p132 = por %p130, %p131
    %p133 = scmp.ne.s32.totalorder %s125, %s128
    %p134 = scmp.eq.s32.totalorder %s10, 0
    %p135 = por %p133, %p134
    %p136 = scmp.ne.s32.totalorder %s125, %s128
    %p137 = scmp.eq.s32.totalorder %s15, 3
    %p138 = por %p136, %p137
    %p139 = scmp.ne.s32.totalorder %s128, %s129
    %p140 = scmp.eq.s32.totalorder %s15, 0
    %p141 = por %p139, %p140
    %p142 = scmp.ne.s32.totalorder %s128, %s129
    %p143 = scmp.eq.s32.totalorder %s16, 3
    %p144 = por %p142, %p143
    %p146 = scmp.ne.s32.totalorder %s129, %s145
    %p147 = scmp.eq.s32.totalorder %s16, 0
    %p148 = por %p146, %p147
    %p149 = scmp.le.s32.totalorder 1, %s10
    %p150 = scmp.lt.s32.totalorder %s10, 5
    %p151 = pnand %p149, %p150
    %p152 = pneg %p151
    // Predicated region
    $region9: #{conv_block_forward.2} parent=5 // pred_check
      _
    $region10: #{conv_block_forward.2} parent=5 // pred_check_branch
      %154 = sbr.rel (%p151) target = $region12
    $region11: #{conv_block_forward.2} parent=5 // pred_region
      %s155 = ssub.s32 %s10, 1
      // Predicated region
      $region13: #{conv_block_forward.2} parent=11 // pred_check
        %p156 = pneg %p71
      $region14: #{conv_block_forward.2} parent=11 // pred_check_branch
        %158 = sbr.rel (%p156) target = $region16
      $region15: #{conv_block_forward.2} parent=11 // pred_region
        _
      $region16: #{conv_block_forward.2} parent=11 // pred_fallthru
        _
      // Predicated region
      $region17: #{conv_block_forward.2} parent=11 // pred_check
        %p159 = pneg %p92
      $region18: #{conv_block_forward.2} parent=11 // pred_check_branch
        %161 = sbr.rel (%p159) target = $region20
      $region19: #{conv_block_forward.2} parent=11 // pred_region
        _
      $region20: #{conv_block_forward.2} parent=11 // pred_fallthru
        _
      // Predicated region
      $region21: #{conv_block_forward.2} parent=11 // pred_check
        %p162 = pneg %p113
      $region22: #{conv_block_forward.2} parent=11 // pred_check_branch
        %164 = sbr.rel (%p162) target = $region24
      $region23: #{conv_block_forward.2} parent=11 // pred_region
        _
      $region24: #{conv_block_forward.2} parent=11 // pred_fallthru
        _
    $region12: #{conv_block_forward.2} parent=5 // pred_fallthru
      _
    %p165 = scmp.lt.s32.totalorder %s10, 4
    // Predicated region
    $region25: #{conv_block_forward.2} parent=5 // pred_check
      %p166 = pneg %p165
    $region26: #{conv_block_forward.2} parent=5 // pred_check_branch
      %168 = sbr.rel (%p166) target = $region28
    $region27: #{conv_block_forward.2} parent=5 // pred_region
      // Predicated region
      $region29: #{conv_block_forward.2} parent=27 // pred_check
        %p169 = pneg %p44
      $region30: #{conv_block_forward.2} parent=27 // pred_check_branch
        %171 = sbr.rel (%p169) target = $region32
      $region31: #{conv_block_forward.2} parent=27 // pred_region
        %p172 = scmp.lt.s32.totalorder %s17, 1
        %s173 = scalar_select %p172, %s17, 1
        %p174 = scmp.lt.s32.totalorder %s18, 1
        %s175 = scalar_select %p174, %s18, 1
        %s176 = smul.addr %s175, 30
        %s177 = smul.addr %s173, 60
        %s178 = sadd.s32 %s176, %s177
        %s179 = smul.addr %s178, 4
        %s180 = scalar_lea.vmem %s0, %s179
      $region32: #{conv_block_forward.2} parent=27 // pred_fallthru
        _
    $region28: #{conv_block_forward.2} parent=5 // pred_fallthru
      _
    %p181 = scmp.le.s32.totalorder 1, %s10
    %p182 = scmp.lt.s32.totalorder %s10, 5
    %p183 = pnand %p181, %p182
    %p184 = pneg %p183
    // Predicated region
    $region33: #{conv_block_forward.2} parent=5 // pred_check
      _
    $region34: #{conv_block_forward.2} parent=5 // pred_check_branch
      %186 = sbr.rel (%p183) target = $region36
    $region35: #{conv_block_forward.2} parent=5 // pred_region
      %s187 = ssub.s32 %s10, 1
      %p188 = scmp.lt.s32.totalorder %s19, 1
      %s189 = scalar_select %p188, %s19, 1
      %p190 = scmp.lt.s32.totalorder %s20, 1
      %s191 = scalar_select %p190, %s20, 1
      %s192 = smul.addr %s191, 30
      %s193 = smul.addr %s189, 60
      %s194 = sadd.s32 %s192, %s193
      %s195 = smul.addr %s194, 4
      %s196 = scalar_lea.vmem %s0, %s195
      %p197 = pneg %p50
      %p198 = pneg %p47
      %p199 = pneg %p71
      %p200 = pneg %p68
      %p201 = pneg %p92
      %p202 = pneg %p89
      %p203 = pneg %p113
      %p204 = pneg %p110
      %p205 = pneg %p141
      %p206 = pneg %p138
      %s207 = smul.u32 8, %s20
      %p208 = scmp.lt.s32.totalorder %s19, 1
      %s209 = scalar_select %p208, %s19, 1
      %p210 = scmp.lt.s32.totalorder %s207, 15
      %s211 = scalar_select %p210, %s207, 15
      %s212 = smul.addr %s211, 2
      %s213 = smul.addr %s209, 32
      %s214 = sadd.s32 %s212, %s213
      %s215 = smul.addr %s214, 4
      %s216 = scalar_lea.vmem %s4, %s215
      %p217 = scmp.lt.s32.totalorder %s19, 1
      %s218 = scalar_select %p217, %s19, 1
      %p219 = scmp.lt.s32.totalorder %s20, 1
      %s220 = scalar_select %p219, %s20, 1
      %s221 = smul.addr %s220, 30
      %s222 = smul.addr %s218, 60
      %s223 = sadd.s32 %s221, %s222
      %s224 = smul.addr %s223, 4
      %s225 = scalar_lea.vmem %s0, %s224
      %s226 = smul.u32 8, %s20
      %p227 = scmp.lt.s32.totalorder %s19, 1
      %s228 = scalar_select %p227, %s19, 1
      %p229 = scmp.lt.s32.totalorder %s226, 15
      %s230 = scalar_select %p229, %s226, 15
      %s231 = smul.addr %s230, 2
      %s232 = smul.addr %s228, 32
      %s233 = sadd.s32 %s231, %s232
      %s234 = smul.addr %s233, 4
      %s235 = scalar_lea.vmem %s4, %s234
      %s236 = smul.u32 8, %s20
      %v238 = vld [vmem:[%s225] sm:$0xf]
      %v239 = vld [vmem:[%s225 + $0x4] sm:$0xf]
      %v240 = vld [vmem:[%s225 + $0x8] sm:$0x1]
      %v241 = vld [vmem:[%s225 + $0xc] sm:$0xf]
      %v242 = vld [vmem:[%s225 + $0x10] sm:$0xf]
      %v243 = vld [vmem:[%s225 + $0x14] sm:$0x1]
      %v244 = vld [vmem:[%s225 + $0x18] sm:$0xf]
      %v245 = vld [vmem:[%s225 + $0x1c] sm:$0xf]
      %v246 = vld [vmem:[%s225 + $0x20] sm:$0x1]
      %v247 = vld [vmem:[%s225 + $0x24] sm:$0xf]
      %v248 = vld [vmem:[%s225 + $0x28] sm:$0xf]
      %v249 = vld [vmem:[%s225 + $0x2c] sm:$0x1]
      %v250 = vld [vmem:[%s225 + $0x30] sm:$0xf]
      %v251 = vld [vmem:[%s225 + $0x34] sm:$0xf]
      %v252 = vld [vmem:[%s225 + $0x38] sm:$0x1]
      %v253 = vld [vmem:[%s225 + $0x3c] sm:$0xf]
      %v254 = vld [vmem:[%s225 + $0x40] sm:$0xf]
      %v255 = vld [vmem:[%s225 + $0x44] sm:$0x1]
      %v256 = vld [vmem:[%s225 + $0x48] sm:$0xf]
      %v257 = vld [vmem:[%s225 + $0x4c] sm:$0xf]
      %v258 = vld [vmem:[%s225 + $0x50] sm:$0x1]
      %v259 = vld [vmem:[%s225 + $0x54] sm:$0xf]
      %v260 = vld [vmem:[%s225 + $0x58] sm:$0xf]
      %v261 = vld [vmem:[%s225 + $0x5c] sm:$0x1]
      %v262 = vld [vmem:[%s225 + $0x60] sm:$0xf]
      %v263 = vld [vmem:[%s225 + $0x64] sm:$0xf]
      %v264 = vld [vmem:[%s225 + $0x68] sm:$0x1]
      %v265 = vld [vmem:[%s225 + $0x6c] sm:$0xf]
      %v266 = vld [vmem:[%s225 + $0x70] sm:$0xf]
      %v267 = vld [vmem:[%s225 + $0x74] sm:$0x1]
      %v268 = vld [vmem:[%s1] sm:$0x3]
      %v269 = vld [vmem:[%s1 + $0x2] sm:$0x3]
      %v270 = vld [vmem:[%s1 + $0x4] sm:$0x3]
      %v271 = vld [vmem:[%s1 + $0x6] sm:$0x3]
      %v272 = vld [vmem:[%s1 + $0x8] sm:$0x3]
      %v273 = vld [vmem:[%s1 + $0xa] sm:$0x3]
      %v274 = vld [vmem:[%s1 + $0xc] sm:$0x3]
      %v275 = vld [vmem:[%s1 + $0xe] sm:$0x3]
      %v276 = vld [vmem:[%s1 + $0x10] sm:$0x3]
      %vm277 = vsmask.f32 3328
      %vm278 = vsmask.f32 7440
      %vm279 = vmor %vm277, %vm278
      %v281 = vshrl.u32 %v238, 16
      %v283 = vrot.slane %v281, 4
      %v284 = vshll.u32 %v238, 16
      %v286 = vrot.slane %v284, 5
      %v287 = vor.u32 %v283, %v286
      %v288 = vrot.slane %v287, 4
      %v290 = vshll.u32 %v239, 16
      %v292 = vrot.slane %v290, 5
      %v293 = vsel %vm279, %v288, %v292
      %v294 = vshrl.u32 %v239, 16
      %v296 = vrot.slane %v294, 4
      %v297 = vor.u32 %v296, %v292
      %v298 = vrot.slane %v297, 4
      %v300 = vshll.u32 %v240, 16
      %v302 = vrot.slane %v300, 5
      %v303 = vsel %vm279, %v298, %v302
      %v305 = vshrl.u32 %v241, 16
      %v307 = vrot.slane %v305, 4
      %v308 = vshll.u32 %v241, 16
      %v310 = vrot.slane %v308, 5
      %v311 = vor.u32 %v307, %v310
      %v312 = vrot.slane %v311, 4
      %v314 = vshll.u32 %v242, 16
      %v316 = vrot.slane %v314, 5
      %v317 = vsel %vm279, %v312, %v316
      %v318 = vshrl.u32 %v242, 16
      %v320 = vrot.slane %v318, 4
      %v321 = vor.u32 %v320, %v316
      %v322 = vrot.slane %v321, 4
      %v324 = vshll.u32 %v243, 16
      %v326 = vrot.slane %v324, 5
      %v327 = vsel %vm279, %v322, %v326
      %v329 = vshrl.u32 %v244, 16
      %v331 = vrot.slane %v329, 4
      %v332 = vshll.u32 %v244, 16
      %v334 = vrot.slane %v332, 5
      %v335 = vor.u32 %v331, %v334
      %v336 = vrot.slane %v335, 4
      %v338 = vshll.u32 %v245, 16
      %v340 = vrot.slane %v338, 5
      %v341 = vsel %vm279, %v336, %v340
      %v342 = vshrl.u32 %v245, 16
      %v344 = vrot.slane %v342, 4
      %v345 = vor.u32 %v344, %v340
      %v346 = vrot.slane %v345, 4
      %v348 = vshll.u32 %v246, 16
      %v350 = vrot.slane %v348, 5
      %v351 = vsel %vm279, %v346, %v350
      %v353 = vshrl.u32 %v247, 16
      %v355 = vrot.slane %v353, 4
      %v356 = vshll.u32 %v247, 16
      %v358 = vrot.slane %v356, 5
      %v359 = vor.u32 %v355, %v358
      %v360 = vrot.slane %v359, 4
      %v362 = vshll.u32 %v248, 16
      %v364 = vrot.slane %v362, 5
      %v365 = vsel %vm279, %v360, %v364
      %v366 = vshrl.u32 %v248, 16
      %v368 = vrot.slane %v366, 4
      %v369 = vor.u32 %v368, %v364
      %v370 = vrot.slane %v369, 4
      %v372 = vshll.u32 %v249, 16
      %v374 = vrot.slane %v372, 5
      %v375 = vsel %vm279, %v370, %v374
      %v377 = vshrl.u32 %v250, 16
      %v379 = vrot.slane %v377, 4
      %v380 = vshll.u32 %v250, 16
      %v382 = vrot.slane %v380, 5
      %v383 = vor.u32 %v379, %v382
      %v384 = vrot.slane %v383, 4
      %v386 = vshll.u32 %v251, 16
      %v388 = vrot.slane %v386, 5
      %v389 = vsel %vm279, %v384, %v388
      %v390 = vshrl.u32 %v251, 16
      %v392 = vrot.slane %v390, 4
      %v393 = vor.u32 %v392, %v388
      %v394 = vrot.slane %v393, 4
      %v396 = vshll.u32 %v252, 16
      %v398 = vrot.slane %v396, 5
      %v399 = vsel %vm279, %v394, %v398
      %v401 = vshrl.u32 %v253, 16
      %v403 = vrot.slane %v401, 4
      %v404 = vshll.u32 %v253, 16
      %v406 = vrot.slane %v404, 5
      %v407 = vor.u32 %v403, %v406
      %v408 = vrot.slane %v407, 4
      %v410 = vshll.u32 %v254, 16
      %v412 = vrot.slane %v410, 5
      %v413 = vsel %vm279, %v408, %v412
      %v414 = vshrl.u32 %v254, 16
      %v416 = vrot.slane %v414, 4
      %v417 = vor.u32 %v416, %v412
      %v418 = vrot.slane %v417, 4
      %v420 = vshll.u32 %v255, 16
      %v422 = vrot.slane %v420, 5
      %v423 = vsel %vm279, %v418, %v422
      %v425 = vshrl.u32 %v256, 16
      %v427 = vrot.slane %v425, 4
      %v428 = vshll.u32 %v256, 16
      %v430 = vrot.slane %v428, 5
      %v431 = vor.u32 %v427, %v430
      %v432 = vrot.slane %v431, 4
      %v434 = vshll.u32 %v257, 16
      %v436 = vrot.slane %v434, 5
      %v437 = vsel %vm279, %v432, %v436
      %v438 = vshrl.u32 %v257, 16
      %v440 = vrot.slane %v438, 4
      %v441 = vor.u32 %v440, %v436
      %v442 = vrot.slane %v441, 4
      %v444 = vshll.u32 %v258, 16
      %v446 = vrot.slane %v444, 5
      %v447 = vsel %vm279, %v442, %v446
      %v449 = vshrl.u32 %v259, 16
      %v451 = vrot.slane %v449, 4
      %v452 = vshll.u32 %v259, 16
      %v454 = vrot.slane %v452, 5
      %v455 = vor.u32 %v451, %v454
      %v456 = vrot.slane %v455, 4
      %v458 = vshll.u32 %v260, 16
      %v460 = vrot.slane %v458, 5
      %v461 = vsel %vm279, %v456, %v460
      %v462 = vshrl.u32 %v260, 16
      %v464 = vrot.slane %v462, 4
      %v465 = vor.u32 %v464, %v460
      %v466 = vrot.slane %v465, 4
      %v468 = vshll.u32 %v261, 16
      %v470 = vrot.slane %v468, 5
      %v471 = vsel %vm279, %v466, %v470
      %v472 = vunpack.c.l.b16 %v293
      %v473 = vunpack.c.l.b16 %v303
      %v474 = vunpack.c.l.b16 %v317
      %v475 = vunpack.c.l.b16 %v327
      %v476 = vunpack.c.l.b16 %v341
      %v477 = vunpack.c.l.b16 %v351
      %v478 = vunpack.c.l.b16 %v365
      %v479 = vunpack.c.l.b16 %v375
      %v480 = vunpack.c.l.b16 %v389
      %v481 = vunpack.c.l.b16 %v399
      %v482 = vunpack.c.l.b16 %v413
      %v483 = vunpack.c.l.b16 %v423
      %v484 = vunpack.c.l.b16 %v437
      %v485 = vunpack.c.l.b16 %v447
      %v486 = vunpack.c.l.b16 %v461
      %v487 = vunpack.c.l.b16 %v471
      %v488 = vpack.c.b16 %v473, %v472
      %v489 = vpack.c.b16 %v475, %v474
      %v490 = vpack.c.b16 %v477, %v476
      %v491 = vpack.c.b16 %v479, %v478
      %v492 = vpack.c.b16 %v481, %v480
      %v493 = vpack.c.b16 %v483, %v482
      %v494 = vpack.c.b16 %v485, %v484
      %v495 = vpack.c.b16 %v487, %v486
      %vm496 = vcmask 31744
      %v498 = vsel %vm496, %v488, 0
      %v501 = vsel %vm496, %v489, 0
      %v504 = vsel %vm496, %v490, 0
      %v507 = vsel %vm496, %v491, 0
      %v510 = vsel %vm496, %v492, 0
      %v513 = vsel %vm496, %v493, 0
      %v516 = vsel %vm496, %v494, 0
      %v519 = vsel %vm496, %v495, 0
      %vm521 = vcmask 1041408
      %v523 = vsel %vm521, %v269, 0
      %525 = vmatprep.subr.bf16.mxu0 0
      %526 = vmatpush1.bf16.msra.mxu0 0
      %527 = vmatprep.subr.bf16.mxu0 0
      %528 = vmatpush1.bf16.msra.mxu0 0
      %529 = vmatprep.subr.bf16.mxu0 0
      %530 = vmatpush1.bf16.msra.mxu0 0
      %531 = vmatprep.subr.bf16.mxu0 0
      %532 = vmatpush1.bf16.msra.mxu0 0
      %533 = vmatprep.subr.bf16.mxu0 0
      %534 = vmatpush1.bf16.msra.mxu0 0
      %535 = vmatprep.subr.bf16.mxu0 0
      %536 = vmatpush1.bf16.msra.mxu0 0
      %537 = vmatprep.subr.bf16.mxu0 0
      %538 = vmatpush1.bf16.msra.mxu0 0
      %539 = vmatprep.subr.bf16.mxu0 0
      %540 = vmatpush1.bf16.msra.mxu0 %v523
      %541 = vmatprep.subr.bf16.mxu0 0
      %542 = vmatpush2.bf16.msra.mxu0 0
      %543 = vmatprep.subr.bf16.mxu0 0
      %544 = vmatpush2.bf16.msra.mxu0 0
      %545 = vmatprep.subr.bf16.mxu0 0
      %546 = vmatpush2.bf16.msra.mxu0 0
      %547 = vmatprep.subr.bf16.mxu0 0
      %548 = vmatpush2.bf16.msra.mxu0 0
      %549 = vmatprep.subr.bf16.mxu0 0
      %550 = vmatpush2.bf16.msra.mxu0 0
      %551 = vmatprep.subr.bf16.mxu0 0
      %552 = vmatpush2.bf16.msra.mxu0 0
      %553 = vmatprep.subr.bf16.mxu0 0
      %554 = vmatpush2.bf16.msra.mxu0 0
      %555 = vmatprep.subr.bf16.mxu0 0
      %556 = vmatpush2.bf16.msra.mxu0 0
      %557 = vmatprep.mubr.bf16.mxu0 0
      %558 = vmatmul.mubr.bf16.gmra.mxu0 %v498
      %v559 = vpop.f32.mrf.mxu0
      %v560 = vadd.f32 0.0, %v559
      %v561 = vpop.f32.mrf.mxu0
      %v562 = vpop.f32.mrf.mxu0
      %v563 = vadd.f32 0.0, %v562
      %v564 = vpop.f32.mrf.mxu0
      %565 = vmatprep.mubr.bf16.mxu0 0
      %566 = vmatmul.mubr.bf16.gmra.mxu0 %v501
      %v567 = vpop.f32.mrf.mxu0
      %v568 = vadd.f32 0.0, %v567
      %v569 = vpop.f32.mrf.mxu0
      %v570 = vpop.f32.mrf.mxu0
      %v571 = vadd.f32 0.0, %v570
      %v572 = vpop.f32.mrf.mxu0
      %573 = vmatprep.mubr.bf16.mxu0 0
      %574 = vmatmul.mubr.bf16.gmra.mxu0 %v504
      %v575 = vpop.f32.mrf.mxu0
      %v576 = vadd.f32 0.0, %v575
      %v577 = vpop.f32.mrf.mxu0
      %v578 = vpop.f32.mrf.mxu0
      %v579 = vadd.f32 0.0, %v578
      %v580 = vpop.f32.mrf.mxu0
      %581 = vmatprep.mubr.bf16.mxu0 0
      %582 = vmatmul.mubr.bf16.gmra.mxu0 %v507
      %v583 = vpop.f32.mrf.mxu0
      %v584 = vadd.f32 0.0, %v583
      %v585 = vpop.f32.mrf.mxu0
      %v586 = vpop.f32.mrf.mxu0
      %v587 = vadd.f32 0.0, %v586
      %v588 = vpop.f32.mrf.mxu0
      %589 = vmatprep.mubr.bf16.mxu0 0
      %590 = vmatmul.mubr.bf16.gmra.mxu0 %v510
      %v591 = vpop.f32.mrf.mxu0
      %v592 = vadd.f32 0.0, %v591
      %v593 = vpop.f32.mrf.mxu0
      %v594 = vpop.f32.mrf.mxu0
      %v595 = vadd.f32 0.0, %v594
      %v596 = vpop.f32.mrf.mxu0
      %597 = vmatprep.mubr.bf16.mxu0 0
      %598 = vmatmul.mubr.bf16.gmra.mxu0 %v513
      %v599 = vpop.f32.mrf.mxu0
      %v600 = vadd.f32 0.0, %v599
      %v601 = vpop.f32.mrf.mxu0
      %v602 = vpop.f32.mrf.mxu0
      %v603 = vadd.f32 0.0, %v602
      %v604 = vpop.f32.mrf.mxu0
      %605 = vmatprep.mubr.bf16.mxu0 0
      %606 = vmatmul.mubr.bf16.gmra.mxu0 %v516
      %v607 = vpop.f32.mrf.mxu0
      %v608 = vadd.f32 0.0, %v607
      %v609 = vpop.f32.mrf.mxu0
      %v610 = vpop.f32.mrf.mxu0
      %v611 = vadd.f32 0.0, %v610
      %v612 = vpop.f32.mrf.mxu0
      %613 = vmatprep.mubr.bf16.mxu0 0
      %614 = vmatmul.mubr.bf16.gmra.mxu0 %v519
      %v615 = vpop.f32.mrf.mxu0
      %v616 = vadd.f32 0.0, %v615
      %v617 = vpop.f32.mrf.mxu0
      %v618 = vpop.f32.mrf.mxu0
      %v619 = vadd.f32 0.0, %v618
      %v620 = vpop.f32.mrf.mxu0
      %621 = vdwg.mxu0
      %v638 = vunpack.c.l.b16 %v238
      %v639 = vunpack.c.l.b16 %v239
      %v640 = vunpack.c.l.b16 %v241
      %v641 = vunpack.c.l.b16 %v242
      %v642 = vunpack.c.l.b16 %v244
      %v643 = vunpack.c.l.b16 %v245
      %v644 = vunpack.c.l.b16 %v247
      %v645 = vunpack.c.l.b16 %v248
      %v646 = vunpack.c.l.b16 %v250
      %v647 = vunpack.c.l.b16 %v251
      %v648 = vunpack.c.l.b16 %v253
      %v649 = vunpack.c.l.b16 %v254
      %v650 = vunpack.c.l.b16 %v256
      %v651 = vunpack.c.l.b16 %v257
      %v652 = vunpack.c.l.b16 %v259
      %v653 = vunpack.c.l.b16 %v260
      %v654 = vpack.c.b16 %v639, %v638
      %v655 = vpack.c.b16 %v641, %v640
      %v656 = vpack.c.b16 %v643, %v642
      %v657 = vpack.c.b16 %v645, %v644
      %v658 = vpack.c.b16 %v647, %v646
      %v659 = vpack.c.b16 %v649, %v648
      %v660 = vpack.c.b16 %v651, %v650
      %v661 = vpack.c.b16 %v653, %v652
      %v663 = vsel %vm496, %v654, 0
      %v666 = vsel %vm496, %v655, 0
      %v669 = vsel %vm496, %v656, 0
      %v672 = vsel %vm496, %v657, 0
      %v675 = vsel %vm496, %v658, 0
      %v678 = vsel %vm496, %v659, 0
      %v681 = vsel %vm496, %v660, 0
      %v684 = vsel %vm496, %v661, 0
      %v687 = vsel %vm521, %v268, 0
      %689 = vmatprep.subr.bf16.mxu0 0
      %690 = vmatpush1.bf16.msra.mxu0 0
      %691 = vmatprep.subr.bf16.mxu0 0
      %692 = vmatpush1.bf16.msra.mxu0 0
      %693 = vmatprep.subr.bf16.mxu0 0
      %694 = vmatpush1.bf16.msra.mxu0 0
      %695 = vmatprep.subr.bf16.mxu0 0
      %696 = vmatpush1.bf16.msra.mxu0 0
      %697 = vmatprep.subr.bf16.mxu0 0
      %698 = vmatpush1.bf16.msra.mxu0 0
      %699 = vmatprep.subr.bf16.mxu0 0
      %700 = vmatpush1.bf16.msra.mxu0 0
      %701 = vmatprep.subr.bf16.mxu0 0
      %702 = vmatpush1.bf16.msra.mxu0 0
      %703 = vmatprep.subr.bf16.mxu0 0
      %704 = vmatpush1.bf16.msra.mxu0 %v687
      %705 = vmatprep.subr.bf16.mxu0 0
      %706 = vmatpush2.bf16.msra.mxu0 0
      %707 = vmatprep.subr.bf16.mxu0 0
      %708 = vmatpush2.bf16.msra.mxu0 0
      %709 = vmatprep.subr.bf16.mxu0 0
      %710 = vmatpush2.bf16.msra.mxu0 0
      %711 = vmatprep.subr.bf16.mxu0 0
      %712 = vmatpush2.bf16.msra.mxu0 0
      %713 = vmatprep.subr.bf16.mxu0 0
      %714 = vmatpush2.bf16.msra.mxu0 0
      %715 = vmatprep.subr.bf16.mxu0 0
      %716 = vmatpush2.bf16.msra.mxu0 0
      %717 = vmatprep.subr.bf16.mxu0 0
      %718 = vmatpush2.bf16.msra.mxu0 0
      %719 = vmatprep.subr.bf16.mxu0 0
      %720 = vmatpush2.bf16.msra.mxu0 0
      %721 = vmatprep.mubr.bf16.mxu0 0
      %722 = vmatmul.mubr.bf16.gmra.mxu0 %v663
      %v723 = vpop.f32.mrf.mxu0
      %v724 = vadd.f32 %v560, %v723
      %v725 = vpop.f32.mrf.mxu0
      %v726 = vpop.f32.mrf.mxu0
      %v727 = vadd.f32 %v563, %v726
      %v728 = vpop.f32.mrf.mxu0
      %729 = vmatprep.mubr.bf16.mxu0 0
      %730 = vmatmul.mubr.bf16.gmra.mxu0 %v666
      %v731 = vpop.f32.mrf.mxu0
      %v732 = vadd.f32 %v568, %v731
      %v733 = vpop.f32.mrf.mxu0
      %v734 = vpop.f32.mrf.mxu0
      %v735 = vadd.f32 %v571, %v734
      %v736 = vpop.f32.mrf.mxu0
      %737 = vmatprep.mubr.bf16.mxu0 0
      %738 = vmatmul.mubr.bf16.gmra.mxu0 %v669
      %v739 = vpop.f32.mrf.mxu0
      %v740 = vadd.f32 %v576, %v739
      %v741 = vpop.f32.mrf.mxu0
      %v742 = vpop.f32.mrf.mxu0
      %v743 = vadd.f32 %v579, %v742
      %v744 = vpop.f32.mrf.mxu0
      %745 = vmatprep.mubr.bf16.mxu0 0
      %746 = vmatmul.mubr.bf16.gmra.mxu0 %v672
      %v747 = vpop.f32.mrf.mxu0
      %v748 = vadd.f32 %v584, %v747
      %v749 = vpop.f32.mrf.mxu0
      %v750 = vpop.f32.mrf.mxu0
      %v751 = vadd.f32 %v587, %v750
      %v752 = vpop.f32.mrf.mxu0
      %753 = vmatprep.mubr.bf16.mxu0 0
      %754 = vmatmul.mubr.bf16.gmra.mxu0 %v675
      %v755 = vpop.f32.mrf.mxu0
      %v756 = vadd.f32 %v592, %v755
      %v757 = vpop.f32.mrf.mxu0
      %v758 = vpop.f32.mrf.mxu0
      %v759 = vadd.f32 %v595, %v758
      %v760 = vpop.f32.mrf.mxu0
      %761 = vmatprep.mubr.bf16.mxu0 0
      %762 = vmatmul.mubr.bf16.gmra.mxu0 %v678
      %v763 = vpop.f32.mrf.mxu0
      %v764 = vadd.f32 %v600, %v763
      %v765 = vpop.f32.mrf.mxu0
      %v766 = vpop.f32.mrf.mxu0
      %v767 = vadd.f32 %v603, %v766
      %v768 = vpop.f32.mrf.mxu0
      %769 = vmatprep.mubr.bf16.mxu0 0
      %770 = vmatmul.mubr.bf16.gmra.mxu0 %v681
      %v771 = vpop.f32.mrf.mxu0
      %v772 = vadd.f32 %v608, %v771
      %v773 = vpop.f32.mrf.mxu0
      %v774 = vpop.f32.mrf.mxu0
      %v775 = vadd.f32 %v611, %v774
      %v776 = vpop.f32.mrf.mxu0
      %777 = vmatprep.mubr.bf16.mxu0 0
      %778 = vmatmul.mubr.bf16.gmra.mxu0 %v684
      %v779 = vpop.f32.mrf.mxu0
      %v780 = vadd.f32 %v616, %v779
      %v781 = vpop.f32.mrf.mxu0
      %v782 = vpop.f32.mrf.mxu0
      %v783 = vadd.f32 %v619, %v782
      %v784 = vpop.f32.mrf.mxu0
      %785 = vdwg.mxu0
      %vm794 = vcmask 1042432
      %vm795 = vcmask 1046532
      %vm796 = vmor %vm794, %vm795
      %v797 = vrot.slane %v238, 5
      %v798 = vrot.slane %v797, 4
      %v799 = vrot.slane %v239, 5
      %v800 = vsel %vm796, %v798, %v799
      %v801 = vrot.slane %v799, 4
      %v802 = vrot.slane %v240, 5
      %v803 = vsel %vm796, %v801, %v802
      %v804 = vrot.slane %v241, 5
      %v805 = vrot.slane %v804, 4
      %v806 = vrot.slane %v242, 5
      %v807 = vsel %vm796, %v805, %v806
      %v808 = vrot.slane %v806, 4
      %v809 = vrot.slane %v243, 5
      %v810 = vsel %vm796, %v808, %v809
      %v811 = vrot.slane %v244, 5
      %v812 = vrot.slane %v811, 4
      %v813 = vrot.slane %v245, 5
      %v814 = vsel %vm796, %v812, %v813
      %v815 = vrot.slane %v813, 4
      %v816 = vrot.slane %v246, 5
      %v817 = vsel %vm796, %v815, %v816
      %v818 = vrot.slane %v247, 5
      %v819 = vrot.slane %v818, 4
      %v820 = vrot.slane %v248, 5
      %v821 = vsel %vm796, %v819, %v820
      %v822 = vrot.slane %v820, 4
      %v823 = vrot.slane %v249, 5
      %v824 = vsel %vm796, %v822, %v823
      %v825 = vrot.slane %v250, 5
      %v826 = vrot.slane %v825, 4
      %v827 = vrot.slane %v251, 5
      %v828 = vsel %vm796, %v826, %v827
      %v829 = vrot.slane %v827, 4
      %v830 = vrot.slane %v252, 5
      %v831 = vsel %vm796, %v829, %v830
      %v832 = vrot.slane %v253, 5
      %v833 = vrot.slane %v832, 4
      %v834 = vrot.slane %v254, 5
      %v835 = vsel %vm796, %v833, %v834
      %v836 = vrot.slane %v834, 4
      %v837 = vrot.slane %v255, 5
      %v838 = vsel %vm796, %v836, %v837
      %v839 = vrot.slane %v256, 5
      %v840 = vrot.slane %v839, 4
      %v841 = vrot.slane %v257, 5
      %v842 = vsel %vm796, %v840, %v841
      %v843 = vrot.slane %v841, 4
      %v844 = vrot.slane %v258, 5
      %v845 = vsel %vm796, %v843, %v844
      %v846 = vrot.slane %v259, 5
      %v847 = vrot.slane %v846, 4
      %v848 = vrot.slane %v260, 5
      %v849 = vsel %vm796, %v847, %v848
      %v850 = vrot.slane %v848, 4
      %v851 = vrot.slane %v261, 5
      %v852 = vsel %vm796, %v850, %v851
      %v853 = vunpack.c.l.b16 %v800
      %v854 = vunpack.c.l.b16 %v803
      %v855 = vunpack.c.l.b16 %v807
      %v856 = vunpack.c.l.b16 %v810
      %v857 = vunpack.c.l.b16 %v814
      %v858 = vunpack.c.l.b16 %v817
      %v859 = vunpack.c.l.b16 %v821
      %v860 = vunpack.c.l.b16 %v824
      %v861 = vunpack.c.l.b16 %v828
      %v862 = vunpack.c.l.b16 %v831
      %v863 = vunpack.c.l.b16 %v835
      %v864 = vunpack.c.l.b16 %v838
      %v865 = vunpack.c.l.b16 %v842
      %v866 = vunpack.c.l.b16 %v845
      %v867 = vunpack.c.l.b16 %v849
      %v868 = vunpack.c.l.b16 %v852
      %v869 = vpack.c.b16 %v854, %v853
      %v870 = vpack.c.b16 %v856, %v855
      %v871 = vpack.c.b16 %v858, %v857
      %v872 = vpack.c.b16 %v860, %v859
      %v873 = vpack.c.b16 %v862, %v861
      %v874 = vpack.c.b16 %v864, %v863
      %v875 = vpack.c.b16 %v866, %v865
      %v876 = vpack.c.b16 %v868, %v867
      %v878 = vsel %vm496, %v869, 0
      %v881 = vsel %vm496, %v870, 0
      %v884 = vsel %vm496, %v871, 0
      %v887 = vsel %vm496, %v872, 0
      %v890 = vsel %vm496, %v873, 0
      %v893 = vsel %vm496, %v874, 0
      %v896 = vsel %vm496, %v875, 0
      %v899 = vsel %vm496, %v876, 0
      %v902 = vsel %vm521, %v270, 0
      %904 = vmatprep.subr.bf16.mxu0 0
      %905 = vmatpush1.bf16.msra.mxu0 0
      %906 = vmatprep.subr.bf16.mxu0 0
      %907 = vmatpush1.bf16.msra.mxu0 0
      %908 = vmatprep.subr.bf16.mxu0 0
      %909 = vmatpush1.bf16.msra.mxu0 0
      %910 = vmatprep.subr.bf16.mxu0 0
      %911 = vmatpush1.bf16.msra.mxu0 0
      %912 = vmatprep.subr.bf16.mxu0 0
      %913 = vmatpush1.bf16.msra.mxu0 0
      %914 = vmatprep.subr.bf16.mxu0 0
      %915 = vmatpush1.bf16.msra.mxu0 0
      %916 = vmatprep.subr.bf16.mxu0 0
      %917 = vmatpush1.bf16.msra.mxu0 0
      %918 = vmatprep.subr.bf16.mxu0 0
      %919 = vmatpush1.bf16.msra.mxu0 %v902
      %920 = vmatprep.subr.bf16.mxu0 0
      %921 = vmatpush2.bf16.msra.mxu0 0
      %922 = vmatprep.subr.bf16.mxu0 0
      %923 = vmatpush2.bf16.msra.mxu0 0
      %924 = vmatprep.subr.bf16.mxu0 0
      %925 = vmatpush2.bf16.msra.mxu0 0
      %926 = vmatprep.subr.bf16.mxu0 0
      %927 = vmatpush2.bf16.msra.mxu0 0
      %928 = vmatprep.subr.bf16.mxu0 0
      %929 = vmatpush2.bf16.msra.mxu0 0
      %930 = vmatprep.subr.bf16.mxu0 0
      %931 = vmatpush2.bf16.msra.mxu0 0
      %932 = vmatprep.subr.bf16.mxu0 0
      %933 = vmatpush2.bf16.msra.mxu0 0
      %934 = vmatprep.subr.bf16.mxu0 0
      %935 = vmatpush2.bf16.msra.mxu0 0
      %936 = vmatprep.mubr.bf16.mxu0 0
      %937 = vmatmul.mubr.bf16.gmra.mxu0 %v878
      %v938 = vpop.f32.mrf.mxu0
      %v939 = vadd.f32 0.0, %v938
      %v940 = vpop.f32.mrf.mxu0
      %v941 = vpop.f32.mrf.mxu0
      %v942 = vadd.f32 0.0, %v941
      %v943 = vpop.f32.mrf.mxu0
      %944 = vmatprep.mubr.bf16.mxu0 0
      %945 = vmatmul.mubr.bf16.gmra.mxu0 %v881
      %v946 = vpop.f32.mrf.mxu0
      %v947 = vadd.f32 0.0, %v946
      %v948 = vpop.f32.mrf.mxu0
      %v949 = vpop.f32.mrf.mxu0
      %v950 = vadd.f32 0.0, %v949
      %v951 = vpop.f32.mrf.mxu0
      %952 = vmatprep.mubr.bf16.mxu0 0
      %953 = vmatmul.mubr.bf16.gmra.mxu0 %v884
      %v954 = vpop.f32.mrf.mxu0
      %v955 = vadd.f32 0.0, %v954
      %v956 = vpop.f32.mrf.mxu0
      %v957 = vpop.f32.mrf.mxu0
      %v958 = vadd.f32 0.0, %v957
      %v959 = vpop.f32.mrf.mxu0
      %960 = vmatprep.mubr.bf16.mxu0 0
      %961 = vmatmul.mubr.bf16.gmra.mxu0 %v887
      %v962 = vpop.f32.mrf.mxu0
      %v963 = vadd.f32 0.0, %v962
      %v964 = vpop.f32.mrf.mxu0
      %v965 = vpop.f32.mrf.mxu0
      %v966 = vadd.f32 0.0, %v965
      %v967 = vpop.f32.mrf.mxu0
      %968 = vmatprep.mubr.bf16.mxu0 0
      %969 = vmatmul.mubr.bf16.gmra.mxu0 %v890
      %v970 = vpop.f32.mrf.mxu0
      %v971 = vadd.f32 0.0, %v970
      %v972 = vpop.f32.mrf.mxu0
      %v973 = vpop.f32.mrf.mxu0
      %v974 = vadd.f32 0.0, %v973
      %v975 = vpop.f32.mrf.mxu0
      %976 = vmatprep.mubr.bf16.mxu0 0
      %977 = vmatmul.mubr.bf16.gmra.mxu0 %v893
      %v978 = vpop.f32.mrf.mxu0
      %v979 = vadd.f32 0.0, %v978
      %v980 = vpop.f32.mrf.mxu0
      %v981 = vpop.f32.mrf.mxu0
      %v982 = vadd.f32 0.0, %v981
      %v983 = vpop.f32.mrf.mxu0
      %984 = vmatprep.mubr.bf16.mxu0 0
      %985 = vmatmul.mubr.bf16.gmra.mxu0 %v896
      %v986 = vpop.f32.mrf.mxu0
      %v987 = vadd.f32 0.0, %v986
      %v988 = vpop.f32.mrf.mxu0
      %v989 = vpop.f32.mrf.mxu0
      %v990 = vadd.f32 0.0, %v989
      %v991 = vpop.f32.mrf.mxu0
      %992 = vmatprep.mubr.bf16.mxu0 0
      %993 = vmatmul.mubr.bf16.gmra.mxu0 %v899
      %v994 = vpop.f32.mrf.mxu0
      %v995 = vadd.f32 0.0, %v994
      %v996 = vpop.f32.mrf.mxu0
      %v997 = vpop.f32.mrf.mxu0
      %v998 = vadd.f32 0.0, %v997
      %v999 = vpop.f32.mrf.mxu0
      %1000 = vdwg.mxu0
      %v1001 = vadd.f32 %v724, %v939
      %v1002 = vadd.f32 %v727, %v942
      %v1003 = vadd.f32 %v732, %v947
      %v1004 = vadd.f32 %v735, %v950
      %v1005 = vadd.f32 %v740, %v955
      %v1006 = vadd.f32 %v743, %v958
      %v1007 = vadd.f32 %v748, %v963
      %v1008 = vadd.f32 %v751, %v966
      %v1009 = vadd.f32 %v756, %v971
      %v1010 = vadd.f32 %v759, %v974
      %v1011 = vadd.f32 %v764, %v979
      %v1012 = vadd.f32 %v767, %v982
      %v1013 = vadd.f32 %v772, %v987
      %v1014 = vadd.f32 %v775, %v990
      %v1015 = vadd.f32 %v780, %v995
      %v1016 = vadd.f32 %v783, %v998
      %v1019 = vunpack.c.l.b16 %v262
      %v1020 = vunpack.c.l.b16 %v263
      %v1021 = vpack.c.b16 %v1020, %v1019
      %v1023 = vsel %vm496, %v1021, 0
      %v1026 = vsel %vm521, %v271, 0
      %1028 = vmatprep.subr.bf16.mxu0 0
      %1029 = vmatpush1.bf16.msra.mxu0 0
      %1030 = vmatprep.subr.bf16.mxu0 0
      %1031 = vmatpush1.bf16.msra.mxu0 0
      %1032 = vmatprep.subr.bf16.mxu0 0
      %1033 = vmatpush1.bf16.msra.mxu0 0
      %1034 = vmatprep.subr.bf16.mxu0 0
      %1035 = vmatpush1.bf16.msra.mxu0 0
      %1036 = vmatprep.subr.bf16.mxu0 0
      %1037 = vmatpush1.bf16.msra.mxu0 0
      %1038 = vmatprep.subr.bf16.mxu0 0
      %1039 = vmatpush1.bf16.msra.mxu0 0
      %1040 = vmatprep.subr.bf16.mxu0 0
      %1041 = vmatpush1.bf16.msra.mxu0 0
      %1042 = vmatprep.subr.bf16.mxu0 0
      %1043 = vmatpush1.bf16.msra.mxu0 %v1026
      %1044 = vmatprep.subr.bf16.mxu0 0
      %1045 = vmatpush2.bf16.msra.mxu0 0
      %1046 = vmatprep.subr.bf16.mxu0 0
      %1047 = vmatpush2.bf16.msra.mxu0 0
      %1048 = vmatprep.subr.bf16.mxu0 0
      %1049 = vmatpush2.bf16.msra.mxu0 0
      %1050 = vmatprep.subr.bf16.mxu0 0
      %1051 = vmatpush2.bf16.msra.mxu0 0
      %1052 = vmatprep.subr.bf16.mxu0 0
      %1053 = vmatpush2.bf16.msra.mxu0 0
      %1054 = vmatprep.subr.bf16.mxu0 0
      %1055 = vmatpush2.bf16.msra.mxu0 0
      %1056 = vmatprep.subr.bf16.mxu0 0
      %1057 = vmatpush2.bf16.msra.mxu0 0
      %1058 = vmatprep.subr.bf16.mxu0 0
      %1059 = vmatpush2.bf16.msra.mxu0 0
      %1060 = vmatprep.mubr.bf16.mxu0 0
      %1061 = vmatmul.mubr.bf16.gmra.mxu0 %v666
      %v1062 = vpop.f32.mrf.mxu0
      %v1063 = vadd.f32 0.0, %v1062
      %v1064 = vpop.f32.mrf.mxu0
      %v1065 = vpop.f32.mrf.mxu0
      %v1066 = vadd.f32 0.0, %v1065
      %v1067 = vpop.f32.mrf.mxu0
      %1068 = vmatprep.mubr.bf16.mxu0 0
      %1069 = vmatmul.mubr.bf16.gmra.mxu0 %v669
      %v1070 = vpop.f32.mrf.mxu0
      %v1071 = vadd.f32 0.0, %v1070
      %v1072 = vpop.f32.mrf.mxu0
      %v1073 = vpop.f32.mrf.mxu0
      %v1074 = vadd.f32 0.0, %v1073
      %v1075 = vpop.f32.mrf.mxu0
      %1076 = vmatprep.mubr.bf16.mxu0 0
      %1077 = vmatmul.mubr.bf16.gmra.mxu0 %v672
      %v1078 = vpop.f32.mrf.mxu0
      %v1079 = vadd.f32 0.0, %v1078
      %v1080 = vpop.f32.mrf.mxu0
      %v1081 = vpop.f32.mrf.mxu0
      %v1082 = vadd.f32 0.0, %v1081
      %v1083 = vpop.f32.mrf.mxu0
      %1084 = vmatprep.mubr.bf16.mxu0 0
      %1085 = vmatmul.mubr.bf16.gmra.mxu0 %v675
      %v1086 = vpop.f32.mrf.mxu0
      %v1087 = vadd.f32 0.0, %v1086
      %v1088 = vpop.f32.mrf.mxu0
      %v1089 = vpop.f32.mrf.mxu0
      %v1090 = vadd.f32 0.0, %v1089
      %v1091 = vpop.f32.mrf.mxu0
      %1092 = vmatprep.mubr.bf16.mxu0 0
      %1093 = vmatmul.mubr.bf16.gmra.mxu0 %v678
      %v1094 = vpop.f32.mrf.mxu0
      %v1095 = vadd.f32 0.0, %v1094
      %v1096 = vpop.f32.mrf.mxu0
      %v1097 = vpop.f32.mrf.mxu0
      %v1098 = vadd.f32 0.0, %v1097
      %v1099 = vpop.f32.mrf.mxu0
      %1100 = vmatprep.mubr.bf16.mxu0 0
      %1101 = vmatmul.mubr.bf16.gmra.mxu0 %v681
      %v1102 = vpop.f32.mrf.mxu0
      %v1103 = vadd.f32 0.0, %v1102
      %v1104 = vpop.f32.mrf.mxu0
      %v1105 = vpop.f32.mrf.mxu0
      %v1106 = vadd.f32 0.0, %v1105
      %v1107 = vpop.f32.mrf.mxu0
      %1108 = vmatprep.mubr.bf16.mxu0 0
      %1109 = vmatmul.mubr.bf16.gmra.mxu0 %v684
      %v1110 = vpop.f32.mrf.mxu0
      %v1111 = vadd.f32 0.0, %v1110
      %v1112 = vpop.f32.mrf.mxu0
      %v1113 = vpop.f32.mrf.mxu0
      %v1114 = vadd.f32 0.0, %v1113
      %v1115 = vpop.f32.mrf.mxu0
      %1116 = vmatprep.mubr.bf16.mxu0 0
      %1117 = vmatmul.mubr.bf16.gmra.mxu0 %v1023
      %v1118 = vpop.f32.mrf.mxu0
      %v1119 = vadd.f32 0.0, %v1118
      %v1120 = vpop.f32.mrf.mxu0
      %v1121 = vpop.f32.mrf.mxu0
      %v1122 = vadd.f32 0.0, %v1121
      %v1123 = vpop.f32.mrf.mxu0
      %1124 = vdwg.mxu0
      %v1125 = vadd.f32 %v1001, %v1063
      %v1126 = vadd.f32 %v1002, %v1066
      %v1127 = vadd.f32 %v1003, %v1071
      %v1128 = vadd.f32 %v1004, %v1074
      %v1129 = vadd.f32 %v1005, %v1079
      %v1130 = vadd.f32 %v1006, %v1082
      %v1131 = vadd.f32 %v1007, %v1087
      %v1132 = vadd.f32 %v1008, %v1090
      %v1133 = vadd.f32 %v1009, %v1095
      %v1134 = vadd.f32 %v1010, %v1098
      %v1135 = vadd.f32 %v1011, %v1103
      %v1136 = vadd.f32 %v1012, %v1106
      %v1137 = vadd.f32 %v1013, %v1111
      %v1138 = vadd.f32 %v1014, %v1114
      %v1139 = vadd.f32 %v1015, %v1119
      %v1140 = vadd.f32 %v1016, %v1122
      %v1142 = vshrl.u32 %v262, 16
      %v1144 = vrot.slane %v1142, 4
      %v1145 = vshll.u32 %v262, 16
      %v1147 = vrot.slane %v1145, 5
      %v1148 = vor.u32 %v1144, %v1147
      %v1149 = vrot.slane %v1148, 4
      %v1151 = vshll.u32 %v263, 16
      %v1153 = vrot.slane %v1151, 5
      %v1154 = vsel %vm279, %v1149, %v1153
      %v1155 = vshrl.u32 %v263, 16
      %v1157 = vrot.slane %v1155, 4
      %v1158 = vor.u32 %v1157, %v1153
      %v1159 = vrot.slane %v1158, 4
      %v1161 = vshll.u32 %v264, 16
      %v1163 = vrot.slane %v1161, 5
      %v1164 = vsel %vm279, %v1159, %v1163
      %v1165 = vunpack.c.l.b16 %v1154
      %v1166 = vunpack.c.l.b16 %v1164
      %v1167 = vpack.c.b16 %v1166, %v1165
      %v1169 = vsel %vm496, %v1167, 0
      %v1172 = vsel %vm521, %v272, 0
      %1174 = vmatprep.subr.bf16.mxu0 0
      %1175 = vmatpush1.bf16.msra.mxu0 0
      %1176 = vmatprep.subr.bf16.mxu0 0
      %1177 = vmatpush1.bf16.msra.mxu0 0
      %1178 = vmatprep.subr.bf16.mxu0 0
      %1179 = vmatpush1.bf16.msra.mxu0 0
      %1180 = vmatprep.subr.bf16.mxu0 0
      %1181 = vmatpush1.bf16.msra.mxu0 0
      %1182 = vmatprep.subr.bf16.mxu0 0
      %1183 = vmatpush1.bf16.msra.mxu0 0
      %1184 = vmatprep.subr.bf16.mxu0 0
      %1185 = vmatpush1.bf16.msra.mxu0 0
      %1186 = vmatprep.subr.bf16.mxu0 0
      %1187 = vmatpush1.bf16.msra.mxu0 0
      %1188 = vmatprep.subr.bf16.mxu0 0
      %1189 = vmatpush1.bf16.msra.mxu0 %v1172
      %1190 = vmatprep.subr.bf16.mxu0 0
      %1191 = vmatpush2.bf16.msra.mxu0 0
      %1192 = vmatprep.subr.bf16.mxu0 0
      %1193 = vmatpush2.bf16.msra.mxu0 0
      %1194 = vmatprep.subr.bf16.mxu0 0
      %1195 = vmatpush2.bf16.msra.mxu0 0
      %1196 = vmatprep.subr.bf16.mxu0 0
      %1197 = vmatpush2.bf16.msra.mxu0 0
      %1198 = vmatprep.subr.bf16.mxu0 0
      %1199 = vmatpush2.bf16.msra.mxu0 0
      %1200 = vmatprep.subr.bf16.mxu0 0
      %1201 = vmatpush2.bf16.msra.mxu0 0
      %1202 = vmatprep.subr.bf16.mxu0 0
      %1203 = vmatpush2.bf16.msra.mxu0 0
      %1204 = vmatprep.subr.bf16.mxu0 0
      %1205 = vmatpush2.bf16.msra.mxu0 0
      %1206 = vmatprep.mubr.bf16.mxu0 0
      %1207 = vmatmul.mubr.bf16.gmra.mxu0 %v501
      %v1208 = vpop.f32.mrf.mxu0
      %v1209 = vadd.f32 0.0, %v1208
      %v1210 = vpop.f32.mrf.mxu0
      %v1211 = vpop.f32.mrf.mxu0
      %v1212 = vadd.f32 0.0, %v1211
      %v1213 = vpop.f32.mrf.mxu0
      %1214 = vmatprep.mubr.bf16.mxu0 0
      %1215 = vmatmul.mubr.bf16.gmra.mxu0 %v504
      %v1216 = vpop.f32.mrf.mxu0
      %v1217 = vadd.f32 0.0, %v1216
      %v1218 = vpop.f32.mrf.mxu0
      %v1219 = vpop.f32.mrf.mxu0
      %v1220 = vadd.f32 0.0, %v1219
      %v1221 = vpop.f32.mrf.mxu0
      %1222 = vmatprep.mubr.bf16.mxu0 0
      %1223 = vmatmul.mubr.bf16.gmra.mxu0 %v507
      %v1224 = vpop.f32.mrf.mxu0
      %v1225 = vadd.f32 0.0, %v1224
      %v1226 = vpop.f32.mrf.mxu0
      %v1227 = vpop.f32.mrf.mxu0
      %v1228 = vadd.f32 0.0, %v1227
      %v1229 = vpop.f32.mrf.mxu0
      %1230 = vmatprep.mubr.bf16.mxu0 0
      %1231 = vmatmul.mubr.bf16.gmra.mxu0 %v510
      %v1232 = vpop.f32.mrf.mxu0
      %v1233 = vadd.f32 0.0, %v1232
      %v1234 = vpop.f32.mrf.mxu0
      %v1235 = vpop.f32.mrf.mxu0
      %v1236 = vadd.f32 0.0, %v1235
      %v1237 = vpop.f32.mrf.mxu0
      %1238 = vmatprep.mubr.bf16.mxu0 0
      %1239 = vmatmul.mubr.bf16.gmra.mxu0 %v513
      %v1240 = vpop.f32.mrf.mxu0
      %v1241 = vadd.f32 0.0, %v1240
      %v1242 = vpop.f32.mrf.mxu0
      %v1243 = vpop.f32.mrf.mxu0
      %v1244 = vadd.f32 0.0, %v1243
      %v1245 = vpop.f32.mrf.mxu0
      %1246 = vmatprep.mubr.bf16.mxu0 0
      %1247 = vmatmul.mubr.bf16.gmra.mxu0 %v516
      %v1248 = vpop.f32.mrf.mxu0
      %v1249 = vadd.f32 0.0, %v1248
      %v1250 = vpop.f32.mrf.mxu0
      %v1251 = vpop.f32.mrf.mxu0
      %v1252 = vadd.f32 0.0, %v1251
      %v1253 = vpop.f32.mrf.mxu0
      %1254 = vmatprep.mubr.bf16.mxu0 0
      %1255 = vmatmul.mubr.bf16.gmra.mxu0 %v519
      %v1256 = vpop.f32.mrf.mxu0
      %v1257 = vadd.f32 0.0, %v1256
      %v1258 = vpop.f32.mrf.mxu0
      %v1259 = vpop.f32.mrf.mxu0
      %v1260 = vadd.f32 0.0, %v1259
      %v1261 = vpop.f32.mrf.mxu0
      %1262 = vmatprep.mubr.bf16.mxu0 0
      %1263 = vmatmul.mubr.bf16.gmra.mxu0 %v1169
      %v1264 = vpop.f32.mrf.mxu0
      %v1265 = vadd.f32 0.0, %v1264
      %v1266 = vpop.f32.mrf.mxu0
      %v1267 = vpop.f32.mrf.mxu0
      %v1268 = vadd.f32 0.0, %v1267
      %v1269 = vpop.f32.mrf.mxu0
      %1270 = vdwg.mxu0
      %v1271 = vadd.f32 %v1125, %v1209
      %v1272 = vadd.f32 %v1126, %v1212
      %v1273 = vadd.f32 %v1127, %v1217
      %v1274 = vadd.f32 %v1128, %v1220
      %v1275 = vadd.f32 %v1129, %v1225
      %v1276 = vadd.f32 %v1130, %v1228
      %v1277 = vadd.f32 %v1131, %v1233
      %v1278 = vadd.f32 %v1132, %v1236
      %v1279 = vadd.f32 %v1133, %v1241
      %v1280 = vadd.f32 %v1134, %v1244
      %v1281 = vadd.f32 %v1135, %v1249
      %v1282 = vadd.f32 %v1136, %v1252
      %v1283 = vadd.f32 %v1137, %v1257
      %v1284 = vadd.f32 %v1138, %v1260
      %v1285 = vadd.f32 %v1139, %v1265
      %v1286 = vadd.f32 %v1140, %v1268
      %v1288 = vrot.slane %v262, 5
      %v1289 = vrot.slane %v1288, 4
      %v1290 = vrot.slane %v263, 5
      %v1291 = vsel %vm796, %v1289, %v1290
      %v1292 = vrot.slane %v1290, 4
      %v1293 = vrot.slane %v264, 5
      %v1294 = vsel %vm796, %v1292, %v1293
      %v1295 = vunpack.c.l.b16 %v1291
      %v1296 = vunpack.c.l.b16 %v1294
      %v1297 = vpack.c.b16 %v1296, %v1295
      %v1299 = vsel %vm496, %v1297, 0
      %v1302 = vsel %vm521, %v273, 0
      %1304 = vmatprep.subr.bf16.mxu0 0
      %1305 = vmatpush1.bf16.msra.mxu0 0
      %1306 = vmatprep.subr.bf16.mxu0 0
      %1307 = vmatpush1.bf16.msra.mxu0 0
      %1308 = vmatprep.subr.bf16.mxu0 0
      %1309 = vmatpush1.bf16.msra.mxu0 0
      %1310 = vmatprep.subr.bf16.mxu0 0
      %1311 = vmatpush1.bf16.msra.mxu0 0
      %1312 = vmatprep.subr.bf16.mxu0 0
      %1313 = vmatpush1.bf16.msra.mxu0 0
      %1314 = vmatprep.subr.bf16.mxu0 0
      %1315 = vmatpush1.bf16.msra.mxu0 0
      %1316 = vmatprep.subr.bf16.mxu0 0
      %1317 = vmatpush1.bf16.msra.mxu0 0
      %1318 = vmatprep.subr.bf16.mxu0 0
      %1319 = vmatpush1.bf16.msra.mxu0 %v1302
      %1320 = vmatprep.subr.bf16.mxu0 0
      %1321 = vmatpush2.bf16.msra.mxu0 0
      %1322 = vmatprep.subr.bf16.mxu0 0
      %1323 = vmatpush2.bf16.msra.mxu0 0
      %1324 = vmatprep.subr.bf16.mxu0 0
      %1325 = vmatpush2.bf16.msra.mxu0 0
      %1326 = vmatprep.subr.bf16.mxu0 0
      %1327 = vmatpush2.bf16.msra.mxu0 0
      %1328 = vmatprep.subr.bf16.mxu0 0
      %1329 = vmatpush2.bf16.msra.mxu0 0
      %1330 = vmatprep.subr.bf16.mxu0 0
      %1331 = vmatpush2.bf16.msra.mxu0 0
      %1332 = vmatprep.subr.bf16.mxu0 0
      %1333 = vmatpush2.bf16.msra.mxu0 0
      %1334 = vmatprep.subr.bf16.mxu0 0
      %1335 = vmatpush2.bf16.msra.mxu0 0
      %1336 = vmatprep.mubr.bf16.mxu0 0
      %1337 = vmatmul.mubr.bf16.gmra.mxu0 %v881
      %v1338 = vpop.f32.mrf.mxu0
      %v1339 = vadd.f32 0.0, %v1338
      %v1340 = vpop.f32.mrf.mxu0
      %v1341 = vpop.f32.mrf.mxu0
      %v1342 = vadd.f32 0.0, %v1341
      %v1343 = vpop.f32.mrf.mxu0
      %1344 = vmatprep.mubr.bf16.mxu0 0
      %1345 = vmatmul.mubr.bf16.gmra.mxu0 %v884
      %v1346 = vpop.f32.mrf.mxu0
      %v1347 = vadd.f32 0.0, %v1346
      %v1348 = vpop.f32.mrf.mxu0
      %v1349 = vpop.f32.mrf.mxu0
      %v1350 = vadd.f32 0.0, %v1349
      %v1351 = vpop.f32.mrf.mxu0
      %1352 = vmatprep.mubr.bf16.mxu0 0
      %1353 = vmatmul.mubr.bf16.gmra.mxu0 %v887
      %v1354 = vpop.f32.mrf.mxu0
      %v1355 = vadd.f32 0.0, %v1354
      %v1356 = vpop.f32.mrf.mxu0
      %v1357 = vpop.f32.mrf.mxu0
      %v1358 = vadd.f32 0.0, %v1357
      %v1359 = vpop.f32.mrf.mxu0
      %1360 = vmatprep.mubr.bf16.mxu0 0
      %1361 = vmatmul.mubr.bf16.gmra.mxu0 %v890
      %v1362 = vpop.f32.mrf.mxu0
      %v1363 = vadd.f32 0.0, %v1362
      %v1364 = vpop.f32.mrf.mxu0
      %v1365 = vpop.f32.mrf.mxu0
      %v1366 = vadd.f32 0.0, %v1365
      %v1367 = vpop.f32.mrf.mxu0
      %1368 = vmatprep.mubr.bf16.mxu0 0
      %1369 = vmatmul.mubr.bf16.gmra.mxu0 %v893
      %v1370 = vpop.f32.mrf.mxu0
      %v1371 = vadd.f32 0.0, %v1370
      %v1372 = vpop.f32.mrf.mxu0
      %v1373 = vpop.f32.mrf.mxu0
      %v1374 = vadd.f32 0.0, %v1373
      %v1375 = vpop.f32.mrf.mxu0
      %1376 = vmatprep.mubr.bf16.mxu0 0
      %1377 = vmatmul.mubr.bf16.gmra.mxu0 %v896
      %v1378 = vpop.f32.mrf.mxu0
      %v1379 = vadd.f32 0.0, %v1378
      %v1380 = vpop.f32.mrf.mxu0
      %v1381 = vpop.f32.mrf.mxu0
      %v1382 = vadd.f32 0.0, %v1381
      %v1383 = vpop.f32.mrf.mxu0
      %1384 = vmatprep.mubr.bf16.mxu0 0
      %1385 = vmatmul.mubr.bf16.gmra.mxu0 %v899
      %v1386 = vpop.f32.mrf.mxu0
      %v1387 = vadd.f32 0.0, %v1386
      %v1388 = vpop.f32.mrf.mxu0
      %v1389 = vpop.f32.mrf.mxu0
      %v1390 = vadd.f32 0.0, %v1389
      %v1391 = vpop.f32.mrf.mxu0
      %1392 = vmatprep.mubr.bf16.mxu0 0
      %1393 = vmatmul.mubr.bf16.gmra.mxu0 %v1299
      %v1394 = vpop.f32.mrf.mxu0
      %v1395 = vadd.f32 0.0, %v1394
      %v1396 = vpop.f32.mrf.mxu0
      %v1397 = vpop.f32.mrf.mxu0
      %v1398 = vadd.f32 0.0, %v1397
      %v1399 = vpop.f32.mrf.mxu0
      %1400 = vdwg.mxu0
      %v1401 = vadd.f32 %v1271, %v1339
      %v1402 = vadd.f32 %v1272, %v1342
      %v1403 = vadd.f32 %v1273, %v1347
      %v1404 = vadd.f32 %v1274, %v1350
      %v1405 = vadd.f32 %v1275, %v1355
      %v1406 = vadd.f32 %v1276, %v1358
      %v1407 = vadd.f32 %v1277, %v1363
      %v1408 = vadd.f32 %v1278, %v1366
      %v1409 = vadd.f32 %v1279, %v1371
      %v1410 = vadd.f32 %v1280, %v1374
      %v1411 = vadd.f32 %v1281, %v1379
      %v1412 = vadd.f32 %v1282, %v1382
      %v1413 = vadd.f32 %v1283, %v1387
      %v1414 = vadd.f32 %v1284, %v1390
      %v1415 = vadd.f32 %v1285, %v1395
      %v1416 = vadd.f32 %v1286, %v1398
      %v1419 = vunpack.c.l.b16 %v265
      %v1420 = vunpack.c.l.b16 %v266
      %v1421 = vpack.c.b16 %v1420, %v1419
      %v1423 = vsel %vm496, %v1421, 0
      %v1426 = vsel %vm521, %v274, 0
      %1428 = vmatprep.subr.bf16.mxu0 0
      %1429 = vmatpush1.bf16.msra.mxu0 0
      %1430 = vmatprep.subr.bf16.mxu0 0
      %1431 = vmatpush1.bf16.msra.mxu0 0
      %1432 = vmatprep.subr.bf16.mxu0 0
      %1433 = vmatpush1.bf16.msra.mxu0 0
      %1434 = vmatprep.subr.bf16.mxu0 0
      %1435 = vmatpush1.bf16.msra.mxu0 0
      %1436 = vmatprep.subr.bf16.mxu0 0
      %1437 = vmatpush1.bf16.msra.mxu0 0
      %1438 = vmatprep.subr.bf16.mxu0 0
      %1439 = vmatpush1.bf16.msra.mxu0 0
      %1440 = vmatprep.subr.bf16.mxu0 0
      %1441 = vmatpush1.bf16.msra.mxu0 0
      %1442 = vmatprep.subr.bf16.mxu0 0
      %1443 = vmatpush1.bf16.msra.mxu0 %v1426
      %1444 = vmatprep.subr.bf16.mxu0 0
      %1445 = vmatpush2.bf16.msra.mxu0 0
      %1446 = vmatprep.subr.bf16.mxu0 0
      %1447 = vmatpush2.bf16.msra.mxu0 0
      %1448 = vmatprep.subr.bf16.mxu0 0
      %1449 = vmatpush2.bf16.msra.mxu0 0
      %1450 = vmatprep.subr.bf16.mxu0 0
      %1451 = vmatpush2.bf16.msra.mxu0 0
      %1452 = vmatprep.subr.bf16.mxu0 0
      %1453 = vmatpush2.bf16.msra.mxu0 0
      %1454 = vmatprep.subr.bf16.mxu0 0
      %1455 = vmatpush2.bf16.msra.mxu0 0
      %1456 = vmatprep.subr.bf16.mxu0 0
      %1457 = vmatpush2.bf16.msra.mxu0 0
      %1458 = vmatprep.subr.bf16.mxu0 0
      %1459 = vmatpush2.bf16.msra.mxu0 0
      %1460 = vmatprep.mubr.bf16.mxu0 0
      %1461 = vmatmul.mubr.bf16.gmra.mxu0 %v669
      %v1462 = vpop.f32.mrf.mxu0
      %v1463 = vadd.f32 0.0, %v1462
      %v1464 = vpop.f32.mrf.mxu0
      %v1465 = vpop.f32.mrf.mxu0
      %v1466 = vadd.f32 0.0, %v1465
      %v1467 = vpop.f32.mrf.mxu0
      %1468 = vmatprep.mubr.bf16.mxu0 0
      %1469 = vmatmul.mubr.bf16.gmra.mxu0 %v672
      %v1470 = vpop.f32.mrf.mxu0
      %v1471 = vadd.f32 0.0, %v1470
      %v1472 = vpop.f32.mrf.mxu0
      %v1473 = vpop.f32.mrf.mxu0
      %v1474 = vadd.f32 0.0, %v1473
      %v1475 = vpop.f32.mrf.mxu0
      %1476 = vmatprep.mubr.bf16.mxu0 0
      %1477 = vmatmul.mubr.bf16.gmra.mxu0 %v675
      %v1478 = vpop.f32.mrf.mxu0
      %v1479 = vadd.f32 0.0, %v1478
      %v1480 = vpop.f32.mrf.mxu0
      %v1481 = vpop.f32.mrf.mxu0
      %v1482 = vadd.f32 0.0, %v1481
      %v1483 = vpop.f32.mrf.mxu0
      %1484 = vmatprep.mubr.bf16.mxu0 0
      %1485 = vmatmul.mubr.bf16.gmra.mxu0 %v678
      %v1486 = vpop.f32.mrf.mxu0
      %v1487 = vadd.f32 0.0, %v1486
      %v1488 = vpop.f32.mrf.mxu0
      %v1489 = vpop.f32.mrf.mxu0
      %v1490 = vadd.f32 0.0, %v1489
      %v1491 = vpop.f32.mrf.mxu0
      %1492 = vmatprep.mubr.bf16.mxu0 0
      %1493 = vmatmul.mubr.bf16.gmra.mxu0 %v681
      %v1494 = vpop.f32.mrf.mxu0
      %v1495 = vadd.f32 0.0, %v1494
      %v1496 = vpop.f32.mrf.mxu0
      %v1497 = vpop.f32.mrf.mxu0
      %v1498 = vadd.f32 0.0, %v1497
      %v1499 = vpop.f32.mrf.mxu0
      %1500 = vmatprep.mubr.bf16.mxu0 0
      %1501 = vmatmul.mubr.bf16.gmra.mxu0 %v684
      %v1502 = vpop.f32.mrf.mxu0
      %v1503 = vadd.f32 0.0, %v1502
      %v1504 = vpop.f32.mrf.mxu0
      %v1505 = vpop.f32.mrf.mxu0
      %v1506 = vadd.f32 0.0, %v1505
      %v1507 = vpop.f32.mrf.mxu0
      %1508 = vmatprep.mubr.bf16.mxu0 0
      %1509 = vmatmul.mubr.bf16.gmra.mxu0 %v1023
      %v1510 = vpop.f32.mrf.mxu0
      %v1511 = vadd.f32 0.0, %v1510
      %v1512 = vpop.f32.mrf.mxu0
      %v1513 = vpop.f32.mrf.mxu0
      %v1514 = vadd.f32 0.0, %v1513
      %v1515 = vpop.f32.mrf.mxu0
      %1516 = vmatprep.mubr.bf16.mxu0 0
      %1517 = vmatmul.mubr.bf16.gmra.mxu0 %v1423
      %v1518 = vpop.f32.mrf.mxu0
      %v1519 = vadd.f32 0.0, %v1518
      %v1520 = vpop.f32.mrf.mxu0
      %v1521 = vpop.f32.mrf.mxu0
      %v1522 = vadd.f32 0.0, %v1521
      %v1523 = vpop.f32.mrf.mxu0
      %1524 = vdwg.mxu0
      %v1525 = vadd.f32 %v1401, %v1463
      %v1526 = vadd.f32 %v1402, %v1466
      %v1527 = vadd.f32 %v1403, %v1471
      %v1528 = vadd.f32 %v1404, %v1474
      %v1529 = vadd.f32 %v1405, %v1479
      %v1530 = vadd.f32 %v1406, %v1482
      %v1531 = vadd.f32 %v1407, %v1487
      %v1532 = vadd.f32 %v1408, %v1490
      %v1533 = vadd.f32 %v1409, %v1495
      %v1534 = vadd.f32 %v1410, %v1498
      %v1535 = vadd.f32 %v1411, %v1503
      %v1536 = vadd.f32 %v1412, %v1506
      %v1537 = vadd.f32 %v1413, %v1511
      %v1538 = vadd.f32 %v1414, %v1514
      %v1539 = vadd.f32 %v1415, %v1519
      %v1540 = vadd.f32 %v1416, %v1522
      %v1542 = vshrl.u32 %v265, 16
      %v1544 = vrot.slane %v1542, 4
      %v1545 = vshll.u32 %v265, 16
      %v1547 = vrot.slane %v1545, 5
      %v1548 = vor.u32 %v1544, %v1547
      %v1549 = vrot.slane %v1548, 4
      %v1551 = vshll.u32 %v266, 16
      %v1553 = vrot.slane %v1551, 5
      %v1554 = vsel %vm279, %v1549, %v1553
      %v1555 = vshrl.u32 %v266, 16
      %v1557 = vrot.slane %v1555, 4
      %v1558 = vor.u32 %v1557, %v1553
      %v1559 = vrot.slane %v1558, 4
      %v1561 = vshll.u32 %v267, 16
      %v1563 = vrot.slane %v1561, 5
      %v1564 = vsel %vm279, %v1559, %v1563
      %v1565 = vunpack.c.l.b16 %v1554
      %v1566 = vunpack.c.l.b16 %v1564
      %v1567 = vpack.c.b16 %v1566, %v1565
      %v1569 = vsel %vm496, %v1567, 0
      %v1572 = vsel %vm521, %v275, 0
      %1574 = vmatprep.subr.bf16.mxu0 0
      %1575 = vmatpush1.bf16.msra.mxu0 0
      %1576 = vmatprep.subr.bf16.mxu0 0
      %1577 = vmatpush1.bf16.msra.mxu0 0
      %1578 = vmatprep.subr.bf16.mxu0 0
      %1579 = vmatpush1.bf16.msra.mxu0 0
      %1580 = vmatprep.subr.bf16.mxu0 0
      %1581 = vmatpush1.bf16.msra.mxu0 0
      %1582 = vmatprep.subr.bf16.mxu0 0
      %1583 = vmatpush1.bf16.msra.mxu0 0
      %1584 = vmatprep.subr.bf16.mxu0 0
      %1585 = vmatpush1.bf16.msra.mxu0 0
      %1586 = vmatprep.subr.bf16.mxu0 0
      %1587 = vmatpush1.bf16.msra.mxu0 0
      %1588 = vmatprep.subr.bf16.mxu0 0
      %1589 = vmatpush1.bf16.msra.mxu0 %v1572
      %1590 = vmatprep.subr.bf16.mxu0 0
      %1591 = vmatpush2.bf16.msra.mxu0 0
      %1592 = vmatprep.subr.bf16.mxu0 0
      %1593 = vmatpush2.bf16.msra.mxu0 0
      %1594 = vmatprep.subr.bf16.mxu0 0
      %1595 = vmatpush2.bf16.msra.mxu0 0
      %1596 = vmatprep.subr.bf16.mxu0 0
      %1597 = vmatpush2.bf16.msra.mxu0 0
      %1598 = vmatprep.subr.bf16.mxu0 0
      %1599 = vmatpush2.bf16.msra.mxu0 0
      %1600 = vmatprep.subr.bf16.mxu0 0
      %1601 = vmatpush2.bf16.msra.mxu0 0
      %1602 = vmatprep.subr.bf16.mxu0 0
      %1603 = vmatpush2.bf16.msra.mxu0 0
      %1604 = vmatprep.subr.bf16.mxu0 0
      %1605 = vmatpush2.bf16.msra.mxu0 0
      %1606 = vmatprep.mubr.bf16.mxu0 0
      %1607 = vmatmul.mubr.bf16.gmra.mxu0 %v504
      %v1608 = vpop.f32.mrf.mxu0
      %v1609 = vadd.f32 0.0, %v1608
      %v1610 = vpop.f32.mrf.mxu0
      %v1611 = vpop.f32.mrf.mxu0
      %v1612 = vadd.f32 0.0, %v1611
      %v1613 = vpop.f32.mrf.mxu0
      %1614 = vmatprep.mubr.bf16.mxu0 0
      %1615 = vmatmul.mubr.bf16.gmra.mxu0 %v507
      %v1616 = vpop.f32.mrf.mxu0
      %v1617 = vadd.f32 0.0, %v1616
      %v1618 = vpop.f32.mrf.mxu0
      %v1619 = vpop.f32.mrf.mxu0
      %v1620 = vadd.f32 0.0, %v1619
      %v1621 = vpop.f32.mrf.mxu0
      %1622 = vmatprep.mubr.bf16.mxu0 0
      %1623 = vmatmul.mubr.bf16.gmra.mxu0 %v510
      %v1624 = vpop.f32.mrf.mxu0
      %v1625 = vadd.f32 0.0, %v1624
      %v1626 = vpop.f32.mrf.mxu0
      %v1627 = vpop.f32.mrf.mxu0
      %v1628 = vadd.f32 0.0, %v1627
      %v1629 = vpop.f32.mrf.mxu0
      %1630 = vmatprep.mubr.bf16.mxu0 0
      %1631 = vmatmul.mubr.bf16.gmra.mxu0 %v513
      %v1632 = vpop.f32.mrf.mxu0
      %v1633 = vadd.f32 0.0, %v1632
      %v1634 = vpop.f32.mrf.mxu0
      %v1635 = vpop.f32.mrf.mxu0
      %v1636 = vadd.f32 0.0, %v1635
      %v1637 = vpop.f32.mrf.mxu0
      %1638 = vmatprep.mubr.bf16.mxu0 0
      %1639 = vmatmul.mubr.bf16.gmra.mxu0 %v516
      %v1640 = vpop.f32.mrf.mxu0
      %v1641 = vadd.f32 0.0, %v1640
      %v1642 = vpop.f32.mrf.mxu0
      %v1643 = vpop.f32.mrf.mxu0
      %v1644 = vadd.f32 0.0, %v1643
      %v1645 = vpop.f32.mrf.mxu0
      %1646 = vmatprep.mubr.bf16.mxu0 0
      %1647 = vmatmul.mubr.bf16.gmra.mxu0 %v519
      %v1648 = vpop.f32.mrf.mxu0
      %v1649 = vadd.f32 0.0, %v1648
      %v1650 = vpop.f32.mrf.mxu0
      %v1651 = vpop.f32.mrf.mxu0
      %v1652 = vadd.f32 0.0, %v1651
      %v1653 = vpop.f32.mrf.mxu0
      %1654 = vmatprep.mubr.bf16.mxu0 0
      %1655 = vmatmul.mubr.bf16.gmra.mxu0 %v1169
      %v1656 = vpop.f32.mrf.mxu0
      %v1657 = vadd.f32 0.0, %v1656
      %v1658 = vpop.f32.mrf.mxu0
      %v1659 = vpop.f32.mrf.mxu0
      %v1660 = vadd.f32 0.0, %v1659
      %v1661 = vpop.f32.mrf.mxu0
      %1662 = vmatprep.mubr.bf16.mxu0 0
      %1663 = vmatmul.mubr.bf16.gmra.mxu0 %v1569
      %v1664 = vpop.f32.mrf.mxu0
      %v1665 = vadd.f32 0.0, %v1664
      %v1666 = vpop.f32.mrf.mxu0
      %v1667 = vpop.f32.mrf.mxu0
      %v1668 = vadd.f32 0.0, %v1667
      %v1669 = vpop.f32.mrf.mxu0
      %1670 = vdwg.mxu0
      %v1671 = vadd.f32 %v1525, %v1609
      %v1672 = vadd.f32 %v1526, %v1612
      %v1673 = vadd.f32 %v1527, %v1617
      %v1674 = vadd.f32 %v1528, %v1620
      %v1675 = vadd.f32 %v1529, %v1625
      %v1676 = vadd.f32 %v1530, %v1628
      %v1677 = vadd.f32 %v1531, %v1633
      %v1678 = vadd.f32 %v1532, %v1636
      %v1679 = vadd.f32 %v1533, %v1641
      %v1680 = vadd.f32 %v1534, %v1644
      %v1681 = vadd.f32 %v1535, %v1649
      %v1682 = vadd.f32 %v1536, %v1652
      %v1683 = vadd.f32 %v1537, %v1657
      %v1684 = vadd.f32 %v1538, %v1660
      %v1685 = vadd.f32 %v1539, %v1665
      %v1686 = vadd.f32 %v1540, %v1668
      %v1688 = vrot.slane %v265, 5
      %v1689 = vrot.slane %v1688, 4
      %v1690 = vrot.slane %v266, 5
      %v1691 = vsel %vm796, %v1689, %v1690
      %v1692 = vrot.slane %v1690, 4
      %v1693 = vrot.slane %v267, 5
      %v1694 = vsel %vm796, %v1692, %v1693
      %v1695 = vunpack.c.l.b16 %v1691
      %v1696 = vunpack.c.l.b16 %v1694
      %v1697 = vpack.c.b16 %v1696, %v1695
      %v1699 = vsel %vm496, %v1697, 0
      %v1702 = vsel %vm521, %v276, 0
      %1704 = vmatprep.subr.bf16.mxu0 0
      %1705 = vmatpush1.bf16.msra.mxu0 0
      %1706 = vmatprep.subr.bf16.mxu0 0
      %1707 = vmatpush1.bf16.msra.mxu0 0
      %1708 = vmatprep.subr.bf16.mxu0 0
      %1709 = vmatpush1.bf16.msra.mxu0 0
      %1710 = vmatprep.subr.bf16.mxu0 0
      %1711 = vmatpush1.bf16.msra.mxu0 0
      %1712 = vmatprep.subr.bf16.mxu0 0
      %1713 = vmatpush1.bf16.msra.mxu0 0
      %1714 = vmatprep.subr.bf16.mxu0 0
      %1715 = vmatpush1.bf16.msra.mxu0 0
      %1716 = vmatprep.subr.bf16.mxu0 0
      %1717 = vmatpush1.bf16.msra.mxu0 0
      %1718 = vmatprep.subr.bf16.mxu0 0
      %1719 = vmatpush1.bf16.msra.mxu0 %v1702
      %1720 = vmatprep.subr.bf16.mxu0 0
      %1721 = vmatpush2.bf16.msra.mxu0 0
      %1722 = vmatprep.subr.bf16.mxu0 0
      %1723 = vmatpush2.bf16.msra.mxu0 0
      %1724 = vmatprep.subr.bf16.mxu0 0
      %1725 = vmatpush2.bf16.msra.mxu0 0
      %1726 = vmatprep.subr.bf16.mxu0 0
      %1727 = vmatpush2.bf16.msra.mxu0 0
      %1728 = vmatprep.subr.bf16.mxu0 0
      %1729 = vmatpush2.bf16.msra.mxu0 0
      %1730 = vmatprep.subr.bf16.mxu0 0
      %1731 = vmatpush2.bf16.msra.mxu0 0
      %1732 = vmatprep.subr.bf16.mxu0 0
      %1733 = vmatpush2.bf16.msra.mxu0 0
      %1734 = vmatprep.subr.bf16.mxu0 0
      %1735 = vmatpush2.bf16.msra.mxu0 0
      %1736 = vmatprep.mubr.bf16.mxu0 0
      %1737 = vmatmul.mubr.bf16.gmra.mxu0 %v884
      %v1738 = vpop.f32.mrf.mxu0
      %v1739 = vadd.f32 0.0, %v1738
      %v1740 = vpop.f32.mrf.mxu0
      %v1741 = vpop.f32.mrf.mxu0
      %v1742 = vadd.f32 0.0, %v1741
      %v1743 = vpop.f32.mrf.mxu0
      %1744 = vmatprep.mubr.bf16.mxu0 0
      %1745 = vmatmul.mubr.bf16.gmra.mxu0 %v887
      %v1746 = vpop.f32.mrf.mxu0
      %v1747 = vadd.f32 0.0, %v1746
      %v1748 = vpop.f32.mrf.mxu0
      %v1749 = vpop.f32.mrf.mxu0
      %v1750 = vadd.f32 0.0, %v1749
      %v1751 = vpop.f32.mrf.mxu0
      %1752 = vmatprep.mubr.bf16.mxu0 0
      %1753 = vmatmul.mubr.bf16.gmra.mxu0 %v890
      %v1754 = vpop.f32.mrf.mxu0
      %v1755 = vadd.f32 0.0, %v1754
      %v1756 = vpop.f32.mrf.mxu0
      %v1757 = vpop.f32.mrf.mxu0
      %v1758 = vadd.f32 0.0, %v1757
      %v1759 = vpop.f32.mrf.mxu0
      %1760 = vmatprep.mubr.bf16.mxu0 0
      %1761 = vmatmul.mubr.bf16.gmra.mxu0 %v893
      %v1762 = vpop.f32.mrf.mxu0
      %v1763 = vadd.f32 0.0, %v1762
      %v1764 = vpop.f32.mrf.mxu0
      %v1765 = vpop.f32.mrf.mxu0
      %v1766 = vadd.f32 0.0, %v1765
      %v1767 = vpop.f32.mrf.mxu0
      %1768 = vmatprep.mubr.bf16.mxu0 0
      %1769 = vmatmul.mubr.bf16.gmra.mxu0 %v896
      %v1770 = vpop.f32.mrf.mxu0
      %v1771 = vadd.f32 0.0, %v1770
      %v1772 = vpop.f32.mrf.mxu0
      %v1773 = vpop.f32.mrf.mxu0
      %v1774 = vadd.f32 0.0, %v1773
      %v1775 = vpop.f32.mrf.mxu0
      %1776 = vmatprep.mubr.bf16.mxu0 0
      %1777 = vmatmul.mubr.bf16.gmra.mxu0 %v899
      %v1778 = vpop.f32.mrf.mxu0
      %v1779 = vadd.f32 0.0, %v1778
      %v1780 = vpop.f32.mrf.mxu0
      %v1781 = vpop.f32.mrf.mxu0
      %v1782 = vadd.f32 0.0, %v1781
      %v1783 = vpop.f32.mrf.mxu0
      %1784 = vmatprep.mubr.bf16.mxu0 0
      %1785 = vmatmul.mubr.bf16.gmra.mxu0 %v1299
      %v1786 = vpop.f32.mrf.mxu0
      %v1787 = vadd.f32 0.0, %v1786
      %v1788 = vpop.f32.mrf.mxu0
      %v1789 = vpop.f32.mrf.mxu0
      %v1790 = vadd.f32 0.0, %v1789
      %v1791 = vpop.f32.mrf.mxu0
      %1792 = vmatprep.mubr.bf16.mxu0 0
      %1793 = vmatmul.mubr.bf16.gmra.mxu0 %v1699
      %v1794 = vpop.f32.mrf.mxu0
      %v1795 = vadd.f32 0.0, %v1794
      %v1796 = vpop.f32.mrf.mxu0
      %v1797 = vpop.f32.mrf.mxu0
      %v1798 = vadd.f32 0.0, %v1797
      %v1799 = vpop.f32.mrf.mxu0
      %1800 = vdwg.mxu0
      %v1801 = vadd.f32 %v1671, %v1739
      %v1802 = vadd.f32 %v1672, %v1742
      %v1803 = vadd.f32 %v1673, %v1747
      %v1804 = vadd.f32 %v1674, %v1750
      %v1805 = vadd.f32 %v1675, %v1755
      %v1806 = vadd.f32 %v1676, %v1758
      %v1807 = vadd.f32 %v1677, %v1763
      %v1808 = vadd.f32 %v1678, %v1766
      %v1809 = vadd.f32 %v1679, %v1771
      %v1810 = vadd.f32 %v1680, %v1774
      %v1811 = vadd.f32 %v1681, %v1779
      %v1812 = vadd.f32 %v1682, %v1782
      %v1813 = vadd.f32 %v1683, %v1787
      %v1814 = vadd.f32 %v1684, %v1790
      %v1815 = vadd.f32 %v1685, %v1795
      %v1816 = vadd.f32 %v1686, %v1798
      %v1817 = vld [vmem:[%s2] sm:$0x1]
      %v1819 = vlaneseq
      %v1820 = vshrl.u32 %v1819, 7
      %v1821 = vsub.s32 0, %v1820
      %v1822 = vrot.slane %v1817, %v1821
      %v1824 = vmul.f32 %v1801, %v1822
      %v1825 = vmul.f32 %v1802, %v1822
      %v1826 = vmul.f32 %v1803, %v1822
      %v1827 = vmul.f32 %v1804, %v1822
      %v1828 = vmul.f32 %v1805, %v1822
      %v1829 = vmul.f32 %v1806, %v1822
      %v1830 = vmul.f32 %v1807, %v1822
      %v1831 = vmul.f32 %v1808, %v1822
      %v1832 = vmul.f32 %v1809, %v1822
      %v1833 = vmul.f32 %v1810, %v1822
      %v1834 = vmul.f32 %v1811, %v1822
      %v1835 = vmul.f32 %v1812, %v1822
      %v1836 = vmul.f32 %v1813, %v1822
      %v1837 = vmul.f32 %v1814, %v1822
      %v1838 = vmul.f32 %v1815, %v1822
      %v1839 = vmul.f32 %v1816, %v1822
      %v1840 = vld [vmem:[%s3] sm:$0x1]
      %v1842 = vlaneseq
      %v1843 = vshrl.u32 %v1842, 7
      %v1844 = vsub.s32 0, %v1843
      %v1845 = vrot.slane %v1840, %v1844
      %v1847 = vadd.f32 %v1824, %v1845
      %v1848 = vadd.f32 %v1825, %v1845
      %v1849 = vadd.f32 %v1826, %v1845
      %v1850 = vadd.f32 %v1827, %v1845
      %v1851 = vadd.f32 %v1828, %v1845
      %v1852 = vadd.f32 %v1829, %v1845
      %v1853 = vadd.f32 %v1830, %v1845
      %v1854 = vadd.f32 %v1831, %v1845
      %v1855 = vadd.f32 %v1832, %v1845
      %v1856 = vadd.f32 %v1833, %v1845
      %v1857 = vadd.f32 %v1834, %v1845
      %v1858 = vadd.f32 %v1835, %v1845
      %v1859 = vadd.f32 %v1836, %v1845
      %v1860 = vadd.f32 %v1837, %v1845
      %v1861 = vadd.f32 %v1838, %v1845
      %v1862 = vadd.f32 %v1839, %v1845
      %v1863 = vmul.f32 %v1847, 0.2
      %v1864 = vmul.f32 %v1848, 0.2
      %v1865 = vmul.f32 %v1849, 0.2
      %v1866 = vmul.f32 %v1850, 0.2
      %v1867 = vmul.f32 %v1851, 0.2
      %v1868 = vmul.f32 %v1852, 0.2
      %v1869 = vmul.f32 %v1853, 0.2
      %v1870 = vmul.f32 %v1854, 0.2
      %v1871 = vmul.f32 %v1855, 0.2
      %v1872 = vmul.f32 %v1856, 0.2
      %v1873 = vmul.f32 %v1857, 0.2
      %v1874 = vmul.f32 %v1858, 0.2
      %v1875 = vmul.f32 %v1859, 0.2
      %v1876 = vmul.f32 %v1860, 0.2
      %v1877 = vmul.f32 %v1861, 0.2
      %v1878 = vmul.f32 %v1862, 0.2
      %v1879 = vmax.f32 %v1847, %v1863
      %v1880 = vmax.f32 %v1848, %v1864
      %v1881 = vmax.f32 %v1849, %v1865
      %v1882 = vmax.f32 %v1850, %v1866
      %v1883 = vmax.f32 %v1851, %v1867
      %v1884 = vmax.f32 %v1852, %v1868
      %v1885 = vmax.f32 %v1853, %v1869
      %v1886 = vmax.f32 %v1854, %v1870
      %v1887 = vmax.f32 %v1855, %v1871
      %v1888 = vmax.f32 %v1856, %v1872
      %v1889 = vmax.f32 %v1857, %v1873
      %v1890 = vmax.f32 %v1858, %v1874
      %v1891 = vmax.f32 %v1859, %v1875
      %v1892 = vmax.f32 %v1860, %v1876
      %v1893 = vmax.f32 %v1861, %v1877
      %v1894 = vmax.f32 %v1862, %v1878
      %v1895 = vpack.c.bf16 %v1880, %v1879
      %v1896 = vpack.c.bf16 %v1882, %v1881
      %v1897 = vpack.c.bf16 %v1884, %v1883
      %v1898 = vpack.c.bf16 %v1886, %v1885
      %v1899 = vpack.c.bf16 %v1888, %v1887
      %v1900 = vpack.c.bf16 %v1890, %v1889
      %v1901 = vpack.c.bf16 %v1892, %v1891
      %v1902 = vpack.c.bf16 %v1894, %v1893
      %v1911 = vunpack.c.l.b16 %v1895
      %v1912 = vunpack.c.h.b16 %v1895
      %v1913 = vunpack.c.l.b16 %v1896
      %v1914 = vunpack.c.h.b16 %v1896
      %v1915 = vunpack.c.l.b16 %v1897
      %v1916 = vunpack.c.h.b16 %v1897
      %v1917 = vunpack.c.l.b16 %v1898
      %v1918 = vunpack.c.h.b16 %v1898
      %v1919 = vunpack.c.l.b16 %v1899
      %v1920 = vunpack.c.h.b16 %v1899
      %v1921 = vunpack.c.l.b16 %v1900
      %v1922 = vunpack.c.h.b16 %v1900
      %v1923 = vunpack.c.l.b16 %v1901
      %v1924 = vunpack.c.h.b16 %v1901
      %v1925 = vunpack.c.l.b16 %v1902
      %v1926 = vunpack.c.h.b16 %v1902
      %v1927 = vpack.c.b16 %v1911, %v1911
      %v1928 = vpack.c.b16 %v1912, %v1912
      %v1929 = vpack.c.b16 %v1913, %v1913
      %v1930 = vpack.c.b16 %v1914, %v1914
      %v1931 = vpack.c.b16 %v1915, %v1915
      %v1932 = vpack.c.b16 %v1916, %v1916
      %v1933 = vpack.c.b16 %v1917, %v1917
      %v1934 = vpack.c.b16 %v1918, %v1918
      %v1935 = vpack.c.b16 %v1919, %v1919
      %v1936 = vpack.c.b16 %v1920, %v1920
      %v1937 = vpack.c.b16 %v1921, %v1921
      %v1938 = vpack.c.b16 %v1922, %v1922
      %v1939 = vpack.c.b16 %v1923, %v1923
      %v1940 = vpack.c.b16 %v1924, %v1924
      %v1941 = vpack.c.b16 %v1925, %v1925
      %v1942 = vpack.c.b16 %v1926, %v1926
      %vm1959 = vcmask 60416
      %1960 = vst.msk [vmem:[%s235] sm:$0xf] %vm1959, %v1927
      %1961 = vst.msk [vmem:[%s235 + $0x4] sm:$0xf] %vm1959, %v1928
      %1962 = vst.msk [vmem:[%s235 + $0x8] sm:$0xf] %vm1959, %v1929
      %1963 = vst.msk [vmem:[%s235 + $0xc] sm:$0xf] %vm1959, %v1930
      %1964 = vst.msk [vmem:[%s235 + $0x10] sm:$0xf] %vm1959, %v1931
      %1965 = vst.msk [vmem:[%s235 + $0x14] sm:$0xf] %vm1959, %v1932
      %1966 = vst.msk [vmem:[%s235 + $0x18] sm:$0xf] %vm1959, %v1933
      %1967 = vst.msk [vmem:[%s235 + $0x1c] sm:$0xf] %vm1959, %v1934
      %1968 = vst.msk [vmem:[%s235 + $0x20] sm:$0xf] %vm1959, %v1935
      %1969 = vst.msk [vmem:[%s235 + $0x24] sm:$0xf] %vm1959, %v1936
      %1970 = vst.msk [vmem:[%s235 + $0x28] sm:$0xf] %vm1959, %v1937
      %1971 = vst.msk [vmem:[%s235 + $0x2c] sm:$0xf] %vm1959, %v1938
      %1972 = vst.msk [vmem:[%s235 + $0x30] sm:$0xf] %vm1959, %v1939
      %1973 = vst.msk [vmem:[%s235 + $0x34] sm:$0xf] %vm1959, %v1940
      %1974 = vst.msk [vmem:[%s235 + $0x38] sm:$0xf] %vm1959, %v1941
      %1975 = vst.msk [vmem:[%s235 + $0x3c] sm:$0xf] %vm1959, %v1942
      %s1976 = smul.u32 8, %s20
      %p1977 = scmp.lt.s32.totalorder %s19, 1
      %s1978 = scalar_select %p1977, %s19, 1
      %p1979 = scmp.lt.s32.totalorder %s1976, 15
      %s1980 = scalar_select %p1979, %s1976, 15
      %s1981 = smul.addr %s1980, 2
      %s1982 = smul.addr %s1978, 32
      %s1983 = sadd.s32 %s1981, %s1982
      %s1984 = smul.addr %s1983, 4
      %s1985 = scalar_lea.vmem %s4, %s1984
      // Predicated region
      $region37: #{conv_block_forward.2} parent=35 // pred_check
        %p1986 = pneg %p138
      $region38: #{conv_block_forward.2} parent=35 // pred_check_branch
        %1988 = sbr.rel (%p1986) target = $region40
      $region39: #{conv_block_forward.2} parent=35 // pred_region
        %s1989 = smul.u32 8, %s20
      $region40: #{conv_block_forward.2} parent=35 // pred_fallthru
        _
    $region36: #{conv_block_forward.2} parent=5 // pred_fallthru
      _
    %p1990 = scmp.le.s32.totalorder 2, %s10
    // Predicated region
    $region41: #{conv_block_forward.2} parent=5 // pred_check
      %p1991 = pneg %p1990
    $region42: #{conv_block_forward.2} parent=5 // pred_check_branch
      %1993 = sbr.rel (%p1991) target = $region44
    $region43: #{conv_block_forward.2} parent=5 // pred_region
      %s1994 = ssub.s32 %s10, 2
      // Predicated region
      $region45: #{conv_block_forward.2} parent=43 // pred_check
        %p1995 = pneg %p144
      $region46: #{conv_block_forward.2} parent=43 // pred_check_branch
        %1997 = sbr.rel (%p1995) target = $region48
      $region47: #{conv_block_forward.2} parent=43 // pred_region
        %s1998 = smul.u32 8, %s22
        %p1999 = scmp.lt.s32.totalorder %s21, 1
        %s2000 = scalar_select %p1999, %s21, 1
        %p2001 = scmp.lt.s32.totalorder %s1998, 15
        %s2002 = scalar_select %p2001, %s1998, 15
        %s2003 = smul.addr %s2002, 2
        %s2004 = smul.addr %s2000, 32
        %s2005 = sadd.s32 %s2003, %s2004
        %s2006 = smul.addr %s2005, 4
        %s2007 = scalar_lea.vmem %s4, %s2006
      $region48: #{conv_block_forward.2} parent=43 // pred_fallthru
        _
    $region44: #{conv_block_forward.2} parent=5 // pred_fallthru
      _
  $region6: #{conv_block_forward.2} parent=0 // loop_footer
    %s14 = sadd.s32 1, %s10
  $region7: #{conv_block_forward.2} parent=0 // loop_footer_branch
    %9 = sbr.rel target = $region3
  $region8: #{conv_block_forward.2} parent=0 // loop_exit
    _

</llo_original>
